<compile_context>
chip_gen: v7x
topology: tpu7x:2x2x1
jax: 0.10.0
libtpu: 0.0.40
codegen_flags: <defaults>
</compile_context>

<pallas_src>
import functools

import jax
import jax.numpy as jnp
import numpy as np
from jax.experimental import pallas as pl
from jax.experimental.pallas import tpu as pltpu

BN_EPS = 1e-5
PTS_EPS = 1e-12            # guards the Points() normalization against var==0
SCALE = [1, 2, 4, 8]       # PPCA groups=4 -> F = 1+2+4+8 = 15 pooled features


# ----------------------------------------------------------------------------
# Fused BasicBlock kernel (single invocation, everything VMEM-resident)
# ----------------------------------------------------------------------------
def basic_block_kernel(x_ref, w1_ref, w2_ref, g1_ref, b1_ref, g2_ref, b2_ref,
                       pool_ref, wp_ref, edge_ref, o_ref, pad_scr,
                       *, n, c, h, w, pad):
    f32 = jnp.float32
    hw = h * w

    # Hoisted tiny constants (loaded once).
    mask_l = edge_ref[0:1, :]                  # (1, HW) valid lanes for dx = -1
    mask_r = edge_ref[1:2, :]                  # (1, HW) valid lanes for dx = +1
    edge_mask = {-1: mask_l, 0: None, 1: mask_r}

    def conv3x3(sample, w_ref):
        # 3x3 conv of one zero-padded sample pad_scr[sample] (C, HW + 2*pad):
        # 9 accumulated (Cout, Cin) @ (Cin, HW) matmuls on shifted lane windows.
        acc = jnp.zeros((c, hw), f32)
        for ky in range(3):
            for kx in range(3):
                off = (ky - 1) * w + (kx - 1)
                xs = pad_scr[sample, :, pad + off: pad + off + hw]   # (Cin, HW)
                m = edge_mask[kx - 1]
                if m is not None:                 # horizontal edge masking
                    xs = xs * m
                acc = acc + jnp.dot(w_ref[ky * 3 + kx], xs,
                                    preferred_element_type=f32)
        return acc

    def bn_affine(s, q, g, b):
        # Fold training-mode BN (single-pass batch stats) into scale + shift.
        inv_cnt = 1.0 / (n * hw)
        mean = s * inv_cnt
        var = q * inv_cnt - mean * mean           # biased variance
        scale = g * jax.lax.rsqrt(var + BN_EPS)
        shift = b - mean * scale
        return scale, shift

    # Zero the padded scratch once: pad lanes stay zero, so vertically
    # out-of-range taps read zeros without any extra masking.
    pad_scr[...] = jnp.zeros_like(pad_scr)

    # ---- conv1 (raw) over the whole batch + single-pass BN1 statistics ----
    z1 = []
    s1 = jnp.zeros((c, 1), f32)
    q1 = jnp.zeros((c, 1), f32)
    for i in range(n):
        pad_scr[i, :, pad:pad + hw] = x_ref[i]
        zi = conv3x3(i, w1_ref)
        z1.append(zi)
        s1 = s1 + jnp.sum(zi, axis=1, keepdims=True)
        q1 = q1 + jnp.sum(zi * zi, axis=1, keepdims=True)
    sc1, sh1 = bn_affine(s1, q1, g1_ref[...], b1_ref[...])

    # ---- bn1 + relu, written into the (reused) padded scratch for conv2 ----
    for i in range(n):
        pad_scr[i, :, pad:pad + hw] = jnp.maximum(z1[i] * sc1 + sh1, 0.0)

    # ---- conv2 (raw) + single-pass BN2 statistics ----
    z2 = []
    s2 = jnp.zeros((c, 1), f32)
    q2 = jnp.zeros((c, 1), f32)
    for i in range(n):
        zi = conv3x3(i, w2_ref)
        z2.append(zi)
        s2 = s2 + jnp.sum(zi, axis=1, keepdims=True)
        q2 = q2 + jnp.sum(zi * zi, axis=1, keepdims=True)
    sc2, sh2 = bn_affine(s2, q2, g2_ref[...], b2_ref[...])

    # ---- bn2 + PPCA gate + residual add + final relu ----
    pool = pool_ref[...]            # (F, C)  channel-group mean pooling
    wp = wp_ref[...]                # (F, HW) PPCA weight, transposed
    for i in range(n):
        y2 = z2[i] * sc2 + sh2                                    # (C, HW)
        t = jnp.dot(pool, y2, preferred_element_type=f32)         # (F, HW)
        tm = jnp.mean(t, axis=0, keepdims=True)                   # (1, HW)
        tv = jnp.mean((t - tm) ** 2, axis=0, keepdims=True)       # unbiased=False
        tn = (t - tm) * jax.lax.rsqrt(tv + PTS_EPS)
        zg = jnp.sum(tn * wp, axis=0, keepdims=True)              # (1, HW)
        gate = jax.nn.sigmoid(zg)
        out = jnp.maximum(y2 * gate + x_ref[i], 0.0)              # + residual
        o_ref[i] = out.astype(o_ref.dtype)


# ----------------------------------------------------------------------------
# Wrapper: free reshapes + tiny one-time parameter repacking, one pallas_call
# ----------------------------------------------------------------------------
def make_pool_matrix(C):
    # (F, C) matrix implementing the PPCA channel-group mean pooling.
    rows = []
    for i in SCALE:
        for j in range(i):
            lo, hi = C * j // i, C * (j + 1) // i
            row = np.zeros((C,), np.float32)
            row[lo:hi] = 1.0 / (hi - lo)
            rows.append(row)
    return jnp.asarray(np.stack(rows, axis=0))


def basic_block_forward(x_nchw, params):
    # TODO(synk): stride>1 / downsample branch not exercised (stride=1, downsample=None).
    N, C, H, W = x_nchw.shape
    HW = H * W
    PAD = W + 1
    HWP = HW + 2 * PAD

    # Free reshape: stay channel-first end-to-end (no NCHW<->NHWC transposes).
    x_flat = x_nchw.reshape(N, C, HW)

    # Per-tap conv weight matrices (9, Cout, Cin) -- one-time tiny repack.
    w1t = jnp.transpose(params["w1"].reshape(9, C, C), (0, 2, 1))
    w2t = jnp.transpose(params["w2"].reshape(9, C, C), (0, 2, 1))

    g1 = params["g1"].reshape(C, 1)
    b1 = params["b1"].reshape(C, 1)
    g2 = params["g2"].reshape(C, 1)
    b2 = params["b2"].reshape(C, 1)

    pool = make_pool_matrix(C)                      # (F, C)
    wp_t = jnp.transpose(params["w_ppca"])          # (F, HW)

    # Lane masks for the horizontal 3x3 taps (dx = -1 / +1): zero out lanes
    # whose shifted read would wrap across an image row (numpy constants).
    col = np.arange(HW, dtype=np.int64) % W
    edge = jnp.asarray(np.stack([(col >= 1), (col <= W - 2)]).astype(np.float32))

    kernel = functools.partial(basic_block_kernel, n=N, c=C, h=H, w=W, pad=PAD)

    out = pl.pallas_call(
        kernel,
        out_shape=jax.ShapeDtypeStruct((N, C, HW), jnp.float32),
        scratch_shapes=[pltpu.VMEM((N, C, HWP), jnp.float32)],
    )(x_flat, w1t, w2t, g1, b1, g2, b2, pool, wp_t, edge)

    return out.reshape(N, C, H, W)                  # free reshape back to NCHW


# ----------------------------------------------------------------------------
# Pure-JAX reference (mirrors the PyTorch forward) for verification
# ----------------------------------------------------------------------------
def ref_forward(x_nchw, params):
    def conv(x, w_hwio):
        return jax.lax.conv_general_dilated(
            x, w_hwio, window_strides=(1, 1), padding=((1, 1), (1, 1)),
            dimension_numbers=("NCHW", "HWIO", "NCHW"))

    def bn(y, g, b):
        mean = jnp.mean(y, axis=(0, 2, 3), keepdims=True)
        var = jnp.mean((y - mean) ** 2, axis=(0, 2, 3), keepdims=True)
        return (y - mean) / jnp.sqrt(var + BN_EPS) * g.reshape(1, -1, 1, 1) \
               + b.reshape(1, -1, 1, 1)

    out = jax.nn.relu(bn(conv(x_nchw, params["w1"]), params["g1"], params["b1"]))
    out = bn(conv(out, params["w2"]), params["g2"], params["b2"])

    b_, c, h, w_ = out.shape
    feats = []
    for i in SCALE:
        for j in range(i):
            lo, hi = c * j // i, c * (j + 1) // i
            feats.append(jnp.mean(out[:, lo:hi], axis=1).reshape(b_, 1, h * w_))
    y_t = jnp.concatenate(feats, 1)                              # (b, F, HW)
    ym = jnp.mean(y_t, axis=1, keepdims=True)
    ys = jnp.sqrt(jnp.mean((y_t - ym) ** 2, axis=1, keepdims=True) + PTS_EPS)
    y_t = (y_t - ym) / ys
    y = jnp.transpose(y_t, (0, 2, 1))                            # (b, HW, F)
    z = jnp.sum(y * params["w_ppca"][None], axis=2)              # (b, HW)
    gate = jax.nn.sigmoid(z).reshape(b_, 1, h, w_)
    out = out * gate + x_nchw
    return jax.nn.relu(out)


if __name__ == "__main__":
    # small config consistent with the module: layer_idx=3 => 7x7 spatial
    N, planes, H, W = 2, 8, 7, 7
    F = sum(SCALE)

    key = jax.random.PRNGKey(0)
    ks = jax.random.split(key, 8)
    params = {
        "w1": jax.random.normal(ks[0], (3, 3, planes, planes), jnp.float32) * 0.1,
        "w2": jax.random.normal(ks[1], (3, 3, planes, planes), jnp.float32) * 0.1,
        "g1": 1.0 + 0.1 * jax.random.normal(ks[2], (planes,), jnp.float32),
        "b1": 0.1 * jax.random.normal(ks[3], (planes,), jnp.float32),
        "g2": 1.0 + 0.1 * jax.random.normal(ks[4], (planes,), jnp.float32),
        "b2": 0.1 * jax.random.normal(ks[5], (planes,), jnp.float32),
        # module init fills the PPCA weight with 0 (=> gate==0.5); use nonzero
        # deterministic values so the gating path is actually exercised.
        "w_ppca": 0.5 * jax.random.normal(ks[6], (H * W, F), jnp.float32),
    }
    x = jax.random.normal(ks[7], (N, planes, H, W), jnp.float32)

    fwd = jax.jit(basic_block_forward)
    out = jax.block_until_ready(fwd(x, params))

    ref = ref_forward(x, params)
    np.testing.assert_allclose(np.asarray(out), np.asarray(ref), rtol=2e-4, atol=2e-4)
    assert out.shape == (N, planes, H, W)
    print("KERNEL_OK")
</pallas_src>

<mosaic_0001>
module attributes {stable_mosaic.version = 11 : i64} {
  func.func @basic_block_kernel(%arg0: memref<2x8x49xf32, #tpu.memory_space<vmem>>, %arg1: memref<9x8x8xf32, #tpu.memory_space<vmem>>, %arg2: memref<9x8x8xf32, #tpu.memory_space<vmem>>, %arg3: memref<8x1xf32, #tpu.memory_space<vmem>>, %arg4: memref<8x1xf32, #tpu.memory_space<vmem>>, %arg5: memref<8x1xf32, #tpu.memory_space<vmem>>, %arg6: memref<8x1xf32, #tpu.memory_space<vmem>>, %arg7: memref<15x8xf32, #tpu.memory_space<vmem>>, %arg8: memref<15x49xf32, #tpu.memory_space<vmem>>, %arg9: memref<2x49xf32, #tpu.memory_space<vmem>>, %arg10: memref<2x8x49xf32, #tpu.memory_space<vmem>>, %arg11: memref<2x8x65xf32, #tpu.memory_space<vmem>>) attributes {dimension_semantics = [], scalar_prefetch = 0 : i64, scratch_operands = 1 : i64, tpu.core_type = #tpu.core_type<tc>} {
    %c0 = arith.constant 0 : index
    %c0_0 = arith.constant 0 : index
    %0 = vector.load %arg9[%c0, %c0_0] : memref<2x49xf32, #tpu.memory_space<vmem>>, vector<1x49xf32>
    %c1 = arith.constant 1 : index
    %c0_1 = arith.constant 0 : index
    %1 = vector.load %arg9[%c1, %c0_1] : memref<2x49xf32, #tpu.memory_space<vmem>>, vector<1x49xf32>
    %cst = arith.constant 0.000000e+00 : f32
    %2 = vector.broadcast %cst : f32 to vector<2x8x65xf32>
    %c0_2 = arith.constant 0 : index
    %c0_3 = arith.constant 0 : index
    %c0_4 = arith.constant 0 : index
    %3 = vector.load %arg11[%c0_2, %c0_3, %c0_4] : memref<2x8x65xf32, #tpu.memory_space<vmem>>, vector<2x8x65xf32>
    tpu.vector_store %arg11[%c0_2, %c0_3, %c0_4], %2 {strides = array<i32>} : memref<2x8x65xf32, #tpu.memory_space<vmem>>, vector<2x8x65xf32>,
    %cst_5 = arith.constant 0.000000e+00 : f32
    %4 = vector.broadcast %cst_5 : f32 to vector<8x1xf32>
    %cst_6 = arith.constant 0.000000e+00 : f32
    %5 = vector.broadcast %cst_6 : f32 to vector<8x1xf32>
    %c0_7 = arith.constant 0 : index
    %c0_8 = arith.constant 0 : index
    %c0_9 = arith.constant 0 : index
    %6 = vector.load %arg0[%c0_7, %c0_8, %c0_9] : memref<2x8x49xf32, #tpu.memory_space<vmem>>, vector<1x8x49xf32>
    %7 = vector.shape_cast %6 : vector<1x8x49xf32> to vector<8x49xf32>
    %c0_10 = arith.constant 0 : index
    %c0_11 = arith.constant 0 : index
    %c8 = arith.constant 8 : index
    %8 = vector.load %arg11[%c0_10, %c0_11, %c8] : memref<2x8x65xf32, #tpu.memory_space<vmem>>, vector<1x8x49xf32>
    %9 = vector.shape_cast %8 : vector<1x8x49xf32> to vector<8x49xf32>
    %10 = vector.shape_cast %7 : vector<8x49xf32> to vector<1x8x49xf32>
    tpu.vector_store %arg11[%c0_10, %c0_11, %c8], %10 {strides = array<i32>} : memref<2x8x65xf32, #tpu.memory_space<vmem>>, vector<1x8x49xf32>,
    %cst_12 = arith.constant 0.000000e+00 : f32
    %11 = vector.broadcast %cst_12 : f32 to vector<8x49xf32>
    %c0_13 = arith.constant 0 : index
    %c0_14 = arith.constant 0 : index
    %c0_15 = arith.constant 0 : index
    %12 = vector.load %arg11[%c0_13, %c0_14, %c0_15] : memref<2x8x65xf32, #tpu.memory_space<vmem>>, vector<1x8x49xf32>
    %13 = vector.shape_cast %12 : vector<1x8x49xf32> to vector<8x49xf32>
    %14 = vector.broadcast %0 : vector<1x49xf32> to vector<8x49xf32>
    %15 = arith.mulf %13, %14 : vector<8x49xf32>
    %c0_16 = arith.constant 0 : index
    %c0_17 = arith.constant 0 : index
    %c0_18 = arith.constant 0 : index
    %16 = vector.load %arg1[%c0_16, %c0_17, %c0_18] : memref<9x8x8xf32, #tpu.memory_space<vmem>>, vector<1x8x8xf32>
    %17 = vector.shape_cast %16 : vector<1x8x8xf32> to vector<8x8xf32>
    %cst_19 = arith.constant dense<0.000000e+00> : vector<8x49xf32>
    %18 = tpu.matmul %17, %15, %cst_19 {dimension_numbers = #tpu.dot_dimension_numbers<[1], [0], [0], [1], [0, 0, 1, 1], [], []>} : vector<8x8xf32>, vector<8x49xf32>, vector<8x49xf32> -> vector<8x49xf32>
    %19 = arith.addf %11, %18 : vector<8x49xf32>
    %c0_20 = arith.constant 0 : index
    %c0_21 = arith.constant 0 : index
    %c1_22 = arith.constant 1 : index
    %20 = vector.load %arg11[%c0_20, %c0_21, %c1_22] : memref<2x8x65xf32, #tpu.memory_space<vmem>>, vector<1x8x49xf32>
    %21 = vector.shape_cast %20 : vector<1x8x49xf32> to vector<8x49xf32>
    %c1_23 = arith.constant 1 : index
    %c0_24 = arith.constant 0 : index
    %c0_25 = arith.constant 0 : index
    %22 = vector.load %arg1[%c1_23, %c0_24, %c0_25] : memref<9x8x8xf32, #tpu.memory_space<vmem>>, vector<1x8x8xf32>
    %23 = vector.shape_cast %22 : vector<1x8x8xf32> to vector<8x8xf32>
    %cst_26 = arith.constant dense<0.000000e+00> : vector<8x49xf32>
    %24 = tpu.matmul %23, %21, %cst_26 {dimension_numbers = #tpu.dot_dimension_numbers<[1], [0], [0], [1], [0, 0, 1, 1], [], []>} : vector<8x8xf32>, vector<8x49xf32>, vector<8x49xf32> -> vector<8x49xf32>
    %25 = arith.addf %19, %24 : vector<8x49xf32>
    %c0_27 = arith.constant 0 : index
    %c0_28 = arith.constant 0 : index
    %c2 = arith.constant 2 : index
    %26 = vector.load %arg11[%c0_27, %c0_28, %c2] : memref<2x8x65xf32, #tpu.memory_space<vmem>>, vector<1x8x49xf32>
    %27 = vector.shape_cast %26 : vector<1x8x49xf32> to vector<8x49xf32>
    %28 = vector.broadcast %1 : vector<1x49xf32> to vector<8x49xf32>
    %29 = arith.mulf %27, %28 : vector<8x49xf32>
    %c2_29 = arith.constant 2 : index
    %c0_30 = arith.constant 0 : index
    %c0_31 = arith.constant 0 : index
    %30 = vector.load %arg1[%c2_29, %c0_30, %c0_31] : memref<9x8x8xf32, #tpu.memory_space<vmem>>, vector<1x8x8xf32>
    %31 = vector.shape_cast %30 : vector<1x8x8xf32> to vector<8x8xf32>
    %cst_32 = arith.constant dense<0.000000e+00> : vector<8x49xf32>
    %32 = tpu.matmul %31, %29, %cst_32 {dimension_numbers = #tpu.dot_dimension_numbers<[1], [0], [0], [1], [0, 0, 1, 1], [], []>} : vector<8x8xf32>, vector<8x49xf32>, vector<8x49xf32> -> vector<8x49xf32>
    %33 = arith.addf %25, %32 : vector<8x49xf32>
    %c0_33 = arith.constant 0 : index
    %c0_34 = arith.constant 0 : index
    %c7 = arith.constant 7 : index
    %34 = vector.load %arg11[%c0_33, %c0_34, %c7] : memref<2x8x65xf32, #tpu.memory_space<vmem>>, vector<1x8x49xf32>
    %35 = vector.shape_cast %34 : vector<1x8x49xf32> to vector<8x49xf32>
    %36 = vector.broadcast %0 : vector<1x49xf32> to vector<8x49xf32>
    %37 = arith.mulf %35, %36 : vector<8x49xf32>
    %c3 = arith.constant 3 : index
    %c0_35 = arith.constant 0 : index
    %c0_36 = arith.constant 0 : index
    %38 = vector.load %arg1[%c3, %c0_35, %c0_36] : memref<9x8x8xf32, #tpu.memory_space<vmem>>, vector<1x8x8xf32>
    %39 = vector.shape_cast %38 : vector<1x8x8xf32> to vector<8x8xf32>
    %cst_37 = arith.constant dense<0.000000e+00> : vector<8x49xf32>
    %40 = tpu.matmul %39, %37, %cst_37 {dimension_numbers = #tpu.dot_dimension_numbers<[1], [0], [0], [1], [0, 0, 1, 1], [], []>} : vector<8x8xf32>, vector<8x49xf32>, vector<8x49xf32> -> vector<8x49xf32>
    %41 = arith.addf %33, %40 : vector<8x49xf32>
    %c0_38 = arith.constant 0 : index
    %c0_39 = arith.constant 0 : index
    %c8_40 = arith.constant 8 : index
    %42 = vector.load %arg11[%c0_38, %c0_39, %c8_40] : memref<2x8x65xf32, #tpu.memory_space<vmem>>, vector<1x8x49xf32>
    %43 = vector.shape_cast %42 : vector<1x8x49xf32> to vector<8x49xf32>
    %c4 = arith.constant 4 : index
    %c0_41 = arith.constant 0 : index
    %c0_42 = arith.constant 0 : index
    %44 = vector.load %arg1[%c4, %c0_41, %c0_42] : memref<9x8x8xf32, #tpu.memory_space<vmem>>, vector<1x8x8xf32>
    %45 = vector.shape_cast %44 : vector<1x8x8xf32> to vector<8x8xf32>
    %cst_43 = arith.constant dense<0.000000e+00> : vector<8x49xf32>
    %46 = tpu.matmul %45, %43, %cst_43 {dimension_numbers = #tpu.dot_dimension_numbers<[1], [0], [0], [1], [0, 0, 1, 1], [], []>} : vector<8x8xf32>, vector<8x49xf32>, vector<8x49xf32> -> vector<8x49xf32>
    %47 = arith.addf %41, %46 : vector<8x49xf32>
    %c0_44 = arith.constant 0 : index
    %c0_45 = arith.constant 0 : index
    %c9 = arith.constant 9 : index
    %48 = vector.load %arg11[%c0_44, %c0_45, %c9] : memref<2x8x65xf32, #tpu.memory_space<vmem>>, vector<1x8x49xf32>
    %49 = vector.shape_cast %48 : vector<1x8x49xf32> to vector<8x49xf32>
    %50 = vector.broadcast %1 : vector<1x49xf32> to vector<8x49xf32>
    %51 = arith.mulf %49, %50 : vector<8x49xf32>
    %c5 = arith.constant 5 : index
    %c0_46 = arith.constant 0 : index
    %c0_47 = arith.constant 0 : index
    %52 = vector.load %arg1[%c5, %c0_46, %c0_47] : memref<9x8x8xf32, #tpu.memory_space<vmem>>, vector<1x8x8xf32>
    %53 = vector.shape_cast %52 : vector<1x8x8xf32> to vector<8x8xf32>
    %cst_48 = arith.constant dense<0.000000e+00> : vector<8x49xf32>
    %54 = tpu.matmul %53, %51, %cst_48 {dimension_numbers = #tpu.dot_dimension_numbers<[1], [0], [0], [1], [0, 0, 1, 1], [], []>} : vector<8x8xf32>, vector<8x49xf32>, vector<8x49xf32> -> vector<8x49xf32>
    %55 = arith.addf %47, %54 : vector<8x49xf32>
    %c0_49 = arith.constant 0 : index
    %c0_50 = arith.constant 0 : index
    %c14 = arith.constant 14 : index
    %56 = vector.load %arg11[%c0_49, %c0_50, %c14] : memref<2x8x65xf32, #tpu.memory_space<vmem>>, vector<1x8x49xf32>
    %57 = vector.shape_cast %56 : vector<1x8x49xf32> to vector<8x49xf32>
    %58 = vector.broadcast %0 : vector<1x49xf32> to vector<8x49xf32>
    %59 = arith.mulf %57, %58 : vector<8x49xf32>
    %c6 = arith.constant 6 : index
    %c0_51 = arith.constant 0 : index
    %c0_52 = arith.constant 0 : index
    %60 = vector.load %arg1[%c6, %c0_51, %c0_52] : memref<9x8x8xf32, #tpu.memory_space<vmem>>, vector<1x8x8xf32>
    %61 = vector.shape_cast %60 : vector<1x8x8xf32> to vector<8x8xf32>
    %cst_53 = arith.constant dense<0.000000e+00> : vector<8x49xf32>
    %62 = tpu.matmul %61, %59, %cst_53 {dimension_numbers = #tpu.dot_dimension_numbers<[1], [0], [0], [1], [0, 0, 1, 1], [], []>} : vector<8x8xf32>, vector<8x49xf32>, vector<8x49xf32> -> vector<8x49xf32>
    %63 = arith.addf %55, %62 : vector<8x49xf32>
    %c0_54 = arith.constant 0 : index
    %c0_55 = arith.constant 0 : index
    %c15 = arith.constant 15 : index
    %64 = vector.load %arg11[%c0_54, %c0_55, %c15] : memref<2x8x65xf32, #tpu.memory_space<vmem>>, vector<1x8x49xf32>
    %65 = vector.shape_cast %64 : vector<1x8x49xf32> to vector<8x49xf32>
    %c7_56 = arith.constant 7 : index
    %c0_57 = arith.constant 0 : index
    %c0_58 = arith.constant 0 : index
    %66 = vector.load %arg1[%c7_56, %c0_57, %c0_58] : memref<9x8x8xf32, #tpu.memory_space<vmem>>, vector<1x8x8xf32>
    %67 = vector.shape_cast %66 : vector<1x8x8xf32> to vector<8x8xf32>
    %cst_59 = arith.constant dense<0.000000e+00> : vector<8x49xf32>
    %68 = tpu.matmul %67, %65, %cst_59 {dimension_numbers = #tpu.dot_dimension_numbers<[1], [0], [0], [1], [0, 0, 1, 1], [], []>} : vector<8x8xf32>, vector<8x49xf32>, vector<8x49xf32> -> vector<8x49xf32>
    %69 = arith.addf %63, %68 : vector<8x49xf32>
    %c0_60 = arith.constant 0 : index
    %c0_61 = arith.constant 0 : index
    %c16 = arith.constant 16 : index
    %70 = vector.load %arg11[%c0_60, %c0_61, %c16] : memref<2x8x65xf32, #tpu.memory_space<vmem>>, vector<1x8x49xf32>
    %71 = vector.shape_cast %70 : vector<1x8x49xf32> to vector<8x49xf32>
    %72 = vector.broadcast %1 : vector<1x49xf32> to vector<8x49xf32>
    %73 = arith.mulf %71, %72 : vector<8x49xf32>
    %c8_62 = arith.constant 8 : index
    %c0_63 = arith.constant 0 : index
    %c0_64 = arith.constant 0 : index
    %74 = vector.load %arg1[%c8_62, %c0_63, %c0_64] : memref<9x8x8xf32, #tpu.memory_space<vmem>>, vector<1x8x8xf32>
    %75 = vector.shape_cast %74 : vector<1x8x8xf32> to vector<8x8xf32>
    %cst_65 = arith.constant dense<0.000000e+00> : vector<8x49xf32>
    %76 = tpu.matmul %75, %73, %cst_65 {dimension_numbers = #tpu.dot_dimension_numbers<[1], [0], [0], [1], [0, 0, 1, 1], [], []>} : vector<8x8xf32>, vector<8x49xf32>, vector<8x49xf32> -> vector<8x49xf32>
    %77 = arith.addf %69, %76 : vector<8x49xf32>
    %cst_66 = arith.constant dense<0.000000e+00> : vector<8xf32>
    %78 = vector.multi_reduction <add>, %77, %cst_66 [1] : vector<8x49xf32> to vector<8xf32>
    %79 = vector.shape_cast %78 : vector<8xf32> to vector<8x1xf32>
    %80 = arith.addf %4, %79 : vector<8x1xf32>
    %81 = arith.mulf %77, %77 : vector<8x49xf32>
    %cst_67 = arith.constant dense<0.000000e+00> : vector<8xf32>
    %82 = vector.multi_reduction <add>, %81, %cst_67 [1] : vector<8x49xf32> to vector<8xf32>
    %83 = vector.shape_cast %82 : vector<8xf32> to vector<8x1xf32>
    %84 = arith.addf %5, %83 : vector<8x1xf32>
    %c1_68 = arith.constant 1 : index
    %c0_69 = arith.constant 0 : index
    %c0_70 = arith.constant 0 : index
    %85 = vector.load %arg0[%c1_68, %c0_69, %c0_70] : memref<2x8x49xf32, #tpu.memory_space<vmem>>, vector<1x8x49xf32>
    %86 = vector.shape_cast %85 : vector<1x8x49xf32> to vector<8x49xf32>
    %c1_71 = arith.constant 1 : index
    %c0_72 = arith.constant 0 : index
    %c8_73 = arith.constant 8 : index
    %87 = vector.load %arg11[%c1_71, %c0_72, %c8_73] : memref<2x8x65xf32, #tpu.memory_space<vmem>>, vector<1x8x49xf32>
    %88 = vector.shape_cast %87 : vector<1x8x49xf32> to vector<8x49xf32>
    %89 = vector.shape_cast %86 : vector<8x49xf32> to vector<1x8x49xf32>
    tpu.vector_store %arg11[%c1_71, %c0_72, %c8_73], %89 {strides = array<i32>} : memref<2x8x65xf32, #tpu.memory_space<vmem>>, vector<1x8x49xf32>,
    %cst_74 = arith.constant 0.000000e+00 : f32
    %90 = vector.broadcast %cst_74 : f32 to vector<8x49xf32>
    %c1_75 = arith.constant 1 : index
    %c0_76 = arith.constant 0 : index
    %c0_77 = arith.constant 0 : index
    %91 = vector.load %arg11[%c1_75, %c0_76, %c0_77] : memref<2x8x65xf32, #tpu.memory_space<vmem>>, vector<1x8x49xf32>
    %92 = vector.shape_cast %91 : vector<1x8x49xf32> to vector<8x49xf32>
    %93 = vector.broadcast %0 : vector<1x49xf32> to vector<8x49xf32>
    %94 = arith.mulf %92, %93 : vector<8x49xf32>
    %c0_78 = arith.constant 0 : index
    %c0_79 = arith.constant 0 : index
    %c0_80 = arith.constant 0 : index
    %95 = vector.load %arg1[%c0_78, %c0_79, %c0_80] : memref<9x8x8xf32, #tpu.memory_space<vmem>>, vector<1x8x8xf32>
    %96 = vector.shape_cast %95 : vector<1x8x8xf32> to vector<8x8xf32>
    %cst_81 = arith.constant dense<0.000000e+00> : vector<8x49xf32>
    %97 = tpu.matmul %96, %94, %cst_81 {dimension_numbers = #tpu.dot_dimension_numbers<[1], [0], [0], [1], [0, 0, 1, 1], [], []>} : vector<8x8xf32>, vector<8x49xf32>, vector<8x49xf32> -> vector<8x49xf32>
    %98 = arith.addf %90, %97 : vector<8x49xf32>
    %c1_82 = arith.constant 1 : index
    %c0_83 = arith.constant 0 : index
    %c1_84 = arith.constant 1 : index
    %99 = vector.load %arg11[%c1_82, %c0_83, %c1_84] : memref<2x8x65xf32, #tpu.memory_space<vmem>>, vector<1x8x49xf32>
    %100 = vector.shape_cast %99 : vector<1x8x49xf32> to vector<8x49xf32>
    %c1_85 = arith.constant 1 : index
    %c0_86 = arith.constant 0 : index
    %c0_87 = arith.constant 0 : index
    %101 = vector.load %arg1[%c1_85, %c0_86, %c0_87] : memref<9x8x8xf32, #tpu.memory_space<vmem>>, vector<1x8x8xf32>
    %102 = vector.shape_cast %101 : vector<1x8x8xf32> to vector<8x8xf32>
    %cst_88 = arith.constant dense<0.000000e+00> : vector<8x49xf32>
    %103 = tpu.matmul %102, %100, %cst_88 {dimension_numbers = #tpu.dot_dimension_numbers<[1], [0], [0], [1], [0, 0, 1, 1], [], []>} : vector<8x8xf32>, vector<8x49xf32>, vector<8x49xf32> -> vector<8x49xf32>
    %104 = arith.addf %98, %103 : vector<8x49xf32>
    %c1_89 = arith.constant 1 : index
    %c0_90 = arith.constant 0 : index
    %c2_91 = arith.constant 2 : index
    %105 = vector.load %arg11[%c1_89, %c0_90, %c2_91] : memref<2x8x65xf32, #tpu.memory_space<vmem>>, vector<1x8x49xf32>
    %106 = vector.shape_cast %105 : vector<1x8x49xf32> to vector<8x49xf32>
    %107 = vector.broadcast %1 : vector<1x49xf32> to vector<8x49xf32>
    %108 = arith.mulf %106, %107 : vector<8x49xf32>
    %c2_92 = arith.constant 2 : index
    %c0_93 = arith.constant 0 : index
    %c0_94 = arith.constant 0 : index
    %109 = vector.load %arg1[%c2_92, %c0_93, %c0_94] : memref<9x8x8xf32, #tpu.memory_space<vmem>>, vector<1x8x8xf32>
    %110 = vector.shape_cast %109 : vector<1x8x8xf32> to vector<8x8xf32>
    %cst_95 = arith.constant dense<0.000000e+00> : vector<8x49xf32>
    %111 = tpu.matmul %110, %108, %cst_95 {dimension_numbers = #tpu.dot_dimension_numbers<[1], [0], [0], [1], [0, 0, 1, 1], [], []>} : vector<8x8xf32>, vector<8x49xf32>, vector<8x49xf32> -> vector<8x49xf32>
    %112 = arith.addf %104, %111 : vector<8x49xf32>
    %c1_96 = arith.constant 1 : index
    %c0_97 = arith.constant 0 : index
    %c7_98 = arith.constant 7 : index
    %113 = vector.load %arg11[%c1_96, %c0_97, %c7_98] : memref<2x8x65xf32, #tpu.memory_space<vmem>>, vector<1x8x49xf32>
    %114 = vector.shape_cast %113 : vector<1x8x49xf32> to vector<8x49xf32>
    %115 = vector.broadcast %0 : vector<1x49xf32> to vector<8x49xf32>
    %116 = arith.mulf %114, %115 : vector<8x49xf32>
    %c3_99 = arith.constant 3 : index
    %c0_100 = arith.constant 0 : index
    %c0_101 = arith.constant 0 : index
    %117 = vector.load %arg1[%c3_99, %c0_100, %c0_101] : memref<9x8x8xf32, #tpu.memory_space<vmem>>, vector<1x8x8xf32>
    %118 = vector.shape_cast %117 : vector<1x8x8xf32> to vector<8x8xf32>
    %cst_102 = arith.constant dense<0.000000e+00> : vector<8x49xf32>
    %119 = tpu.matmul %118, %116, %cst_102 {dimension_numbers = #tpu.dot_dimension_numbers<[1], [0], [0], [1], [0, 0, 1, 1], [], []>} : vector<8x8xf32>, vector<8x49xf32>, vector<8x49xf32> -> vector<8x49xf32>
    %120 = arith.addf %112, %119 : vector<8x49xf32>
    %c1_103 = arith.constant 1 : index
    %c0_104 = arith.constant 0 : index
    %c8_105 = arith.constant 8 : index
    %121 = vector.load %arg11[%c1_103, %c0_104, %c8_105] : memref<2x8x65xf32, #tpu.memory_space<vmem>>, vector<1x8x49xf32>
    %122 = vector.shape_cast %121 : vector<1x8x49xf32> to vector<8x49xf32>
    %c4_106 = arith.constant 4 : index
    %c0_107 = arith.constant 0 : index
    %c0_108 = arith.constant 0 : index
    %123 = vector.load %arg1[%c4_106, %c0_107, %c0_108] : memref<9x8x8xf32, #tpu.memory_space<vmem>>, vector<1x8x8xf32>
    %124 = vector.shape_cast %123 : vector<1x8x8xf32> to vector<8x8xf32>
    %cst_109 = arith.constant dense<0.000000e+00> : vector<8x49xf32>
    %125 = tpu.matmul %124, %122, %cst_109 {dimension_numbers = #tpu.dot_dimension_numbers<[1], [0], [0], [1], [0, 0, 1, 1], [], []>} : vector<8x8xf32>, vector<8x49xf32>, vector<8x49xf32> -> vector<8x49xf32>
    %126 = arith.addf %120, %125 : vector<8x49xf32>
    %c1_110 = arith.constant 1 : index
    %c0_111 = arith.constant 0 : index
    %c9_112 = arith.constant 9 : index
    %127 = vector.load %arg11[%c1_110, %c0_111, %c9_112] : memref<2x8x65xf32, #tpu.memory_space<vmem>>, vector<1x8x49xf32>
    %128 = vector.shape_cast %127 : vector<1x8x49xf32> to vector<8x49xf32>
    %129 = vector.broadcast %1 : vector<1x49xf32> to vector<8x49xf32>
    %130 = arith.mulf %128, %129 : vector<8x49xf32>
    %c5_113 = arith.constant 5 : index
    %c0_114 = arith.constant 0 : index
    %c0_115 = arith.constant 0 : index
    %131 = vector.load %arg1[%c5_113, %c0_114, %c0_115] : memref<9x8x8xf32, #tpu.memory_space<vmem>>, vector<1x8x8xf32>
    %132 = vector.shape_cast %131 : vector<1x8x8xf32> to vector<8x8xf32>
    %cst_116 = arith.constant dense<0.000000e+00> : vector<8x49xf32>
    %133 = tpu.matmul %132, %130, %cst_116 {dimension_numbers = #tpu.dot_dimension_numbers<[1], [0], [0], [1], [0, 0, 1, 1], [], []>} : vector<8x8xf32>, vector<8x49xf32>, vector<8x49xf32> -> vector<8x49xf32>
    %134 = arith.addf %126, %133 : vector<8x49xf32>
    %c1_117 = arith.constant 1 : index
    %c0_118 = arith.constant 0 : index
    %c14_119 = arith.constant 14 : index
    %135 = vector.load %arg11[%c1_117, %c0_118, %c14_119] : memref<2x8x65xf32, #tpu.memory_space<vmem>>, vector<1x8x49xf32>
    %136 = vector.shape_cast %135 : vector<1x8x49xf32> to vector<8x49xf32>
    %137 = vector.broadcast %0 : vector<1x49xf32> to vector<8x49xf32>
    %138 = arith.mulf %136, %137 : vector<8x49xf32>
    %c6_120 = arith.constant 6 : index
    %c0_121 = arith.constant 0 : index
    %c0_122 = arith.constant 0 : index
    %139 = vector.load %arg1[%c6_120, %c0_121, %c0_122] : memref<9x8x8xf32, #tpu.memory_space<vmem>>, vector<1x8x8xf32>
    %140 = vector.shape_cast %139 : vector<1x8x8xf32> to vector<8x8xf32>
    %cst_123 = arith.constant dense<0.000000e+00> : vector<8x49xf32>
    %141 = tpu.matmul %140, %138, %cst_123 {dimension_numbers = #tpu.dot_dimension_numbers<[1], [0], [0], [1], [0, 0, 1, 1], [], []>} : vector<8x8xf32>, vector<8x49xf32>, vector<8x49xf32> -> vector<8x49xf32>
    %142 = arith.addf %134, %141 : vector<8x49xf32>
    %c1_124 = arith.constant 1 : index
    %c0_125 = arith.constant 0 : index
    %c15_126 = arith.constant 15 : index
    %143 = vector.load %arg11[%c1_124, %c0_125, %c15_126] : memref<2x8x65xf32, #tpu.memory_space<vmem>>, vector<1x8x49xf32>
    %144 = vector.shape_cast %143 : vector<1x8x49xf32> to vector<8x49xf32>
    %c7_127 = arith.constant 7 : index
    %c0_128 = arith.constant 0 : index
    %c0_129 = arith.constant 0 : index
    %145 = vector.load %arg1[%c7_127, %c0_128, %c0_129] : memref<9x8x8xf32, #tpu.memory_space<vmem>>, vector<1x8x8xf32>
    %146 = vector.shape_cast %145 : vector<1x8x8xf32> to vector<8x8xf32>
    %cst_130 = arith.constant dense<0.000000e+00> : vector<8x49xf32>
    %147 = tpu.matmul %146, %144, %cst_130 {dimension_numbers = #tpu.dot_dimension_numbers<[1], [0], [0], [1], [0, 0, 1, 1], [], []>} : vector<8x8xf32>, vector<8x49xf32>, vector<8x49xf32> -> vector<8x49xf32>
    %148 = arith.addf %142, %147 : vector<8x49xf32>
    %c1_131 = arith.constant 1 : index
    %c0_132 = arith.constant 0 : index
    %c16_133 = arith.constant 16 : index
    %149 = vector.load %arg11[%c1_131, %c0_132, %c16_133] : memref<2x8x65xf32, #tpu.memory_space<vmem>>, vector<1x8x49xf32>
    %150 = vector.shape_cast %149 : vector<1x8x49xf32> to vector<8x49xf32>
    %151 = vector.broadcast %1 : vector<1x49xf32> to vector<8x49xf32>
    %152 = arith.mulf %150, %151 : vector<8x49xf32>
    %c8_134 = arith.constant 8 : index
    %c0_135 = arith.constant 0 : index
    %c0_136 = arith.constant 0 : index
    %153 = vector.load %arg1[%c8_134, %c0_135, %c0_136] : memref<9x8x8xf32, #tpu.memory_space<vmem>>, vector<1x8x8xf32>
    %154 = vector.shape_cast %153 : vector<1x8x8xf32> to vector<8x8xf32>
    %cst_137 = arith.constant dense<0.000000e+00> : vector<8x49xf32>
    %155 = tpu.matmul %154, %152, %cst_137 {dimension_numbers = #tpu.dot_dimension_numbers<[1], [0], [0], [1], [0, 0, 1, 1], [], []>} : vector<8x8xf32>, vector<8x49xf32>, vector<8x49xf32> -> vector<8x49xf32>
    %156 = arith.addf %148, %155 : vector<8x49xf32>
    %cst_138 = arith.constant dense<0.000000e+00> : vector<8xf32>
    %157 = vector.multi_reduction <add>, %156, %cst_138 [1] : vector<8x49xf32> to vector<8xf32>
    %158 = vector.shape_cast %157 : vector<8xf32> to vector<8x1xf32>
    %159 = arith.addf %80, %158 : vector<8x1xf32>
    %160 = arith.mulf %156, %156 : vector<8x49xf32>
    %cst_139 = arith.constant dense<0.000000e+00> : vector<8xf32>
    %161 = vector.multi_reduction <add>, %160, %cst_139 [1] : vector<8x49xf32> to vector<8xf32>
    %162 = vector.shape_cast %161 : vector<8xf32> to vector<8x1xf32>
    %163 = arith.addf %84, %162 : vector<8x1xf32>
    %c0_140 = arith.constant 0 : index
    %c0_141 = arith.constant 0 : index
    %164 = vector.load %arg3[%c0_140, %c0_141] : memref<8x1xf32, #tpu.memory_space<vmem>>, vector<8x1xf32>
    %c0_142 = arith.constant 0 : index
    %c0_143 = arith.constant 0 : index
    %165 = vector.load %arg4[%c0_142, %c0_143] : memref<8x1xf32, #tpu.memory_space<vmem>>, vector<8x1xf32>
    %cst_144 = arith.constant 0.0102040814 : f32
    %166 = vector.broadcast %cst_144 : f32 to vector<8x1xf32>
    %167 = arith.mulf %159, %166 : vector<8x1xf32>
    %cst_145 = arith.constant 0.0102040814 : f32
    %168 = vector.broadcast %cst_145 : f32 to vector<8x1xf32>
    %169 = arith.mulf %163, %168 : vector<8x1xf32>
    %170 = arith.mulf %167, %167 : vector<8x1xf32>
    %171 = arith.subf %169, %170 : vector<8x1xf32>
    %cst_146 = arith.constant 9.99999974E-6 : f32
    %172 = vector.broadcast %cst_146 : f32 to vector<8x1xf32>
    %173 = arith.addf %171, %172 : vector<8x1xf32>
    %174 = math.rsqrt %173 : vector<8x1xf32>
    %175 = arith.mulf %164, %174 : vector<8x1xf32>
    %176 = arith.mulf %167, %175 : vector<8x1xf32>
    %177 = arith.subf %165, %176 : vector<8x1xf32>
    %178 = vector.broadcast %175 : vector<8x1xf32> to vector<8x49xf32>
    %179 = arith.mulf %77, %178 : vector<8x49xf32>
    %180 = vector.broadcast %177 : vector<8x1xf32> to vector<8x49xf32>
    %181 = arith.addf %179, %180 : vector<8x49xf32>
    %cst_147 = arith.constant 0.000000e+00 : f32
    %182 = vector.broadcast %cst_147 : f32 to vector<8x49xf32>
    %183 = arith.maximumf %181, %182 : vector<8x49xf32>
    %c0_148 = arith.constant 0 : index
    %c0_149 = arith.constant 0 : index
    %c8_150 = arith.constant 8 : index
    %184 = vector.load %arg11[%c0_148, %c0_149, %c8_150] : memref<2x8x65xf32, #tpu.memory_space<vmem>>, vector<1x8x49xf32>
    %185 = vector.shape_cast %184 : vector<1x8x49xf32> to vector<8x49xf32>
    %186 = vector.shape_cast %183 : vector<8x49xf32> to vector<1x8x49xf32>
    tpu.vector_store %arg11[%c0_148, %c0_149, %c8_150], %186 {strides = array<i32>} : memref<2x8x65xf32, #tpu.memory_space<vmem>>, vector<1x8x49xf32>,
    %187 = vector.broadcast %175 : vector<8x1xf32> to vector<8x49xf32>
    %188 = arith.mulf %156, %187 : vector<8x49xf32>
    %189 = vector.broadcast %177 : vector<8x1xf32> to vector<8x49xf32>
    %190 = arith.addf %188, %189 : vector<8x49xf32>
    %cst_151 = arith.constant 0.000000e+00 : f32
    %191 = vector.broadcast %cst_151 : f32 to vector<8x49xf32>
    %192 = arith.maximumf %190, %191 : vector<8x49xf32>
    %c1_152 = arith.constant 1 : index
    %c0_153 = arith.constant 0 : index
    %c8_154 = arith.constant 8 : index
    %193 = vector.load %arg11[%c1_152, %c0_153, %c8_154] : memref<2x8x65xf32, #tpu.memory_space<vmem>>, vector<1x8x49xf32>
    %194 = vector.shape_cast %193 : vector<1x8x49xf32> to vector<8x49xf32>
    %195 = vector.shape_cast %192 : vector<8x49xf32> to vector<1x8x49xf32>
    tpu.vector_store %arg11[%c1_152, %c0_153, %c8_154], %195 {strides = array<i32>} : memref<2x8x65xf32, #tpu.memory_space<vmem>>, vector<1x8x49xf32>,
    %cst_155 = arith.constant 0.000000e+00 : f32
    %196 = vector.broadcast %cst_155 : f32 to vector<8x1xf32>
    %cst_156 = arith.constant 0.000000e+00 : f32
    %197 = vector.broadcast %cst_156 : f32 to vector<8x1xf32>
    %cst_157 = arith.constant 0.000000e+00 : f32
    %198 = vector.broadcast %cst_157 : f32 to vector<8x49xf32>
    %c0_158 = arith.constant 0 : index
    %c0_159 = arith.constant 0 : index
    %c0_160 = arith.constant 0 : index
    %199 = vector.load %arg11[%c0_158, %c0_159, %c0_160] : memref<2x8x65xf32, #tpu.memory_space<vmem>>, vector<1x8x49xf32>
    %200 = vector.shape_cast %199 : vector<1x8x49xf32> to vector<8x49xf32>
    %201 = vector.broadcast %0 : vector<1x49xf32> to vector<8x49xf32>
    %202 = arith.mulf %200, %201 : vector<8x49xf32>
    %c0_161 = arith.constant 0 : index
    %c0_162 = arith.constant 0 : index
    %c0_163 = arith.constant 0 : index
    %203 = vector.load %arg2[%c0_161, %c0_162, %c0_163] : memref<9x8x8xf32, #tpu.memory_space<vmem>>, vector<1x8x8xf32>
    %204 = vector.shape_cast %203 : vector<1x8x8xf32> to vector<8x8xf32>
    %cst_164 = arith.constant dense<0.000000e+00> : vector<8x49xf32>
    %205 = tpu.matmul %204, %202, %cst_164 {dimension_numbers = #tpu.dot_dimension_numbers<[1], [0], [0], [1], [0, 0, 1, 1], [], []>} : vector<8x8xf32>, vector<8x49xf32>, vector<8x49xf32> -> vector<8x49xf32>
    %206 = arith.addf %198, %205 : vector<8x49xf32>
    %c0_165 = arith.constant 0 : index
    %c0_166 = arith.constant 0 : index
    %c1_167 = arith.constant 1 : index
    %207 = vector.load %arg11[%c0_165, %c0_166, %c1_167] : memref<2x8x65xf32, #tpu.memory_space<vmem>>, vector<1x8x49xf32>
    %208 = vector.shape_cast %207 : vector<1x8x49xf32> to vector<8x49xf32>
    %c1_168 = arith.constant 1 : index
    %c0_169 = arith.constant 0 : index
    %c0_170 = arith.constant 0 : index
    %209 = vector.load %arg2[%c1_168, %c0_169, %c0_170] : memref<9x8x8xf32, #tpu.memory_space<vmem>>, vector<1x8x8xf32>
    %210 = vector.shape_cast %209 : vector<1x8x8xf32> to vector<8x8xf32>
    %cst_171 = arith.constant dense<0.000000e+00> : vector<8x49xf32>
    %211 = tpu.matmul %210, %208, %cst_171 {dimension_numbers = #tpu.dot_dimension_numbers<[1], [0], [0], [1], [0, 0, 1, 1], [], []>} : vector<8x8xf32>, vector<8x49xf32>, vector<8x49xf32> -> vector<8x49xf32>
    %212 = arith.addf %206, %211 : vector<8x49xf32>
    %c0_172 = arith.constant 0 : index
    %c0_173 = arith.constant 0 : index
    %c2_174 = arith.constant 2 : index
    %213 = vector.load %arg11[%c0_172, %c0_173, %c2_174] : memref<2x8x65xf32, #tpu.memory_space<vmem>>, vector<1x8x49xf32>
    %214 = vector.shape_cast %213 : vector<1x8x49xf32> to vector<8x49xf32>
    %215 = vector.broadcast %1 : vector<1x49xf32> to vector<8x49xf32>
    %216 = arith.mulf %214, %215 : vector<8x49xf32>
    %c2_175 = arith.constant 2 : index
    %c0_176 = arith.constant 0 : index
    %c0_177 = arith.constant 0 : index
    %217 = vector.load %arg2[%c2_175, %c0_176, %c0_177] : memref<9x8x8xf32, #tpu.memory_space<vmem>>, vector<1x8x8xf32>
    %218 = vector.shape_cast %217 : vector<1x8x8xf32> to vector<8x8xf32>
    %cst_178 = arith.constant dense<0.000000e+00> : vector<8x49xf32>
    %219 = tpu.matmul %218, %216, %cst_178 {dimension_numbers = #tpu.dot_dimension_numbers<[1], [0], [0], [1], [0, 0, 1, 1], [], []>} : vector<8x8xf32>, vector<8x49xf32>, vector<8x49xf32> -> vector<8x49xf32>
    %220 = arith.addf %212, %219 : vector<8x49xf32>
    %c0_179 = arith.constant 0 : index
    %c0_180 = arith.constant 0 : index
    %c7_181 = arith.constant 7 : index
    %221 = vector.load %arg11[%c0_179, %c0_180, %c7_181] : memref<2x8x65xf32, #tpu.memory_space<vmem>>, vector<1x8x49xf32>
    %222 = vector.shape_cast %221 : vector<1x8x49xf32> to vector<8x49xf32>
    %223 = vector.broadcast %0 : vector<1x49xf32> to vector<8x49xf32>
    %224 = arith.mulf %222, %223 : vector<8x49xf32>
    %c3_182 = arith.constant 3 : index
    %c0_183 = arith.constant 0 : index
    %c0_184 = arith.constant 0 : index
    %225 = vector.load %arg2[%c3_182, %c0_183, %c0_184] : memref<9x8x8xf32, #tpu.memory_space<vmem>>, vector<1x8x8xf32>
    %226 = vector.shape_cast %225 : vector<1x8x8xf32> to vector<8x8xf32>
    %cst_185 = arith.constant dense<0.000000e+00> : vector<8x49xf32>
    %227 = tpu.matmul %226, %224, %cst_185 {dimension_numbers = #tpu.dot_dimension_numbers<[1], [0], [0], [1], [0, 0, 1, 1], [], []>} : vector<8x8xf32>, vector<8x49xf32>, vector<8x49xf32> -> vector<8x49xf32>
    %228 = arith.addf %220, %227 : vector<8x49xf32>
    %c0_186 = arith.constant 0 : index
    %c0_187 = arith.constant 0 : index
    %c8_188 = arith.constant 8 : index
    %229 = vector.load %arg11[%c0_186, %c0_187, %c8_188] : memref<2x8x65xf32, #tpu.memory_space<vmem>>, vector<1x8x49xf32>
    %230 = vector.shape_cast %229 : vector<1x8x49xf32> to vector<8x49xf32>
    %c4_189 = arith.constant 4 : index
    %c0_190 = arith.constant 0 : index
    %c0_191 = arith.constant 0 : index
    %231 = vector.load %arg2[%c4_189, %c0_190, %c0_191] : memref<9x8x8xf32, #tpu.memory_space<vmem>>, vector<1x8x8xf32>
    %232 = vector.shape_cast %231 : vector<1x8x8xf32> to vector<8x8xf32>
    %cst_192 = arith.constant dense<0.000000e+00> : vector<8x49xf32>
    %233 = tpu.matmul %232, %230, %cst_192 {dimension_numbers = #tpu.dot_dimension_numbers<[1], [0], [0], [1], [0, 0, 1, 1], [], []>} : vector<8x8xf32>, vector<8x49xf32>, vector<8x49xf32> -> vector<8x49xf32>
    %234 = arith.addf %228, %233 : vector<8x49xf32>
    %c0_193 = arith.constant 0 : index
    %c0_194 = arith.constant 0 : index
    %c9_195 = arith.constant 9 : index
    %235 = vector.load %arg11[%c0_193, %c0_194, %c9_195] : memref<2x8x65xf32, #tpu.memory_space<vmem>>, vector<1x8x49xf32>
    %236 = vector.shape_cast %235 : vector<1x8x49xf32> to vector<8x49xf32>
    %237 = vector.broadcast %1 : vector<1x49xf32> to vector<8x49xf32>
    %238 = arith.mulf %236, %237 : vector<8x49xf32>
    %c5_196 = arith.constant 5 : index
    %c0_197 = arith.constant 0 : index
    %c0_198 = arith.constant 0 : index
    %239 = vector.load %arg2[%c5_196, %c0_197, %c0_198] : memref<9x8x8xf32, #tpu.memory_space<vmem>>, vector<1x8x8xf32>
    %240 = vector.shape_cast %239 : vector<1x8x8xf32> to vector<8x8xf32>
    %cst_199 = arith.constant dense<0.000000e+00> : vector<8x49xf32>
    %241 = tpu.matmul %240, %238, %cst_199 {dimension_numbers = #tpu.dot_dimension_numbers<[1], [0], [0], [1], [0, 0, 1, 1], [], []>} : vector<8x8xf32>, vector<8x49xf32>, vector<8x49xf32> -> vector<8x49xf32>
    %242 = arith.addf %234, %241 : vector<8x49xf32>
    %c0_200 = arith.constant 0 : index
    %c0_201 = arith.constant 0 : index
    %c14_202 = arith.constant 14 : index
    %243 = vector.load %arg11[%c0_200, %c0_201, %c14_202] : memref<2x8x65xf32, #tpu.memory_space<vmem>>, vector<1x8x49xf32>
    %244 = vector.shape_cast %243 : vector<1x8x49xf32> to vector<8x49xf32>
    %245 = vector.broadcast %0 : vector<1x49xf32> to vector<8x49xf32>
    %246 = arith.mulf %244, %245 : vector<8x49xf32>
    %c6_203 = arith.constant 6 : index
    %c0_204 = arith.constant 0 : index
    %c0_205 = arith.constant 0 : index
    %247 = vector.load %arg2[%c6_203, %c0_204, %c0_205] : memref<9x8x8xf32, #tpu.memory_space<vmem>>, vector<1x8x8xf32>
    %248 = vector.shape_cast %247 : vector<1x8x8xf32> to vector<8x8xf32>
    %cst_206 = arith.constant dense<0.000000e+00> : vector<8x49xf32>
    %249 = tpu.matmul %248, %246, %cst_206 {dimension_numbers = #tpu.dot_dimension_numbers<[1], [0], [0], [1], [0, 0, 1, 1], [], []>} : vector<8x8xf32>, vector<8x49xf32>, vector<8x49xf32> -> vector<8x49xf32>
    %250 = arith.addf %242, %249 : vector<8x49xf32>
    %c0_207 = arith.constant 0 : index
    %c0_208 = arith.constant 0 : index
    %c15_209 = arith.constant 15 : index
    %251 = vector.load %arg11[%c0_207, %c0_208, %c15_209] : memref<2x8x65xf32, #tpu.memory_space<vmem>>, vector<1x8x49xf32>
    %252 = vector.shape_cast %251 : vector<1x8x49xf32> to vector<8x49xf32>
    %c7_210 = arith.constant 7 : index
    %c0_211 = arith.constant 0 : index
    %c0_212 = arith.constant 0 : index
    %253 = vector.load %arg2[%c7_210, %c0_211, %c0_212] : memref<9x8x8xf32, #tpu.memory_space<vmem>>, vector<1x8x8xf32>
    %254 = vector.shape_cast %253 : vector<1x8x8xf32> to vector<8x8xf32>
    %cst_213 = arith.constant dense<0.000000e+00> : vector<8x49xf32>
    %255 = tpu.matmul %254, %252, %cst_213 {dimension_numbers = #tpu.dot_dimension_numbers<[1], [0], [0], [1], [0, 0, 1, 1], [], []>} : vector<8x8xf32>, vector<8x49xf32>, vector<8x49xf32> -> vector<8x49xf32>
    %256 = arith.addf %250, %255 : vector<8x49xf32>
    %c0_214 = arith.constant 0 : index
    %c0_215 = arith.constant 0 : index
    %c16_216 = arith.constant 16 : index
    %257 = vector.load %arg11[%c0_214, %c0_215, %c16_216] : memref<2x8x65xf32, #tpu.memory_space<vmem>>, vector<1x8x49xf32>
    %258 = vector.shape_cast %257 : vector<1x8x49xf32> to vector<8x49xf32>
    %259 = vector.broadcast %1 : vector<1x49xf32> to vector<8x49xf32>
    %260 = arith.mulf %258, %259 : vector<8x49xf32>
    %c8_217 = arith.constant 8 : index
    %c0_218 = arith.constant 0 : index
    %c0_219 = arith.constant 0 : index
    %261 = vector.load %arg2[%c8_217, %c0_218, %c0_219] : memref<9x8x8xf32, #tpu.memory_space<vmem>>, vector<1x8x8xf32>
    %262 = vector.shape_cast %261 : vector<1x8x8xf32> to vector<8x8xf32>
    %cst_220 = arith.constant dense<0.000000e+00> : vector<8x49xf32>
    %263 = tpu.matmul %262, %260, %cst_220 {dimension_numbers = #tpu.dot_dimension_numbers<[1], [0], [0], [1], [0, 0, 1, 1], [], []>} : vector<8x8xf32>, vector<8x49xf32>, vector<8x49xf32> -> vector<8x49xf32>
    %264 = arith.addf %256, %263 : vector<8x49xf32>
    %cst_221 = arith.constant dense<0.000000e+00> : vector<8xf32>
    %265 = vector.multi_reduction <add>, %264, %cst_221 [1] : vector<8x49xf32> to vector<8xf32>
    %266 = vector.shape_cast %265 : vector<8xf32> to vector<8x1xf32>
    %267 = arith.addf %196, %266 : vector<8x1xf32>
    %268 = arith.mulf %264, %264 : vector<8x49xf32>
    %cst_222 = arith.constant dense<0.000000e+00> : vector<8xf32>
    %269 = vector.multi_reduction <add>, %268, %cst_222 [1] : vector<8x49xf32> to vector<8xf32>
    %270 = vector.shape_cast %269 : vector<8xf32> to vector<8x1xf32>
    %271 = arith.addf %197, %270 : vector<8x1xf32>
    %cst_223 = arith.constant 0.000000e+00 : f32
    %272 = vector.broadcast %cst_223 : f32 to vector<8x49xf32>
    %c1_224 = arith.constant 1 : index
    %c0_225 = arith.constant 0 : index
    %c0_226 = arith.constant 0 : index
    %273 = vector.load %arg11[%c1_224, %c0_225, %c0_226] : memref<2x8x65xf32, #tpu.memory_space<vmem>>, vector<1x8x49xf32>
    %274 = vector.shape_cast %273 : vector<1x8x49xf32> to vector<8x49xf32>
    %275 = vector.broadcast %0 : vector<1x49xf32> to vector<8x49xf32>
    %276 = arith.mulf %274, %275 : vector<8x49xf32>
    %c0_227 = arith.constant 0 : index
    %c0_228 = arith.constant 0 : index
    %c0_229 = arith.constant 0 : index
    %277 = vector.load %arg2[%c0_227, %c0_228, %c0_229] : memref<9x8x8xf32, #tpu.memory_space<vmem>>, vector<1x8x8xf32>
    %278 = vector.shape_cast %277 : vector<1x8x8xf32> to vector<8x8xf32>
    %cst_230 = arith.constant dense<0.000000e+00> : vector<8x49xf32>
    %279 = tpu.matmul %278, %276, %cst_230 {dimension_numbers = #tpu.dot_dimension_numbers<[1], [0], [0], [1], [0, 0, 1, 1], [], []>} : vector<8x8xf32>, vector<8x49xf32>, vector<8x49xf32> -> vector<8x49xf32>
    %280 = arith.addf %272, %279 : vector<8x49xf32>
    %c1_231 = arith.constant 1 : index
    %c0_232 = arith.constant 0 : index
    %c1_233 = arith.constant 1 : index
    %281 = vector.load %arg11[%c1_231, %c0_232, %c1_233] : memref<2x8x65xf32, #tpu.memory_space<vmem>>, vector<1x8x49xf32>
    %282 = vector.shape_cast %281 : vector<1x8x49xf32> to vector<8x49xf32>
    %c1_234 = arith.constant 1 : index
    %c0_235 = arith.constant 0 : index
    %c0_236 = arith.constant 0 : index
    %283 = vector.load %arg2[%c1_234, %c0_235, %c0_236] : memref<9x8x8xf32, #tpu.memory_space<vmem>>, vector<1x8x8xf32>
    %284 = vector.shape_cast %283 : vector<1x8x8xf32> to vector<8x8xf32>
    %cst_237 = arith.constant dense<0.000000e+00> : vector<8x49xf32>
    %285 = tpu.matmul %284, %282, %cst_237 {dimension_numbers = #tpu.dot_dimension_numbers<[1], [0], [0], [1], [0, 0, 1, 1], [], []>} : vector<8x8xf32>, vector<8x49xf32>, vector<8x49xf32> -> vector<8x49xf32>
    %286 = arith.addf %280, %285 : vector<8x49xf32>
    %c1_238 = arith.constant 1 : index
    %c0_239 = arith.constant 0 : index
    %c2_240 = arith.constant 2 : index
    %287 = vector.load %arg11[%c1_238, %c0_239, %c2_240] : memref<2x8x65xf32, #tpu.memory_space<vmem>>, vector<1x8x49xf32>
    %288 = vector.shape_cast %287 : vector<1x8x49xf32> to vector<8x49xf32>
    %289 = vector.broadcast %1 : vector<1x49xf32> to vector<8x49xf32>
    %290 = arith.mulf %288, %289 : vector<8x49xf32>
    %c2_241 = arith.constant 2 : index
    %c0_242 = arith.constant 0 : index
    %c0_243 = arith.constant 0 : index
    %291 = vector.load %arg2[%c2_241, %c0_242, %c0_243] : memref<9x8x8xf32, #tpu.memory_space<vmem>>, vector<1x8x8xf32>
    %292 = vector.shape_cast %291 : vector<1x8x8xf32> to vector<8x8xf32>
    %cst_244 = arith.constant dense<0.000000e+00> : vector<8x49xf32>
    %293 = tpu.matmul %292, %290, %cst_244 {dimension_numbers = #tpu.dot_dimension_numbers<[1], [0], [0], [1], [0, 0, 1, 1], [], []>} : vector<8x8xf32>, vector<8x49xf32>, vector<8x49xf32> -> vector<8x49xf32>
    %294 = arith.addf %286, %293 : vector<8x49xf32>
    %c1_245 = arith.constant 1 : index
    %c0_246 = arith.constant 0 : index
    %c7_247 = arith.constant 7 : index
    %295 = vector.load %arg11[%c1_245, %c0_246, %c7_247] : memref<2x8x65xf32, #tpu.memory_space<vmem>>, vector<1x8x49xf32>
    %296 = vector.shape_cast %295 : vector<1x8x49xf32> to vector<8x49xf32>
    %297 = vector.broadcast %0 : vector<1x49xf32> to vector<8x49xf32>
    %298 = arith.mulf %296, %297 : vector<8x49xf32>
    %c3_248 = arith.constant 3 : index
    %c0_249 = arith.constant 0 : index
    %c0_250 = arith.constant 0 : index
    %299 = vector.load %arg2[%c3_248, %c0_249, %c0_250] : memref<9x8x8xf32, #tpu.memory_space<vmem>>, vector<1x8x8xf32>
    %300 = vector.shape_cast %299 : vector<1x8x8xf32> to vector<8x8xf32>
    %cst_251 = arith.constant dense<0.000000e+00> : vector<8x49xf32>
    %301 = tpu.matmul %300, %298, %cst_251 {dimension_numbers = #tpu.dot_dimension_numbers<[1], [0], [0], [1], [0, 0, 1, 1], [], []>} : vector<8x8xf32>, vector<8x49xf32>, vector<8x49xf32> -> vector<8x49xf32>
    %302 = arith.addf %294, %301 : vector<8x49xf32>
    %c1_252 = arith.constant 1 : index
    %c0_253 = arith.constant 0 : index
    %c8_254 = arith.constant 8 : index
    %303 = vector.load %arg11[%c1_252, %c0_253, %c8_254] : memref<2x8x65xf32, #tpu.memory_space<vmem>>, vector<1x8x49xf32>
    %304 = vector.shape_cast %303 : vector<1x8x49xf32> to vector<8x49xf32>
    %c4_255 = arith.constant 4 : index
    %c0_256 = arith.constant 0 : index
    %c0_257 = arith.constant 0 : index
    %305 = vector.load %arg2[%c4_255, %c0_256, %c0_257] : memref<9x8x8xf32, #tpu.memory_space<vmem>>, vector<1x8x8xf32>
    %306 = vector.shape_cast %305 : vector<1x8x8xf32> to vector<8x8xf32>
    %cst_258 = arith.constant dense<0.000000e+00> : vector<8x49xf32>
    %307 = tpu.matmul %306, %304, %cst_258 {dimension_numbers = #tpu.dot_dimension_numbers<[1], [0], [0], [1], [0, 0, 1, 1], [], []>} : vector<8x8xf32>, vector<8x49xf32>, vector<8x49xf32> -> vector<8x49xf32>
    %308 = arith.addf %302, %307 : vector<8x49xf32>
    %c1_259 = arith.constant 1 : index
    %c0_260 = arith.constant 0 : index
    %c9_261 = arith.constant 9 : index
    %309 = vector.load %arg11[%c1_259, %c0_260, %c9_261] : memref<2x8x65xf32, #tpu.memory_space<vmem>>, vector<1x8x49xf32>
    %310 = vector.shape_cast %309 : vector<1x8x49xf32> to vector<8x49xf32>
    %311 = vector.broadcast %1 : vector<1x49xf32> to vector<8x49xf32>
    %312 = arith.mulf %310, %311 : vector<8x49xf32>
    %c5_262 = arith.constant 5 : index
    %c0_263 = arith.constant 0 : index
    %c0_264 = arith.constant 0 : index
    %313 = vector.load %arg2[%c5_262, %c0_263, %c0_264] : memref<9x8x8xf32, #tpu.memory_space<vmem>>, vector<1x8x8xf32>
    %314 = vector.shape_cast %313 : vector<1x8x8xf32> to vector<8x8xf32>
    %cst_265 = arith.constant dense<0.000000e+00> : vector<8x49xf32>
    %315 = tpu.matmul %314, %312, %cst_265 {dimension_numbers = #tpu.dot_dimension_numbers<[1], [0], [0], [1], [0, 0, 1, 1], [], []>} : vector<8x8xf32>, vector<8x49xf32>, vector<8x49xf32> -> vector<8x49xf32>
    %316 = arith.addf %308, %315 : vector<8x49xf32>
    %c1_266 = arith.constant 1 : index
    %c0_267 = arith.constant 0 : index
    %c14_268 = arith.constant 14 : index
    %317 = vector.load %arg11[%c1_266, %c0_267, %c14_268] : memref<2x8x65xf32, #tpu.memory_space<vmem>>, vector<1x8x49xf32>
    %318 = vector.shape_cast %317 : vector<1x8x49xf32> to vector<8x49xf32>
    %319 = vector.broadcast %0 : vector<1x49xf32> to vector<8x49xf32>
    %320 = arith.mulf %318, %319 : vector<8x49xf32>
    %c6_269 = arith.constant 6 : index
    %c0_270 = arith.constant 0 : index
    %c0_271 = arith.constant 0 : index
    %321 = vector.load %arg2[%c6_269, %c0_270, %c0_271] : memref<9x8x8xf32, #tpu.memory_space<vmem>>, vector<1x8x8xf32>
    %322 = vector.shape_cast %321 : vector<1x8x8xf32> to vector<8x8xf32>
    %cst_272 = arith.constant dense<0.000000e+00> : vector<8x49xf32>
    %323 = tpu.matmul %322, %320, %cst_272 {dimension_numbers = #tpu.dot_dimension_numbers<[1], [0], [0], [1], [0, 0, 1, 1], [], []>} : vector<8x8xf32>, vector<8x49xf32>, vector<8x49xf32> -> vector<8x49xf32>
    %324 = arith.addf %316, %323 : vector<8x49xf32>
    %c1_273 = arith.constant 1 : index
    %c0_274 = arith.constant 0 : index
    %c15_275 = arith.constant 15 : index
    %325 = vector.load %arg11[%c1_273, %c0_274, %c15_275] : memref<2x8x65xf32, #tpu.memory_space<vmem>>, vector<1x8x49xf32>
    %326 = vector.shape_cast %325 : vector<1x8x49xf32> to vector<8x49xf32>
    %c7_276 = arith.constant 7 : index
    %c0_277 = arith.constant 0 : index
    %c0_278 = arith.constant 0 : index
    %327 = vector.load %arg2[%c7_276, %c0_277, %c0_278] : memref<9x8x8xf32, #tpu.memory_space<vmem>>, vector<1x8x8xf32>
    %328 = vector.shape_cast %327 : vector<1x8x8xf32> to vector<8x8xf32>
    %cst_279 = arith.constant dense<0.000000e+00> : vector<8x49xf32>
    %329 = tpu.matmul %328, %326, %cst_279 {dimension_numbers = #tpu.dot_dimension_numbers<[1], [0], [0], [1], [0, 0, 1, 1], [], []>} : vector<8x8xf32>, vector<8x49xf32>, vector<8x49xf32> -> vector<8x49xf32>
    %330 = arith.addf %324, %329 : vector<8x49xf32>
    %c1_280 = arith.constant 1 : index
    %c0_281 = arith.constant 0 : index
    %c16_282 = arith.constant 16 : index
    %331 = vector.load %arg11[%c1_280, %c0_281, %c16_282] : memref<2x8x65xf32, #tpu.memory_space<vmem>>, vector<1x8x49xf32>
    %332 = vector.shape_cast %331 : vector<1x8x49xf32> to vector<8x49xf32>
    %333 = vector.broadcast %1 : vector<1x49xf32> to vector<8x49xf32>
    %334 = arith.mulf %332, %333 : vector<8x49xf32>
    %c8_283 = arith.constant 8 : index
    %c0_284 = arith.constant 0 : index
    %c0_285 = arith.constant 0 : index
    %335 = vector.load %arg2[%c8_283, %c0_284, %c0_285] : memref<9x8x8xf32, #tpu.memory_space<vmem>>, vector<1x8x8xf32>
    %336 = vector.shape_cast %335 : vector<1x8x8xf32> to vector<8x8xf32>
    %cst_286 = arith.constant dense<0.000000e+00> : vector<8x49xf32>
    %337 = tpu.matmul %336, %334, %cst_286 {dimension_numbers = #tpu.dot_dimension_numbers<[1], [0], [0], [1], [0, 0, 1, 1], [], []>} : vector<8x8xf32>, vector<8x49xf32>, vector<8x49xf32> -> vector<8x49xf32>
    %338 = arith.addf %330, %337 : vector<8x49xf32>
    %cst_287 = arith.constant dense<0.000000e+00> : vector<8xf32>
    %339 = vector.multi_reduction <add>, %338, %cst_287 [1] : vector<8x49xf32> to vector<8xf32>
    %340 = vector.shape_cast %339 : vector<8xf32> to vector<8x1xf32>
    %341 = arith.addf %267, %340 : vector<8x1xf32>
    %342 = arith.mulf %338, %338 : vector<8x49xf32>
    %cst_288 = arith.constant dense<0.000000e+00> : vector<8xf32>
    %343 = vector.multi_reduction <add>, %342, %cst_288 [1] : vector<8x49xf32> to vector<8xf32>
    %344 = vector.shape_cast %343 : vector<8xf32> to vector<8x1xf32>
    %345 = arith.addf %271, %344 : vector<8x1xf32>
    %c0_289 = arith.constant 0 : index
    %c0_290 = arith.constant 0 : index
    %346 = vector.load %arg5[%c0_289, %c0_290] : memref<8x1xf32, #tpu.memory_space<vmem>>, vector<8x1xf32>
    %c0_291 = arith.constant 0 : index
    %c0_292 = arith.constant 0 : index
    %347 = vector.load %arg6[%c0_291, %c0_292] : memref<8x1xf32, #tpu.memory_space<vmem>>, vector<8x1xf32>
    %cst_293 = arith.constant 0.0102040814 : f32
    %348 = vector.broadcast %cst_293 : f32 to vector<8x1xf32>
    %349 = arith.mulf %341, %348 : vector<8x1xf32>
    %cst_294 = arith.constant 0.0102040814 : f32
    %350 = vector.broadcast %cst_294 : f32 to vector<8x1xf32>
    %351 = arith.mulf %345, %350 : vector<8x1xf32>
    %352 = arith.mulf %349, %349 : vector<8x1xf32>
    %353 = arith.subf %351, %352 : vector<8x1xf32>
    %cst_295 = arith.constant 9.99999974E-6 : f32
    %354 = vector.broadcast %cst_295 : f32 to vector<8x1xf32>
    %355 = arith.addf %353, %354 : vector<8x1xf32>
    %356 = math.rsqrt %355 : vector<8x1xf32>
    %357 = arith.mulf %346, %356 : vector<8x1xf32>
    %358 = arith.mulf %349, %357 : vector<8x1xf32>
    %359 = arith.subf %347, %358 : vector<8x1xf32>
    %c0_296 = arith.constant 0 : index
    %c0_297 = arith.constant 0 : index
    %360 = vector.load %arg7[%c0_296, %c0_297] : memref<15x8xf32, #tpu.memory_space<vmem>>, vector<15x8xf32>
    %c0_298 = arith.constant 0 : index
    %c0_299 = arith.constant 0 : index
    %361 = vector.load %arg8[%c0_298, %c0_299] : memref<15x49xf32, #tpu.memory_space<vmem>>, vector<15x49xf32>
    %362 = vector.broadcast %357 : vector<8x1xf32> to vector<8x49xf32>
    %363 = arith.mulf %264, %362 : vector<8x49xf32>
    %364 = vector.broadcast %359 : vector<8x1xf32> to vector<8x49xf32>
    %365 = arith.addf %363, %364 : vector<8x49xf32>
    %cst_300 = arith.constant dense<0.000000e+00> : vector<15x49xf32>
    %366 = tpu.matmul %360, %365, %cst_300 {dimension_numbers = #tpu.dot_dimension_numbers<[1], [0], [0], [1], [0, 0, 1, 1], [], []>} : vector<15x8xf32>, vector<8x49xf32>, vector<15x49xf32> -> vector<15x49xf32>
    %cst_301 = arith.constant dense<0.000000e+00> : vector<49xf32>
    %367 = vector.multi_reduction <add>, %366, %cst_301 [0] : vector<15x49xf32> to vector<49xf32>
    %368 = vector.shape_cast %367 : vector<49xf32> to vector<1x49xf32>
    %cst_302 = arith.constant 1.500000e+01 : f32
    %369 = vector.broadcast %cst_302 : f32 to vector<1x49xf32>
    %370 = arith.divf %368, %369 : vector<1x49xf32>
    %371 = vector.broadcast %370 : vector<1x49xf32> to vector<15x49xf32>
    %372 = arith.subf %366, %371 : vector<15x49xf32>
    %373 = arith.mulf %372, %372 : vector<15x49xf32>
    %cst_303 = arith.constant dense<0.000000e+00> : vector<49xf32>
    %374 = vector.multi_reduction <add>, %373, %cst_303 [0] : vector<15x49xf32> to vector<49xf32>
    %375 = vector.shape_cast %374 : vector<49xf32> to vector<1x49xf32>
    %cst_304 = arith.constant 1.500000e+01 : f32
    %376 = vector.broadcast %cst_304 : f32 to vector<1x49xf32>
    %377 = arith.divf %375, %376 : vector<1x49xf32>
    %378 = vector.broadcast %370 : vector<1x49xf32> to vector<15x49xf32>
    %379 = arith.subf %366, %378 : vector<15x49xf32>
    %cst_305 = arith.constant 9.99999996E-13 : f32
    %380 = vector.broadcast %cst_305 : f32 to vector<1x49xf32>
    %381 = arith.addf %377, %380 : vector<1x49xf32>
    %382 = math.rsqrt %381 : vector<1x49xf32>
    %383 = vector.broadcast %382 : vector<1x49xf32> to vector<15x49xf32>
    %384 = arith.mulf %379, %383 : vector<15x49xf32>
    %385 = arith.mulf %384, %361 : vector<15x49xf32>
    %cst_306 = arith.constant dense<0.000000e+00> : vector<49xf32>
    %386 = vector.multi_reduction <add>, %385, %cst_306 [0] : vector<15x49xf32> to vector<49xf32>
    %387 = vector.shape_cast %386 : vector<49xf32> to vector<1x49xf32>
    %388 = arith.negf %387 : vector<1x49xf32>
    %389 = math.exp %388 : vector<1x49xf32>
    %cst_307 = arith.constant 1.000000e+00 : f32
    %390 = vector.broadcast %cst_307 : f32 to vector<1x49xf32>
    %391 = arith.addf %390, %389 : vector<1x49xf32>
    %392 = arith.divf %390, %391 : vector<1x49xf32>
    %393 = vector.broadcast %392 : vector<1x49xf32> to vector<8x49xf32>
    %394 = arith.mulf %365, %393 : vector<8x49xf32>
    %c0_308 = arith.constant 0 : index
    %c0_309 = arith.constant 0 : index
    %c0_310 = arith.constant 0 : index
    %395 = vector.load %arg0[%c0_308, %c0_309, %c0_310] : memref<2x8x49xf32, #tpu.memory_space<vmem>>, vector<1x8x49xf32>
    %396 = vector.shape_cast %395 : vector<1x8x49xf32> to vector<8x49xf32>
    %397 = arith.addf %394, %396 : vector<8x49xf32>
    %cst_311 = arith.constant 0.000000e+00 : f32
    %398 = vector.broadcast %cst_311 : f32 to vector<8x49xf32>
    %399 = arith.maximumf %397, %398 : vector<8x49xf32>
    %c0_312 = arith.constant 0 : index
    %c0_313 = arith.constant 0 : index
    %c0_314 = arith.constant 0 : index
    %400 = vector.load %arg10[%c0_312, %c0_313, %c0_314] : memref<2x8x49xf32, #tpu.memory_space<vmem>>, vector<1x8x49xf32>
    %401 = vector.shape_cast %400 : vector<1x8x49xf32> to vector<8x49xf32>
    %402 = vector.shape_cast %399 : vector<8x49xf32> to vector<1x8x49xf32>
    tpu.vector_store %arg10[%c0_312, %c0_313, %c0_314], %402 {strides = array<i32>} : memref<2x8x49xf32, #tpu.memory_space<vmem>>, vector<1x8x49xf32>,
    %403 = vector.broadcast %357 : vector<8x1xf32> to vector<8x49xf32>
    %404 = arith.mulf %338, %403 : vector<8x49xf32>
    %405 = vector.broadcast %359 : vector<8x1xf32> to vector<8x49xf32>
    %406 = arith.addf %404, %405 : vector<8x49xf32>
    %cst_315 = arith.constant dense<0.000000e+00> : vector<15x49xf32>
    %407 = tpu.matmul %360, %406, %cst_315 {dimension_numbers = #tpu.dot_dimension_numbers<[1], [0], [0], [1], [0, 0, 1, 1], [], []>} : vector<15x8xf32>, vector<8x49xf32>, vector<15x49xf32> -> vector<15x49xf32>
    %cst_316 = arith.constant dense<0.000000e+00> : vector<49xf32>
    %408 = vector.multi_reduction <add>, %407, %cst_316 [0] : vector<15x49xf32> to vector<49xf32>
    %409 = vector.shape_cast %408 : vector<49xf32> to vector<1x49xf32>
    %cst_317 = arith.constant 1.500000e+01 : f32
    %410 = vector.broadcast %cst_317 : f32 to vector<1x49xf32>
    %411 = arith.divf %409, %410 : vector<1x49xf32>
    %412 = vector.broadcast %411 : vector<1x49xf32> to vector<15x49xf32>
    %413 = arith.subf %407, %412 : vector<15x49xf32>
    %414 = arith.mulf %413, %413 : vector<15x49xf32>
    %cst_318 = arith.constant dense<0.000000e+00> : vector<49xf32>
    %415 = vector.multi_reduction <add>, %414, %cst_318 [0] : vector<15x49xf32> to vector<49xf32>
    %416 = vector.shape_cast %415 : vector<49xf32> to vector<1x49xf32>
    %cst_319 = arith.constant 1.500000e+01 : f32
    %417 = vector.broadcast %cst_319 : f32 to vector<1x49xf32>
    %418 = arith.divf %416, %417 : vector<1x49xf32>
    %419 = vector.broadcast %411 : vector<1x49xf32> to vector<15x49xf32>
    %420 = arith.subf %407, %419 : vector<15x49xf32>
    %cst_320 = arith.constant 9.99999996E-13 : f32
    %421 = vector.broadcast %cst_320 : f32 to vector<1x49xf32>
    %422 = arith.addf %418, %421 : vector<1x49xf32>
    %423 = math.rsqrt %422 : vector<1x49xf32>
    %424 = vector.broadcast %423 : vector<1x49xf32> to vector<15x49xf32>
    %425 = arith.mulf %420, %424 : vector<15x49xf32>
    %426 = arith.mulf %425, %361 : vector<15x49xf32>
    %cst_321 = arith.constant dense<0.000000e+00> : vector<49xf32>
    %427 = vector.multi_reduction <add>, %426, %cst_321 [0] : vector<15x49xf32> to vector<49xf32>
    %428 = vector.shape_cast %427 : vector<49xf32> to vector<1x49xf32>
    %429 = arith.negf %428 : vector<1x49xf32>
    %430 = math.exp %429 : vector<1x49xf32>
    %cst_322 = arith.constant 1.000000e+00 : f32
    %431 = vector.broadcast %cst_322 : f32 to vector<1x49xf32>
    %432 = arith.addf %431, %430 : vector<1x49xf32>
    %433 = arith.divf %431, %432 : vector<1x49xf32>
    %434 = vector.broadcast %433 : vector<1x49xf32> to vector<8x49xf32>
    %435 = arith.mulf %406, %434 : vector<8x49xf32>
    %c1_323 = arith.constant 1 : index
    %c0_324 = arith.constant 0 : index
    %c0_325 = arith.constant 0 : index
    %436 = vector.load %arg0[%c1_323, %c0_324, %c0_325] : memref<2x8x49xf32, #tpu.memory_space<vmem>>, vector<1x8x49xf32>
    %437 = vector.shape_cast %436 : vector<1x8x49xf32> to vector<8x49xf32>
    %438 = arith.addf %435, %437 : vector<8x49xf32>
    %cst_326 = arith.constant 0.000000e+00 : f32
    %439 = vector.broadcast %cst_326 : f32 to vector<8x49xf32>
    %440 = arith.maximumf %438, %439 : vector<8x49xf32>
    %c1_327 = arith.constant 1 : index
    %c0_328 = arith.constant 0 : index
    %c0_329 = arith.constant 0 : index
    %441 = vector.load %arg10[%c1_327, %c0_328, %c0_329] : memref<2x8x49xf32, #tpu.memory_space<vmem>>, vector<1x8x49xf32>
    %442 = vector.shape_cast %441 : vector<1x8x49xf32> to vector<8x49xf32>
    %443 = vector.shape_cast %440 : vector<8x49xf32> to vector<1x8x49xf32>
    tpu.vector_store %arg10[%c1_327, %c0_328, %c0_329], %443 {strides = array<i32>} : memref<2x8x49xf32, #tpu.memory_space<vmem>>, vector<1x8x49xf32>,
    return
  }
}

</mosaic_0001>

<llo_original>
// kernel: basic_block_forward.1
$region0: #{basic_block_forward.1}
  #allocation0 [shape = 'u32[]', space=smem, size = 0x4, offset = 0x4, fixed_abs, tag = 'smem constant byte address 0x4 - core index']
  #allocation1 [shape = 'u32[144,128]{1,0:T(1,128)}', space=vmem, size = 0x12000, scoped, tag = 'internal scratch']
  #allocation2 [shape = 'f32[2,8,65]{2,1,0:T(8,128)}', space=vmem, size = 0x2000, scoped, tag = 'scratch operand']
  %s0 = inlined_call_operand.vmem [shape: f32[2,8,49], index: 0, kind: input, shape index: {}]
  %s1 = inlined_call_operand.vmem [shape: f32[9,8,8], index: 1, kind: input, shape index: {}]
  %s2 = inlined_call_operand.vmem [shape: f32[9,8,8], index: 2, kind: input, shape index: {}]
  %s3 = inlined_call_operand.vmem [shape: f32[8,1], index: 3, kind: input, shape index: {}]
  %s4 = inlined_call_operand.vmem [shape: f32[8,1], index: 4, kind: input, shape index: {}]
  %s5 = inlined_call_operand.vmem [shape: f32[8,1], index: 5, kind: input, shape index: {}]
  %s6 = inlined_call_operand.vmem [shape: f32[8,1], index: 6, kind: input, shape index: {}]
  %s7 = inlined_call_operand.vmem [shape: f32[15,8], index: 7, kind: input, shape index: {}]
  %s8 = inlined_call_operand.vmem [shape: f32[15,49], index: 8, kind: input, shape index: {}]
  %s9 = inlined_call_operand.vmem [shape: f32[2,49], index: 9, kind: input, shape index: {}]
  %s10 = inlined_call_operand.vmem [shape: f32[2,8,49], index: 10, kind: output, shape index: {}]
  %s11 = sld [smem:[#allocation0]]
  $region50: #{basic_block_forward.1} parent=0
    _
  %s13 = ssub.s32 1, %s11
  %s14 = scalar_select 0, %s13, %s11
  // Predicated region
  $region2: #{basic_block_forward.1} parent=0 // pred_check
    _
  $region3: #{basic_block_forward.1} parent=0 // pred_check_branch
    %16 = sbr.rel (0) target = $region5
  $region4: #{basic_block_forward.1} parent=0 // pred_region
    _
  $region5: #{basic_block_forward.1} parent=0 // pred_fallthru
    _
  // Predicated region
  $region6: #{basic_block_forward.1} parent=0 // pred_check
    _
  $region7: #{basic_block_forward.1} parent=0 // pred_check_branch
    %18 = sbr.rel (0) target = $region9
  $region8: #{basic_block_forward.1} parent=0 // pred_region
    _
  $region9: #{basic_block_forward.1} parent=0 // pred_fallthru
    _
  // Predicated region
  $region10: #{basic_block_forward.1} parent=0 // pred_check
    _
  $region11: #{basic_block_forward.1} parent=0 // pred_check_branch
    %20 = sbr.rel (0) target = $region13
  $region12: #{basic_block_forward.1} parent=0 // pred_region
    _
  $region13: #{basic_block_forward.1} parent=0 // pred_fallthru
    _
  // Predicated region
  $region14: #{basic_block_forward.1} parent=0 // pred_check
    _
  $region15: #{basic_block_forward.1} parent=0 // pred_check_branch
    %22 = sbr.rel (0) target = $region17
  $region16: #{basic_block_forward.1} parent=0 // pred_region
    _
  $region17: #{basic_block_forward.1} parent=0 // pred_fallthru
    _
  // Predicated region
  $region18: #{basic_block_forward.1} parent=0 // pred_check
    _
  $region19: #{basic_block_forward.1} parent=0 // pred_check_branch
    %24 = sbr.rel (0) target = $region21
  $region20: #{basic_block_forward.1} parent=0 // pred_region
    _
  $region21: #{basic_block_forward.1} parent=0 // pred_fallthru
    _
  // Predicated region
  $region22: #{basic_block_forward.1} parent=0 // pred_check
    _
  $region23: #{basic_block_forward.1} parent=0 // pred_check_branch
    %26 = sbr.rel (0) target = $region25
  $region24: #{basic_block_forward.1} parent=0 // pred_region
    _
  $region25: #{basic_block_forward.1} parent=0 // pred_fallthru
    _
  // Predicated region
  $region26: #{basic_block_forward.1} parent=0 // pred_check
    _
  $region27: #{basic_block_forward.1} parent=0 // pred_check_branch
    %28 = sbr.rel (0) target = $region29
  $region28: #{basic_block_forward.1} parent=0 // pred_region
    _
  $region29: #{basic_block_forward.1} parent=0 // pred_fallthru
    _
  // Predicated region
  $region30: #{basic_block_forward.1} parent=0 // pred_check
    _
  $region31: #{basic_block_forward.1} parent=0 // pred_check_branch
    %30 = sbr.rel (0) target = $region33
  $region32: #{basic_block_forward.1} parent=0 // pred_region
    _
  $region33: #{basic_block_forward.1} parent=0 // pred_fallthru
    _
  // Predicated region
  $region34: #{basic_block_forward.1} parent=0 // pred_check
    _
  $region35: #{basic_block_forward.1} parent=0 // pred_check_branch
    %32 = sbr.rel (0) target = $region37
  $region36: #{basic_block_forward.1} parent=0 // pred_region
    _
  $region37: #{basic_block_forward.1} parent=0 // pred_fallthru
    _
  // Predicated region
  $region38: #{basic_block_forward.1} parent=0 // pred_check
    _
  $region39: #{basic_block_forward.1} parent=0 // pred_check_branch
    %34 = sbr.rel (0) target = $region41
  $region40: #{basic_block_forward.1} parent=0 // pred_region
    _
  $region41: #{basic_block_forward.1} parent=0 // pred_fallthru
    _
  %v35 = vld [vmem:[%s9] sm:$0x1]
  %v36 = vld [vmem:[%s9 + $0x1] sm:$0x1]
  %vm37 = vcmask 531456
  %38 = vst.msk [vmem:[#allocation2] sm:$0xff] %vm37, 0.0
  %39 = vst.msk [vmem:[#allocation2 + $0x8] sm:$0xff] %vm37, 0.0
  %v40 = vld [vmem:[%s0] sm:$0xff]
  %42 = vrot.lane.b32.xlu0 %v40, 8
  %v43 = vpop.permute.xlu0 %42
  %vm45 = vcmask 465984
  %46 = vst.msk [vmem:[#allocation2] sm:$0xff] %vm45, %v43
  %v47 = vld [vmem:[#allocation2] sm:$0xff]
  %v48 = vlaneseq
  %v49 = vshrl.u32 %v48, 7
  %v50 = vsub.s32 0, %v49
  %v51 = vrot.slane %v35, %v50
  %v52 = vmul.f32 %v47, %v51
  %v53 = vld [vmem:[%s1] sm:$0xff]
  %s54 = scalar_lea.vmem %s1, 8
  %v55 = vld [vmem:[%s54] sm:$0xff]
  %57 = vrot.lane.b32.xlu0 %v47, 127
  %v58 = vpop.permute.xlu0 %57
  %vm60 = vcmask 64512
  %v62 = vsel %vm60, %v55, 0
  %64 = vmatprep.subr.mxu0 0.0
  %65 = vmatpush1.msra.mxu0 %v58
  %66 = vmatprep.subr.mxu0 0.0
  %67 = vmatpush1.msra.mxu0 0.0
  %68 = vmatprep.subr.mxu0 0.0
  %69 = vmatpush1.msra.mxu0 0.0
  %70 = vmatprep.subr.mxu0 0.0
  %71 = vmatpush1.msra.mxu0 0.0
  %72 = vmatprep.subr.mxu0 0.0
  %73 = vmatpush1.msra.mxu0 0.0
  %74 = vmatprep.subr.mxu0 0.0
  %75 = vmatpush1.msra.mxu0 0.0
  %76 = vmatprep.subr.mxu0 0.0
  %77 = vmatpush1.msra.mxu0 0.0
  %78 = vmatprep.subr.mxu0 0.0
  %79 = vmatpush1.msra.mxu0 0.0
  %80 = vmatprep.subr.mxu0 0.0
  %81 = vmatpush1.msra.mxu0 0.0
  %82 = vmatprep.subr.mxu0 0.0
  %83 = vmatpush1.msra.mxu0 0.0
  %84 = vmatprep.subr.mxu0 0.0
  %85 = vmatpush1.msra.mxu0 0.0
  %86 = vmatprep.subr.mxu0 0.0
  %87 = vmatpush1.msra.mxu0 0.0
  %88 = vmatprep.subr.mxu0 0.0
  %89 = vmatpush1.msra.mxu0 0.0
  %90 = vmatprep.subr.mxu0 0.0
  %91 = vmatpush1.msra.mxu0 0.0
  %92 = vmatprep.subr.mxu0 0.0
  %93 = vmatpush1.msra.mxu0 0.0
  %94 = vmatprep.subr.mxu0 0.0
  %95 = vmatpush1.msra.mxu0 0.0
  %96 = vmatprep.subr.mxu0 0.0
  %97 = vmatpush1.msra.mxu0 0.0
  %98 = vmatprep.subr.mxu0 0.0
  %99 = vmatpush1.msra.mxu0 0.0
  %100 = vmatprep.subr.mxu0 0.0
  %101 = vmatpush1.msra.mxu0 0.0
  %102 = vmatprep.subr.mxu0 0.0
  %103 = vmatpush1.msra.mxu0 0.0
  %104 = vmatprep.subr.mxu0 0.0
  %105 = vmatpush1.msra.mxu0 0.0
  %106 = vmatprep.subr.mxu0 0.0
  %107 = vmatpush1.msra.mxu0 0.0
  %108 = vmatprep.subr.mxu0 0.0
  %109 = vmatpush1.msra.mxu0 0.0
  %110 = vmatprep.subr.mxu0 0.0
  %111 = vmatpush1.msra.mxu0 0.0
  %112 = vmatprep.subr.mxu0 0.0
  %113 = vmatpush1.msra.mxu0 0.0
  %114 = vmatprep.subr.mxu0 0.0
  %115 = vmatpush1.msra.mxu0 0.0
  %116 = vmatprep.subr.mxu0 0.0
  %117 = vmatpush1.msra.mxu0 0.0
  %118 = vmatprep.subr.mxu0 0.0
  %119 = vmatpush1.msra.mxu0 0.0
  %120 = vmatprep.subr.mxu0 0.0
  %121 = vmatpush1.msra.mxu0 0.0
  %122 = vmatprep.subr.mxu0 0.0
  %123 = vmatpush1.msra.mxu0 0.0
  %124 = vmatprep.subr.mxu0 0.0
  %125 = vmatpush1.msra.mxu0 0.0
  %126 = vmatprep.subr.mxu0 0.0
  %127 = vmatpush1.msra.mxu0 0.0
  %128 = vmatprep.mubr.f32.mxu0 0.0
  %129 = vmatmul.mubr.f32.gmra.mrb[0].mxu0 %v62
  %v130 = vpop.f32.mrb[0].mxu0
  %v131 = vadd.f32 0.0, %v130
  %v132 = vpop.f32.mrb[0].mxu0
  %133 = vdwg.mxu0
  %v135 = vsel %vm60, %v53, 0
  %137 = vmatprep.subr.mxu0 0.0
  %138 = vmatpush1.msra.mxu0 %v52
  %139 = vmatprep.subr.mxu0 0.0
  %140 = vmatpush1.msra.mxu0 0.0
  %141 = vmatprep.subr.mxu0 0.0
  %142 = vmatpush1.msra.mxu0 0.0
  %143 = vmatprep.subr.mxu0 0.0
  %144 = vmatpush1.msra.mxu0 0.0
  %145 = vmatprep.subr.mxu0 0.0
  %146 = vmatpush1.msra.mxu0 0.0
  %147 = vmatprep.subr.mxu0 0.0
  %148 = vmatpush1.msra.mxu0 0.0
  %149 = vmatprep.subr.mxu0 0.0
  %150 = vmatpush1.msra.mxu0 0.0
  %151 = vmatprep.subr.mxu0 0.0
  %152 = vmatpush1.msra.mxu0 0.0
  %153 = vmatprep.subr.mxu0 0.0
  %154 = vmatpush1.msra.mxu0 0.0
  %155 = vmatprep.subr.mxu0 0.0
  %156 = vmatpush1.msra.mxu0 0.0
  %157 = vmatprep.subr.mxu0 0.0
  %158 = vmatpush1.msra.mxu0 0.0
  %159 = vmatprep.subr.mxu0 0.0
  %160 = vmatpush1.msra.mxu0 0.0
  %161 = vmatprep.subr.mxu0 0.0
  %162 = vmatpush1.msra.mxu0 0.0
  %163 = vmatprep.subr.mxu0 0.0
  %164 = vmatpush1.msra.mxu0 0.0
  %165 = vmatprep.subr.mxu0 0.0
  %166 = vmatpush1.msra.mxu0 0.0
  %167 = vmatprep.subr.mxu0 0.0
  %168 = vmatpush1.msra.mxu0 0.0
  %169 = vmatprep.subr.mxu0 0.0
  %170 = vmatpush1.msra.mxu0 0.0
  %171 = vmatprep.subr.mxu0 0.0
  %172 = vmatpush1.msra.mxu0 0.0
  %173 = vmatprep.subr.mxu0 0.0
  %174 = vmatpush1.msra.mxu0 0.0
  %175 = vmatprep.subr.mxu0 0.0
  %176 = vmatpush1.msra.mxu0 0.0
  %177 = vmatprep.subr.mxu0 0.0
  %178 = vmatpush1.msra.mxu0 0.0
  %179 = vmatprep.subr.mxu0 0.0
  %180 = vmatpush1.msra.mxu0 0.0
  %181 = vmatprep.subr.mxu0 0.0
  %182 = vmatpush1.msra.mxu0 0.0
  %183 = vmatprep.subr.mxu0 0.0
  %184 = vmatpush1.msra.mxu0 0.0
  %185 = vmatprep.subr.mxu0 0.0
  %186 = vmatpush1.msra.mxu0 0.0
  %187 = vmatprep.subr.mxu0 0.0
  %188 = vmatpush1.msra.mxu0 0.0
  %189 = vmatprep.subr.mxu0 0.0
  %190 = vmatpush1.msra.mxu0 0.0
  %191 = vmatprep.subr.mxu0 0.0
  %192 = vmatpush1.msra.mxu0 0.0
  %193 = vmatprep.subr.mxu0 0.0
  %194 = vmatpush1.msra.mxu0 0.0
  %195 = vmatprep.subr.mxu0 0.0
  %196 = vmatpush1.msra.mxu0 0.0
  %197 = vmatprep.subr.mxu0 0.0
  %198 = vmatpush1.msra.mxu0 0.0
  %199 = vmatprep.subr.mxu0 0.0
  %200 = vmatpush1.msra.mxu0 0.0
  %201 = vmatprep.mubr.f32.mxu0 0.0
  %202 = vmatmul.mubr.f32.gmra.mrb[0].mxu0 %v135
  %v203 = vpop.f32.mrb[0].mxu0
  %v204 = vadd.f32 %v131, %v203
  %v205 = vpop.f32.mrb[0].mxu0
  %206 = vdwg.mxu0
  %v207 = vlaneseq
  %v208 = vshrl.u32 %v207, 7
  %v209 = vsub.s32 0, %v208
  %v210 = vrot.slane %v36, %v209
  %212 = vrot.lane.b32.xlu0 %v210, 2
  %v213 = vpop.permute.xlu0 %212
  %v215 = vmul.f32 %v47, %v213
  %s216 = scalar_lea.vmem %s1, 16
  %v217 = vld [vmem:[%s216] sm:$0xff]
  %219 = vrot.lane.b32.xlu0 %v215, 126
  %v220 = vpop.permute.xlu0 %219
  %v223 = vsel %vm60, %v217, 0
  %225 = vmatprep.subr.mxu0 0.0
  %226 = vmatpush1.msra.mxu0 %v220
  %227 = vmatprep.subr.mxu0 0.0
  %228 = vmatpush1.msra.mxu0 0.0
  %229 = vmatprep.subr.mxu0 0.0
  %230 = vmatpush1.msra.mxu0 0.0
  %231 = vmatprep.subr.mxu0 0.0
  %232 = vmatpush1.msra.mxu0 0.0
  %233 = vmatprep.subr.mxu0 0.0
  %234 = vmatpush1.msra.mxu0 0.0
  %235 = vmatprep.subr.mxu0 0.0
  %236 = vmatpush1.msra.mxu0 0.0
  %237 = vmatprep.subr.mxu0 0.0
  %238 = vmatpush1.msra.mxu0 0.0
  %239 = vmatprep.subr.mxu0 0.0
  %240 = vmatpush1.msra.mxu0 0.0
  %241 = vmatprep.subr.mxu0 0.0
  %242 = vmatpush1.msra.mxu0 0.0
  %243 = vmatprep.subr.mxu0 0.0
  %244 = vmatpush1.msra.mxu0 0.0
  %245 = vmatprep.subr.mxu0 0.0
  %246 = vmatpush1.msra.mxu0 0.0
  %247 = vmatprep.subr.mxu0 0.0
  %248 = vmatpush1.msra.mxu0 0.0
  %249 = vmatprep.subr.mxu0 0.0
  %250 = vmatpush1.msra.mxu0 0.0
  %251 = vmatprep.subr.mxu0 0.0
  %252 = vmatpush1.msra.mxu0 0.0
  %253 = vmatprep.subr.mxu0 0.0
  %254 = vmatpush1.msra.mxu0 0.0
  %255 = vmatprep.subr.mxu0 0.0
  %256 = vmatpush1.msra.mxu0 0.0
  %257 = vmatprep.subr.mxu0 0.0
  %258 = vmatpush1.msra.mxu0 0.0
  %259 = vmatprep.subr.mxu0 0.0
  %260 = vmatpush1.msra.mxu0 0.0
  %261 = vmatprep.subr.mxu0 0.0
  %262 = vmatpush1.msra.mxu0 0.0
  %263 = vmatprep.subr.mxu0 0.0
  %264 = vmatpush1.msra.mxu0 0.0
  %265 = vmatprep.subr.mxu0 0.0
  %266 = vmatpush1.msra.mxu0 0.0
  %267 = vmatprep.subr.mxu0 0.0
  %268 = vmatpush1.msra.mxu0 0.0
  %269 = vmatprep.subr.mxu0 0.0
  %270 = vmatpush1.msra.mxu0 0.0
  %271 = vmatprep.subr.mxu0 0.0
  %272 = vmatpush1.msra.mxu0 0.0
  %273 = vmatprep.subr.mxu0 0.0
  %274 = vmatpush1.msra.mxu0 0.0
  %275 = vmatprep.subr.mxu0 0.0
  %276 = vmatpush1.msra.mxu0 0.0
  %277 = vmatprep.subr.mxu0 0.0
  %278 = vmatpush1.msra.mxu0 0.0
  %279 = vmatprep.subr.mxu0 0.0
  %280 = vmatpush1.msra.mxu0 0.0
  %281 = vmatprep.subr.mxu0 0.0
  %282 = vmatpush1.msra.mxu0 0.0
  %283 = vmatprep.subr.mxu0 0.0
  %284 = vmatpush1.msra.mxu0 0.0
  %285 = vmatprep.subr.mxu0 0.0
  %286 = vmatpush1.msra.mxu0 0.0
  %287 = vmatprep.subr.mxu0 0.0
  %288 = vmatpush1.msra.mxu0 0.0
  %289 = vmatprep.mubr.f32.mxu0 0.0
  %290 = vmatmul.mubr.f32.gmra.mrb[0].mxu0 %v223
  %v291 = vpop.f32.mrb[0].mxu0
  %v292 = vadd.f32 0.0, %v291
  %v293 = vpop.f32.mrb[0].mxu0
  %294 = vdwg.mxu0
  %v295 = vadd.f32 %v204, %v292
  %297 = vrot.lane.b32.xlu0 %v51, 7
  %v298 = vpop.permute.xlu0 %297
  %v300 = vmul.f32 %v47, %v298
  %s301 = scalar_lea.vmem %s1, 24
  %v302 = vld [vmem:[%s301] sm:$0xff]
  %304 = vrot.lane.b32.xlu0 %v300, 121
  %v305 = vpop.permute.xlu0 %304
  %v308 = vsel %vm60, %v302, 0
  %310 = vmatprep.subr.mxu0 0.0
  %311 = vmatpush1.msra.mxu0 %v305
  %312 = vmatprep.subr.mxu0 0.0
  %313 = vmatpush1.msra.mxu0 0.0
  %314 = vmatprep.subr.mxu0 0.0
  %315 = vmatpush1.msra.mxu0 0.0
  %316 = vmatprep.subr.mxu0 0.0
  %317 = vmatpush1.msra.mxu0 0.0
  %318 = vmatprep.subr.mxu0 0.0
  %319 = vmatpush1.msra.mxu0 0.0
  %320 = vmatprep.subr.mxu0 0.0
  %321 = vmatpush1.msra.mxu0 0.0
  %322 = vmatprep.subr.mxu0 0.0
  %323 = vmatpush1.msra.mxu0 0.0
  %324 = vmatprep.subr.mxu0 0.0
  %325 = vmatpush1.msra.mxu0 0.0
  %326 = vmatprep.subr.mxu0 0.0
  %327 = vmatpush1.msra.mxu0 0.0
  %328 = vmatprep.subr.mxu0 0.0
  %329 = vmatpush1.msra.mxu0 0.0
  %330 = vmatprep.subr.mxu0 0.0
  %331 = vmatpush1.msra.mxu0 0.0
  %332 = vmatprep.subr.mxu0 0.0
  %333 = vmatpush1.msra.mxu0 0.0
  %334 = vmatprep.subr.mxu0 0.0
  %335 = vmatpush1.msra.mxu0 0.0
  %336 = vmatprep.subr.mxu0 0.0
  %337 = vmatpush1.msra.mxu0 0.0
  %338 = vmatprep.subr.mxu0 0.0
  %339 = vmatpush1.msra.mxu0 0.0
  %340 = vmatprep.subr.mxu0 0.0
  %341 = vmatpush1.msra.mxu0 0.0
  %342 = vmatprep.subr.mxu0 0.0
  %343 = vmatpush1.msra.mxu0 0.0
  %344 = vmatprep.subr.mxu0 0.0
  %345 = vmatpush1.msra.mxu0 0.0
  %346 = vmatprep.subr.mxu0 0.0
  %347 = vmatpush1.msra.mxu0 0.0
  %348 = vmatprep.subr.mxu0 0.0
  %349 = vmatpush1.msra.mxu0 0.0
  %350 = vmatprep.subr.mxu0 0.0
  %351 = vmatpush1.msra.mxu0 0.0
  %352 = vmatprep.subr.mxu0 0.0
  %353 = vmatpush1.msra.mxu0 0.0
  %354 = vmatprep.subr.mxu0 0.0
  %355 = vmatpush1.msra.mxu0 0.0
  %356 = vmatprep.subr.mxu0 0.0
  %357 = vmatpush1.msra.mxu0 0.0
  %358 = vmatprep.subr.mxu0 0.0
  %359 = vmatpush1.msra.mxu0 0.0
  %360 = vmatprep.subr.mxu0 0.0
  %361 = vmatpush1.msra.mxu0 0.0
  %362 = vmatprep.subr.mxu0 0.0
  %363 = vmatpush1.msra.mxu0 0.0
  %364 = vmatprep.subr.mxu0 0.0
  %365 = vmatpush1.msra.mxu0 0.0
  %366 = vmatprep.subr.mxu0 0.0
  %367 = vmatpush1.msra.mxu0 0.0
  %368 = vmatprep.subr.mxu0 0.0
  %369 = vmatpush1.msra.mxu0 0.0
  %370 = vmatprep.subr.mxu0 0.0
  %371 = vmatpush1.msra.mxu0 0.0
  %372 = vmatprep.subr.mxu0 0.0
  %373 = vmatpush1.msra.mxu0 0.0
  %374 = vmatprep.mubr.f32.mxu0 0.0
  %375 = vmatmul.mubr.f32.gmra.mrb[0].mxu0 %v308
  %v376 = vpop.f32.mrb[0].mxu0
  %v377 = vadd.f32 0.0, %v376
  %v378 = vpop.f32.mrb[0].mxu0
  %379 = vdwg.mxu0
  %v380 = vadd.f32 %v295, %v377
  %s381 = scalar_lea.vmem %s1, 32
  %v382 = vld [vmem:[%s381] sm:$0xff]
  %383 = vrot.lane.b32.xlu0 %v47, 120
  %v384 = vpop.permute.xlu0 %383
  %v387 = vsel %vm60, %v382, 0
  %389 = vmatprep.subr.mxu0 0.0
  %390 = vmatpush1.msra.mxu0 %v384
  %391 = vmatprep.subr.mxu0 0.0
  %392 = vmatpush1.msra.mxu0 0.0
  %393 = vmatprep.subr.mxu0 0.0
  %394 = vmatpush1.msra.mxu0 0.0
  %395 = vmatprep.subr.mxu0 0.0
  %396 = vmatpush1.msra.mxu0 0.0
  %397 = vmatprep.subr.mxu0 0.0
  %398 = vmatpush1.msra.mxu0 0.0
  %399 = vmatprep.subr.mxu0 0.0
  %400 = vmatpush1.msra.mxu0 0.0
  %401 = vmatprep.subr.mxu0 0.0
  %402 = vmatpush1.msra.mxu0 0.0
  %403 = vmatprep.subr.mxu0 0.0
  %404 = vmatpush1.msra.mxu0 0.0
  %405 = vmatprep.subr.mxu0 0.0
  %406 = vmatpush1.msra.mxu0 0.0
  %407 = vmatprep.subr.mxu0 0.0
  %408 = vmatpush1.msra.mxu0 0.0
  %409 = vmatprep.subr.mxu0 0.0
  %410 = vmatpush1.msra.mxu0 0.0
  %411 = vmatprep.subr.mxu0 0.0
  %412 = vmatpush1.msra.mxu0 0.0
  %413 = vmatprep.subr.mxu0 0.0
  %414 = vmatpush1.msra.mxu0 0.0
  %415 = vmatprep.subr.mxu0 0.0
  %416 = vmatpush1.msra.mxu0 0.0
  %417 = vmatprep.subr.mxu0 0.0
  %418 = vmatpush1.msra.mxu0 0.0
  %419 = vmatprep.subr.mxu0 0.0
  %420 = vmatpush1.msra.mxu0 0.0
  %421 = vmatprep.subr.mxu0 0.0
  %422 = vmatpush1.msra.mxu0 0.0
  %423 = vmatprep.subr.mxu0 0.0
  %424 = vmatpush1.msra.mxu0 0.0
  %425 = vmatprep.subr.mxu0 0.0
  %426 = vmatpush1.msra.mxu0 0.0
  %427 = vmatprep.subr.mxu0 0.0
  %428 = vmatpush1.msra.mxu0 0.0
  %429 = vmatprep.subr.mxu0 0.0
  %430 = vmatpush1.msra.mxu0 0.0
  %431 = vmatprep.subr.mxu0 0.0
  %432 = vmatpush1.msra.mxu0 0.0
  %433 = vmatprep.subr.mxu0 0.0
  %434 = vmatpush1.msra.mxu0 0.0
  %435 = vmatprep.subr.mxu0 0.0
  %436 = vmatpush1.msra.mxu0 0.0
  %437 = vmatprep.subr.mxu0 0.0
  %438 = vmatpush1.msra.mxu0 0.0
  %439 = vmatprep.subr.mxu0 0.0
  %440 = vmatpush1.msra.mxu0 0.0
  %441 = vmatprep.subr.mxu0 0.0
  %442 = vmatpush1.msra.mxu0 0.0
  %443 = vmatprep.subr.mxu0 0.0
  %444 = vmatpush1.msra.mxu0 0.0
  %445 = vmatprep.subr.mxu0 0.0
  %446 = vmatpush1.msra.mxu0 0.0
  %447 = vmatprep.subr.mxu0 0.0
  %448 = vmatpush1.msra.mxu0 0.0
  %449 = vmatprep.subr.mxu0 0.0
  %450 = vmatpush1.msra.mxu0 0.0
  %451 = vmatprep.subr.mxu0 0.0
  %452 = vmatpush1.msra.mxu0 0.0
  %453 = vmatprep.mubr.f32.mxu0 0.0
  %454 = vmatmul.mubr.f32.gmra.mrb[0].mxu0 %v387
  %v455 = vpop.f32.mrb[0].mxu0
  %v456 = vadd.f32 0.0, %v455
  %v457 = vpop.f32.mrb[0].mxu0
  %458 = vdwg.mxu0
  %v459 = vadd.f32 %v380, %v456
  %460 = vrot.lane.b32.xlu0 %v210, 9
  %v461 = vpop.permute.xlu0 %460
  %v463 = vmul.f32 %v47, %v461
  %s464 = scalar_lea.vmem %s1, 40
  %v465 = vld [vmem:[%s464] sm:$0xff]
  %467 = vrot.lane.b32.xlu0 %v463, 119
  %v468 = vpop.permute.xlu0 %467
  %v471 = vsel %vm60, %v465, 0
  %473 = vmatprep.subr.mxu0 0.0
  %474 = vmatpush1.msra.mxu0 %v468
  %475 = vmatprep.subr.mxu0 0.0
  %476 = vmatpush1.msra.mxu0 0.0
  %477 = vmatprep.subr.mxu0 0.0
  %478 = vmatpush1.msra.mxu0 0.0
  %479 = vmatprep.subr.mxu0 0.0
  %480 = vmatpush1.msra.mxu0 0.0
  %481 = vmatprep.subr.mxu0 0.0
  %482 = vmatpush1.msra.mxu0 0.0
  %483 = vmatprep.subr.mxu0 0.0
  %484 = vmatpush1.msra.mxu0 0.0
  %485 = vmatprep.subr.mxu0 0.0
  %486 = vmatpush1.msra.mxu0 0.0
  %487 = vmatprep.subr.mxu0 0.0
  %488 = vmatpush1.msra.mxu0 0.0
  %489 = vmatprep.subr.mxu0 0.0
  %490 = vmatpush1.msra.mxu0 0.0
  %491 = vmatprep.subr.mxu0 0.0
  %492 = vmatpush1.msra.mxu0 0.0
  %493 = vmatprep.subr.mxu0 0.0
  %494 = vmatpush1.msra.mxu0 0.0
  %495 = vmatprep.subr.mxu0 0.0
  %496 = vmatpush1.msra.mxu0 0.0
  %497 = vmatprep.subr.mxu0 0.0
  %498 = vmatpush1.msra.mxu0 0.0
  %499 = vmatprep.subr.mxu0 0.0
  %500 = vmatpush1.msra.mxu0 0.0
  %501 = vmatprep.subr.mxu0 0.0
  %502 = vmatpush1.msra.mxu0 0.0
  %503 = vmatprep.subr.mxu0 0.0
  %504 = vmatpush1.msra.mxu0 0.0
  %505 = vmatprep.subr.mxu0 0.0
  %506 = vmatpush1.msra.mxu0 0.0
  %507 = vmatprep.subr.mxu0 0.0
  %508 = vmatpush1.msra.mxu0 0.0
  %509 = vmatprep.subr.mxu0 0.0
  %510 = vmatpush1.msra.mxu0 0.0
  %511 = vmatprep.subr.mxu0 0.0
  %512 = vmatpush1.msra.mxu0 0.0
  %513 = vmatprep.subr.mxu0 0.0
  %514 = vmatpush1.msra.mxu0 0.0
  %515 = vmatprep.subr.mxu0 0.0
  %516 = vmatpush1.msra.mxu0 0.0
  %517 = vmatprep.subr.mxu0 0.0
  %518 = vmatpush1.msra.mxu0 0.0
  %519 = vmatprep.subr.mxu0 0.0
  %520 = vmatpush1.msra.mxu0 0.0
  %521 = vmatprep.subr.mxu0 0.0
  %522 = vmatpush1.msra.mxu0 0.0
  %523 = vmatprep.subr.mxu0 0.0
  %524 = vmatpush1.msra.mxu0 0.0
  %525 = vmatprep.subr.mxu0 0.0
  %526 = vmatpush1.msra.mxu0 0.0
  %527 = vmatprep.subr.mxu0 0.0
  %528 = vmatpush1.msra.mxu0 0.0
  %529 = vmatprep.subr.mxu0 0.0
  %530 = vmatpush1.msra.mxu0 0.0
  %531 = vmatprep.subr.mxu0 0.0
  %532 = vmatpush1.msra.mxu0 0.0
  %533 = vmatprep.subr.mxu0 0.0
  %534 = vmatpush1.msra.mxu0 0.0
  %535 = vmatprep.subr.mxu0 0.0
  %536 = vmatpush1.msra.mxu0 0.0
  %537 = vmatprep.mubr.f32.mxu0 0.0
  %538 = vmatmul.mubr.f32.gmra.mrb[0].mxu0 %v471
  %v539 = vpop.f32.mrb[0].mxu0
  %v540 = vadd.f32 0.0, %v539
  %v541 = vpop.f32.mrb[0].mxu0
  %542 = vdwg.mxu0
  %v543 = vadd.f32 %v459, %v540
  %544 = vrot.lane.b32.xlu0 %v51, 14
  %v545 = vpop.permute.xlu0 %544
  %v547 = vmul.f32 %v47, %v545
  %s548 = scalar_lea.vmem %s1, 48
  %v549 = vld [vmem:[%s548] sm:$0xff]
  %551 = vrot.lane.b32.xlu0 %v547, 114
  %v552 = vpop.permute.xlu0 %551
  %v555 = vsel %vm60, %v549, 0
  %557 = vmatprep.subr.mxu0 0.0
  %558 = vmatpush1.msra.mxu0 %v552
  %559 = vmatprep.subr.mxu0 0.0
  %560 = vmatpush1.msra.mxu0 0.0
  %561 = vmatprep.subr.mxu0 0.0
  %562 = vmatpush1.msra.mxu0 0.0
  %563 = vmatprep.subr.mxu0 0.0
  %564 = vmatpush1.msra.mxu0 0.0
  %565 = vmatprep.subr.mxu0 0.0
  %566 = vmatpush1.msra.mxu0 0.0
  %567 = vmatprep.subr.mxu0 0.0
  %568 = vmatpush1.msra.mxu0 0.0
  %569 = vmatprep.subr.mxu0 0.0
  %570 = vmatpush1.msra.mxu0 0.0
  %571 = vmatprep.subr.mxu0 0.0
  %572 = vmatpush1.msra.mxu0 0.0
  %573 = vmatprep.subr.mxu0 0.0
  %574 = vmatpush1.msra.mxu0 0.0
  %575 = vmatprep.subr.mxu0 0.0
  %576 = vmatpush1.msra.mxu0 0.0
  %577 = vmatprep.subr.mxu0 0.0
  %578 = vmatpush1.msra.mxu0 0.0
  %579 = vmatprep.subr.mxu0 0.0
  %580 = vmatpush1.msra.mxu0 0.0
  %581 = vmatprep.subr.mxu0 0.0
  %582 = vmatpush1.msra.mxu0 0.0
  %583 = vmatprep.subr.mxu0 0.0
  %584 = vmatpush1.msra.mxu0 0.0
  %585 = vmatprep.subr.mxu0 0.0
  %586 = vmatpush1.msra.mxu0 0.0
  %587 = vmatprep.subr.mxu0 0.0
  %588 = vmatpush1.msra.mxu0 0.0
  %589 = vmatprep.subr.mxu0 0.0
  %590 = vmatpush1.msra.mxu0 0.0
  %591 = vmatprep.subr.mxu0 0.0
  %592 = vmatpush1.msra.mxu0 0.0
  %593 = vmatprep.subr.mxu0 0.0
  %594 = vmatpush1.msra.mxu0 0.0
  %595 = vmatprep.subr.mxu0 0.0
  %596 = vmatpush1.msra.mxu0 0.0
  %597 = vmatprep.subr.mxu0 0.0
  %598 = vmatpush1.msra.mxu0 0.0
  %599 = vmatprep.subr.mxu0 0.0
  %600 = vmatpush1.msra.mxu0 0.0
  %601 = vmatprep.subr.mxu0 0.0
  %602 = vmatpush1.msra.mxu0 0.0
  %603 = vmatprep.subr.mxu0 0.0
  %604 = vmatpush1.msra.mxu0 0.0
  %605 = vmatprep.subr.mxu0 0.0
  %606 = vmatpush1.msra.mxu0 0.0
  %607 = vmatprep.subr.mxu0 0.0
  %608 = vmatpush1.msra.mxu0 0.0
  %609 = vmatprep.subr.mxu0 0.0
  %610 = vmatpush1.msra.mxu0 0.0
  %611 = vmatprep.subr.mxu0 0.0
  %612 = vmatpush1.msra.mxu0 0.0
  %613 = vmatprep.subr.mxu0 0.0
  %614 = vmatpush1.msra.mxu0 0.0
  %615 = vmatprep.subr.mxu0 0.0
  %616 = vmatpush1.msra.mxu0 0.0
  %617 = vmatprep.subr.mxu0 0.0
  %618 = vmatpush1.msra.mxu0 0.0
  %619 = vmatprep.subr.mxu0 0.0
  %620 = vmatpush1.msra.mxu0 0.0
  %621 = vmatprep.mubr.f32.mxu0 0.0
  %622 = vmatmul.mubr.f32.gmra.mrb[0].mxu0 %v555
  %v623 = vpop.f32.mrb[0].mxu0
  %v624 = vadd.f32 0.0, %v623
  %v625 = vpop.f32.mrb[0].mxu0
  %626 = vdwg.mxu0
  %v627 = vadd.f32 %v543, %v624
  %s628 = scalar_lea.vmem %s1, 56
  %v629 = vld [vmem:[%s628] sm:$0xff]
  %630 = vrot.lane.b32.xlu0 %v47, 113
  %v631 = vpop.permute.xlu0 %630
  %v634 = vsel %vm60, %v629, 0
  %636 = vmatprep.subr.mxu0 0.0
  %637 = vmatpush1.msra.mxu0 %v631
  %638 = vmatprep.subr.mxu0 0.0
  %639 = vmatpush1.msra.mxu0 0.0
  %640 = vmatprep.subr.mxu0 0.0
  %641 = vmatpush1.msra.mxu0 0.0
  %642 = vmatprep.subr.mxu0 0.0
  %643 = vmatpush1.msra.mxu0 0.0
  %644 = vmatprep.subr.mxu0 0.0
  %645 = vmatpush1.msra.mxu0 0.0
  %646 = vmatprep.subr.mxu0 0.0
  %647 = vmatpush1.msra.mxu0 0.0
  %648 = vmatprep.subr.mxu0 0.0
  %649 = vmatpush1.msra.mxu0 0.0
  %650 = vmatprep.subr.mxu0 0.0
  %651 = vmatpush1.msra.mxu0 0.0
  %652 = vmatprep.subr.mxu0 0.0
  %653 = vmatpush1.msra.mxu0 0.0
  %654 = vmatprep.subr.mxu0 0.0
  %655 = vmatpush1.msra.mxu0 0.0
  %656 = vmatprep.subr.mxu0 0.0
  %657 = vmatpush1.msra.mxu0 0.0
  %658 = vmatprep.subr.mxu0 0.0
  %659 = vmatpush1.msra.mxu0 0.0
  %660 = vmatprep.subr.mxu0 0.0
  %661 = vmatpush1.msra.mxu0 0.0
  %662 = vmatprep.subr.mxu0 0.0
  %663 = vmatpush1.msra.mxu0 0.0
  %664 = vmatprep.subr.mxu0 0.0
  %665 = vmatpush1.msra.mxu0 0.0
  %666 = vmatprep.subr.mxu0 0.0
  %667 = vmatpush1.msra.mxu0 0.0
  %668 = vmatprep.subr.mxu0 0.0
  %669 = vmatpush1.msra.mxu0 0.0
  %670 = vmatprep.subr.mxu0 0.0
  %671 = vmatpush1.msra.mxu0 0.0
  %672 = vmatprep.subr.mxu0 0.0
  %673 = vmatpush1.msra.mxu0 0.0
  %674 = vmatprep.subr.mxu0 0.0
  %675 = vmatpush1.msra.mxu0 0.0
  %676 = vmatprep.subr.mxu0 0.0
  %677 = vmatpush1.msra.mxu0 0.0
  %678 = vmatprep.subr.mxu0 0.0
  %679 = vmatpush1.msra.mxu0 0.0
  %680 = vmatprep.subr.mxu0 0.0
  %681 = vmatpush1.msra.mxu0 0.0
  %682 = vmatprep.subr.mxu0 0.0
  %683 = vmatpush1.msra.mxu0 0.0
  %684 = vmatprep.subr.mxu0 0.0
  %685 = vmatpush1.msra.mxu0 0.0
  %686 = vmatprep.subr.mxu0 0.0
  %687 = vmatpush1.msra.mxu0 0.0
  %688 = vmatprep.subr.mxu0 0.0
  %689 = vmatpush1.msra.mxu0 0.0
  %690 = vmatprep.subr.mxu0 0.0
  %691 = vmatpush1.msra.mxu0 0.0
  %692 = vmatprep.subr.mxu0 0.0
  %693 = vmatpush1.msra.mxu0 0.0
  %694 = vmatprep.subr.mxu0 0.0
  %695 = vmatpush1.msra.mxu0 0.0
  %696 = vmatprep.subr.mxu0 0.0
  %697 = vmatpush1.msra.mxu0 0.0
  %698 = vmatprep.subr.mxu0 0.0
  %699 = vmatpush1.msra.mxu0 0.0
  %700 = vmatprep.mubr.f32.mxu0 0.0
  %701 = vmatmul.mubr.f32.gmra.mrb[0].mxu0 %v634
  %v702 = vpop.f32.mrb[0].mxu0
  %v703 = vadd.f32 0.0, %v702
  %v704 = vpop.f32.mrb[0].mxu0
  %705 = vdwg.mxu0
  %v706 = vadd.f32 %v627, %v703
  %707 = vrot.lane.b32.xlu0 %v210, 16
  %v708 = vpop.permute.xlu0 %707
  %v710 = vmul.f32 %v47, %v708
  %s711 = scalar_lea.vmem %s1, 64
  %v712 = vld [vmem:[%s711] sm:$0xff]
  %714 = vrot.lane.b32.xlu0 %v710, 112
  %v715 = vpop.permute.xlu0 %714
  %v718 = vsel %vm60, %v712, 0
  %720 = vmatprep.subr.mxu0 0.0
  %721 = vmatpush1.msra.mxu0 %v715
  %722 = vmatprep.subr.mxu0 0.0
  %723 = vmatpush1.msra.mxu0 0.0
  %724 = vmatprep.subr.mxu0 0.0
  %725 = vmatpush1.msra.mxu0 0.0
  %726 = vmatprep.subr.mxu0 0.0
  %727 = vmatpush1.msra.mxu0 0.0
  %728 = vmatprep.subr.mxu0 0.0
  %729 = vmatpush1.msra.mxu0 0.0
  %730 = vmatprep.subr.mxu0 0.0
  %731 = vmatpush1.msra.mxu0 0.0
  %732 = vmatprep.subr.mxu0 0.0
  %733 = vmatpush1.msra.mxu0 0.0
  %734 = vmatprep.subr.mxu0 0.0
  %735 = vmatpush1.msra.mxu0 0.0
  %736 = vmatprep.subr.mxu0 0.0
  %737 = vmatpush1.msra.mxu0 0.0
  %738 = vmatprep.subr.mxu0 0.0
  %739 = vmatpush1.msra.mxu0 0.0
  %740 = vmatprep.subr.mxu0 0.0
  %741 = vmatpush1.msra.mxu0 0.0
  %742 = vmatprep.subr.mxu0 0.0
  %743 = vmatpush1.msra.mxu0 0.0
  %744 = vmatprep.subr.mxu0 0.0
  %745 = vmatpush1.msra.mxu0 0.0
  %746 = vmatprep.subr.mxu0 0.0
  %747 = vmatpush1.msra.mxu0 0.0
  %748 = vmatprep.subr.mxu0 0.0
  %749 = vmatpush1.msra.mxu0 0.0
  %750 = vmatprep.subr.mxu0 0.0
  %751 = vmatpush1.msra.mxu0 0.0
  %752 = vmatprep.subr.mxu0 0.0
  %753 = vmatpush1.msra.mxu0 0.0
  %754 = vmatprep.subr.mxu0 0.0
  %755 = vmatpush1.msra.mxu0 0.0
  %756 = vmatprep.subr.mxu0 0.0
  %757 = vmatpush1.msra.mxu0 0.0
  %758 = vmatprep.subr.mxu0 0.0
  %759 = vmatpush1.msra.mxu0 0.0
  %760 = vmatprep.subr.mxu0 0.0
  %761 = vmatpush1.msra.mxu0 0.0
  %762 = vmatprep.subr.mxu0 0.0
  %763 = vmatpush1.msra.mxu0 0.0
  %764 = vmatprep.subr.mxu0 0.0
  %765 = vmatpush1.msra.mxu0 0.0
  %766 = vmatprep.subr.mxu0 0.0
  %767 = vmatpush1.msra.mxu0 0.0
  %768 = vmatprep.subr.mxu0 0.0
  %769 = vmatpush1.msra.mxu0 0.0
  %770 = vmatprep.subr.mxu0 0.0
  %771 = vmatpush1.msra.mxu0 0.0
  %772 = vmatprep.subr.mxu0 0.0
  %773 = vmatpush1.msra.mxu0 0.0
  %774 = vmatprep.subr.mxu0 0.0
  %775 = vmatpush1.msra.mxu0 0.0
  %776 = vmatprep.subr.mxu0 0.0
  %777 = vmatpush1.msra.mxu0 0.0
  %778 = vmatprep.subr.mxu0 0.0
  %779 = vmatpush1.msra.mxu0 0.0
  %780 = vmatprep.subr.mxu0 0.0
  %781 = vmatpush1.msra.mxu0 0.0
  %782 = vmatprep.subr.mxu0 0.0
  %783 = vmatpush1.msra.mxu0 0.0
  %784 = vmatprep.mubr.f32.mxu0 0.0
  %785 = vmatmul.mubr.f32.gmra.mrb[0].mxu0 %v718
  %v786 = vpop.f32.mrb[0].mxu0
  %v787 = vadd.f32 0.0, %v786
  %v788 = vpop.f32.mrb[0].mxu0
  %789 = vdwg.mxu0
  %v790 = vadd.f32 %v706, %v787
  %vm791 = vcmask 400384
  %v792 = vsel %vm791, %v790, 0.0
  %793 = vadd.xlane.f32.xlu0 %v792
  %v794 = vpop.xlane.xlu0 %793
  %v795 = vadd.f32 %v794, 0.0
  %v796 = vmul.f32 %v790, %v790
  %v797 = vsel %vm791, %v796, 0.0
  %798 = vadd.xlane.f32.xlu0 %v797
  %v799 = vpop.xlane.xlu0 %798
  %v800 = vadd.f32 %v799, 0.0
  %s801 = scalar_lea.vmem %s0, 8
  %v802 = vld [vmem:[%s801] sm:$0xff]
  %804 = vrot.lane.b32.xlu0 %v802, 8
  %v805 = vpop.permute.xlu0 %804
  %s807 = scalar_lea.vmem [#allocation2], 8
  %808 = vst.msk [vmem:[%s807] sm:$0xff] %vm45, %v805
  %v809 = vld [vmem:[%s807] sm:$0xff]
  %v810 = vmul.f32 %v809, %v51
  %v811 = vld [vmem:[%s1] sm:$0xff]
  %v812 = vld [vmem:[%s54] sm:$0xff]
  %814 = vrot.lane.b32.xlu0 %v809, 127
  %v815 = vpop.permute.xlu0 %814
  %v818 = vsel %vm60, %v812, 0
  %820 = vmatprep.subr.mxu0 0.0
  %821 = vmatpush1.msra.mxu0 %v815
  %822 = vmatprep.subr.mxu0 0.0
  %823 = vmatpush1.msra.mxu0 0.0
  %824 = vmatprep.subr.mxu0 0.0
  %825 = vmatpush1.msra.mxu0 0.0
  %826 = vmatprep.subr.mxu0 0.0
  %827 = vmatpush1.msra.mxu0 0.0
  %828 = vmatprep.subr.mxu0 0.0
  %829 = vmatpush1.msra.mxu0 0.0
  %830 = vmatprep.subr.mxu0 0.0
  %831 = vmatpush1.msra.mxu0 0.0
  %832 = vmatprep.subr.mxu0 0.0
  %833 = vmatpush1.msra.mxu0 0.0
  %834 = vmatprep.subr.mxu0 0.0
  %835 = vmatpush1.msra.mxu0 0.0
  %836 = vmatprep.subr.mxu0 0.0
  %837 = vmatpush1.msra.mxu0 0.0
  %838 = vmatprep.subr.mxu0 0.0
  %839 = vmatpush1.msra.mxu0 0.0
  %840 = vmatprep.subr.mxu0 0.0
  %841 = vmatpush1.msra.mxu0 0.0
  %842 = vmatprep.subr.mxu0 0.0
  %843 = vmatpush1.msra.mxu0 0.0
  %844 = vmatprep.subr.mxu0 0.0
  %845 = vmatpush1.msra.mxu0 0.0
  %846 = vmatprep.subr.mxu0 0.0
  %847 = vmatpush1.msra.mxu0 0.0
  %848 = vmatprep.subr.mxu0 0.0
  %849 = vmatpush1.msra.mxu0 0.0
  %850 = vmatprep.subr.mxu0 0.0
  %851 = vmatpush1.msra.mxu0 0.0
  %852 = vmatprep.subr.mxu0 0.0
  %853 = vmatpush1.msra.mxu0 0.0
  %854 = vmatprep.subr.mxu0 0.0
  %855 = vmatpush1.msra.mxu0 0.0
  %856 = vmatprep.subr.mxu0 0.0
  %857 = vmatpush1.msra.mxu0 0.0
  %858 = vmatprep.subr.mxu0 0.0
  %859 = vmatpush1.msra.mxu0 0.0
  %860 = vmatprep.subr.mxu0 0.0
  %861 = vmatpush1.msra.mxu0 0.0
  %862 = vmatprep.subr.mxu0 0.0
  %863 = vmatpush1.msra.mxu0 0.0
  %864 = vmatprep.subr.mxu0 0.0
  %865 = vmatpush1.msra.mxu0 0.0
  %866 = vmatprep.subr.mxu0 0.0
  %867 = vmatpush1.msra.mxu0 0.0
  %868 = vmatprep.subr.mxu0 0.0
  %869 = vmatpush1.msra.mxu0 0.0
  %870 = vmatprep.subr.mxu0 0.0
  %871 = vmatpush1.msra.mxu0 0.0
  %872 = vmatprep.subr.mxu0 0.0
  %873 = vmatpush1.msra.mxu0 0.0
  %874 = vmatprep.subr.mxu0 0.0
  %875 = vmatpush1.msra.mxu0 0.0
  %876 = vmatprep.subr.mxu0 0.0
  %877 = vmatpush1.msra.mxu0 0.0
  %878 = vmatprep.subr.mxu0 0.0
  %879 = vmatpush1.msra.mxu0 0.0
  %880 = vmatprep.subr.mxu0 0.0
  %881 = vmatpush1.msra.mxu0 0.0
  %882 = vmatprep.subr.mxu0 0.0
  %883 = vmatpush1.msra.mxu0 0.0
  %884 = vmatprep.mubr.f32.mxu0 0.0
  %885 = vmatmul.mubr.f32.gmra.mrb[0].mxu0 %v818
  %v886 = vpop.f32.mrb[0].mxu0
  %v887 = vadd.f32 0.0, %v886
  %v888 = vpop.f32.mrb[0].mxu0
  %889 = vdwg.mxu0
  %v891 = vsel %vm60, %v811, 0
  %893 = vmatprep.subr.mxu0 0.0
  %894 = vmatpush1.msra.mxu0 %v810
  %895 = vmatprep.subr.mxu0 0.0
  %896 = vmatpush1.msra.mxu0 0.0
  %897 = vmatprep.subr.mxu0 0.0
  %898 = vmatpush1.msra.mxu0 0.0
  %899 = vmatprep.subr.mxu0 0.0
  %900 = vmatpush1.msra.mxu0 0.0
  %901 = vmatprep.subr.mxu0 0.0
  %902 = vmatpush1.msra.mxu0 0.0
  %903 = vmatprep.subr.mxu0 0.0
  %904 = vmatpush1.msra.mxu0 0.0
  %905 = vmatprep.subr.mxu0 0.0
  %906 = vmatpush1.msra.mxu0 0.0
  %907 = vmatprep.subr.mxu0 0.0
  %908 = vmatpush1.msra.mxu0 0.0
  %909 = vmatprep.subr.mxu0 0.0
  %910 = vmatpush1.msra.mxu0 0.0
  %911 = vmatprep.subr.mxu0 0.0
  %912 = vmatpush1.msra.mxu0 0.0
  %913 = vmatprep.subr.mxu0 0.0
  %914 = vmatpush1.msra.mxu0 0.0
  %915 = vmatprep.subr.mxu0 0.0
  %916 = vmatpush1.msra.mxu0 0.0
  %917 = vmatprep.subr.mxu0 0.0
  %918 = vmatpush1.msra.mxu0 0.0
  %919 = vmatprep.subr.mxu0 0.0
  %920 = vmatpush1.msra.mxu0 0.0
  %921 = vmatprep.subr.mxu0 0.0
  %922 = vmatpush1.msra.mxu0 0.0
  %923 = vmatprep.subr.mxu0 0.0
  %924 = vmatpush1.msra.mxu0 0.0
  %925 = vmatprep.subr.mxu0 0.0
  %926 = vmatpush1.msra.mxu0 0.0
  %927 = vmatprep.subr.mxu0 0.0
  %928 = vmatpush1.msra.mxu0 0.0
  %929 = vmatprep.subr.mxu0 0.0
  %930 = vmatpush1.msra.mxu0 0.0
  %931 = vmatprep.subr.mxu0 0.0
  %932 = vmatpush1.msra.mxu0 0.0
  %933 = vmatprep.subr.mxu0 0.0
  %934 = vmatpush1.msra.mxu0 0.0
  %935 = vmatprep.subr.mxu0 0.0
  %936 = vmatpush1.msra.mxu0 0.0
  %937 = vmatprep.subr.mxu0 0.0
  %938 = vmatpush1.msra.mxu0 0.0
  %939 = vmatprep.subr.mxu0 0.0
  %940 = vmatpush1.msra.mxu0 0.0
  %941 = vmatprep.subr.mxu0 0.0
  %942 = vmatpush1.msra.mxu0 0.0
  %943 = vmatprep.subr.mxu0 0.0
  %944 = vmatpush1.msra.mxu0 0.0
  %945 = vmatprep.subr.mxu0 0.0
  %946 = vmatpush1.msra.mxu0 0.0
  %947 = vmatprep.subr.mxu0 0.0
  %948 = vmatpush1.msra.mxu0 0.0
  %949 = vmatprep.subr.mxu0 0.0
  %950 = vmatpush1.msra.mxu0 0.0
  %951 = vmatprep.subr.mxu0 0.0
  %952 = vmatpush1.msra.mxu0 0.0
  %953 = vmatprep.subr.mxu0 0.0
  %954 = vmatpush1.msra.mxu0 0.0
  %955 = vmatprep.subr.mxu0 0.0
  %956 = vmatpush1.msra.mxu0 0.0
  %957 = vmatprep.mubr.f32.mxu0 0.0
  %958 = vmatmul.mubr.f32.gmra.mrb[0].mxu0 %v891
  %v959 = vpop.f32.mrb[0].mxu0
  %v960 = vadd.f32 %v887, %v959
  %v961 = vpop.f32.mrb[0].mxu0
  %962 = vdwg.mxu0
  %v963 = vmul.f32 %v809, %v213
  %v964 = vld [vmem:[%s216] sm:$0xff]
  %966 = vrot.lane.b32.xlu0 %v963, 126
  %v967 = vpop.permute.xlu0 %966
  %v970 = vsel %vm60, %v964, 0
  %972 = vmatprep.subr.mxu0 0.0
  %973 = vmatpush1.msra.mxu0 %v967
  %974 = vmatprep.subr.mxu0 0.0
  %975 = vmatpush1.msra.mxu0 0.0
  %976 = vmatprep.subr.mxu0 0.0
  %977 = vmatpush1.msra.mxu0 0.0
  %978 = vmatprep.subr.mxu0 0.0
  %979 = vmatpush1.msra.mxu0 0.0
  %980 = vmatprep.subr.mxu0 0.0
  %981 = vmatpush1.msra.mxu0 0.0
  %982 = vmatprep.subr.mxu0 0.0
  %983 = vmatpush1.msra.mxu0 0.0
  %984 = vmatprep.subr.mxu0 0.0
  %985 = vmatpush1.msra.mxu0 0.0
  %986 = vmatprep.subr.mxu0 0.0
  %987 = vmatpush1.msra.mxu0 0.0
  %988 = vmatprep.subr.mxu0 0.0
  %989 = vmatpush1.msra.mxu0 0.0
  %990 = vmatprep.subr.mxu0 0.0
  %991 = vmatpush1.msra.mxu0 0.0
  %992 = vmatprep.subr.mxu0 0.0
  %993 = vmatpush1.msra.mxu0 0.0
  %994 = vmatprep.subr.mxu0 0.0
  %995 = vmatpush1.msra.mxu0 0.0
  %996 = vmatprep.subr.mxu0 0.0
  %997 = vmatpush1.msra.mxu0 0.0
  %998 = vmatprep.subr.mxu0 0.0
  %999 = vmatpush1.msra.mxu0 0.0
  %1000 = vmatprep.subr.mxu0 0.0
  %1001 = vmatpush1.msra.mxu0 0.0
  %1002 = vmatprep.subr.mxu0 0.0
  %1003 = vmatpush1.msra.mxu0 0.0
  %1004 = vmatprep.subr.mxu0 0.0
  %1005 = vmatpush1.msra.mxu0 0.0
  %1006 = vmatprep.subr.mxu0 0.0
  %1007 = vmatpush1.msra.mxu0 0.0
  %1008 = vmatprep.subr.mxu0 0.0
  %1009 = vmatpush1.msra.mxu0 0.0
  %1010 = vmatprep.subr.mxu0 0.0
  %1011 = vmatpush1.msra.mxu0 0.0
  %1012 = vmatprep.subr.mxu0 0.0
  %1013 = vmatpush1.msra.mxu0 0.0
  %1014 = vmatprep.subr.mxu0 0.0
  %1015 = vmatpush1.msra.mxu0 0.0
  %1016 = vmatprep.subr.mxu0 0.0
  %1017 = vmatpush1.msra.mxu0 0.0
  %1018 = vmatprep.subr.mxu0 0.0
  %1019 = vmatpush1.msra.mxu0 0.0
  %1020 = vmatprep.subr.mxu0 0.0
  %1021 = vmatpush1.msra.mxu0 0.0
  %1022 = vmatprep.subr.mxu0 0.0
  %1023 = vmatpush1.msra.mxu0 0.0
  %1024 = vmatprep.subr.mxu0 0.0
  %1025 = vmatpush1.msra.mxu0 0.0
  %1026 = vmatprep.subr.mxu0 0.0
  %1027 = vmatpush1.msra.mxu0 0.0
  %1028 = vmatprep.subr.mxu0 0.0
  %1029 = vmatpush1.msra.mxu0 0.0
  %1030 = vmatprep.subr.mxu0 0.0
  %1031 = vmatpush1.msra.mxu0 0.0
  %1032 = vmatprep.subr.mxu0 0.0
  %1033 = vmatpush1.msra.mxu0 0.0
  %1034 = vmatprep.subr.mxu0 0.0
  %1035 = vmatpush1.msra.mxu0 0.0
  %1036 = vmatprep.mubr.f32.mxu0 0.0
  %1037 = vmatmul.mubr.f32.gmra.mrb[0].mxu0 %v970
  %v1038 = vpop.f32.mrb[0].mxu0
  %v1039 = vadd.f32 0.0, %v1038
  %v1040 = vpop.f32.mrb[0].mxu0
  %1041 = vdwg.mxu0
  %v1042 = vadd.f32 %v960, %v1039
  %v1043 = vmul.f32 %v809, %v298
  %v1044 = vld [vmem:[%s301] sm:$0xff]
  %1046 = vrot.lane.b32.xlu0 %v1043, 121
  %v1047 = vpop.permute.xlu0 %1046
  %v1050 = vsel %vm60, %v1044, 0
  %1052 = vmatprep.subr.mxu0 0.0
  %1053 = vmatpush1.msra.mxu0 %v1047
  %1054 = vmatprep.subr.mxu0 0.0
  %1055 = vmatpush1.msra.mxu0 0.0
  %1056 = vmatprep.subr.mxu0 0.0
  %1057 = vmatpush1.msra.mxu0 0.0
  %1058 = vmatprep.subr.mxu0 0.0
  %1059 = vmatpush1.msra.mxu0 0.0
  %1060 = vmatprep.subr.mxu0 0.0
  %1061 = vmatpush1.msra.mxu0 0.0
  %1062 = vmatprep.subr.mxu0 0.0
  %1063 = vmatpush1.msra.mxu0 0.0
  %1064 = vmatprep.subr.mxu0 0.0
  %1065 = vmatpush1.msra.mxu0 0.0
  %1066 = vmatprep.subr.mxu0 0.0
  %1067 = vmatpush1.msra.mxu0 0.0
  %1068 = vmatprep.subr.mxu0 0.0
  %1069 = vmatpush1.msra.mxu0 0.0
  %1070 = vmatprep.subr.mxu0 0.0
  %1071 = vmatpush1.msra.mxu0 0.0
  %1072 = vmatprep.subr.mxu0 0.0
  %1073 = vmatpush1.msra.mxu0 0.0
  %1074 = vmatprep.subr.mxu0 0.0
  %1075 = vmatpush1.msra.mxu0 0.0
  %1076 = vmatprep.subr.mxu0 0.0
  %1077 = vmatpush1.msra.mxu0 0.0
  %1078 = vmatprep.subr.mxu0 0.0
  %1079 = vmatpush1.msra.mxu0 0.0
  %1080 = vmatprep.subr.mxu0 0.0
  %1081 = vmatpush1.msra.mxu0 0.0
  %1082 = vmatprep.subr.mxu0 0.0
  %1083 = vmatpush1.msra.mxu0 0.0
  %1084 = vmatprep.subr.mxu0 0.0
  %1085 = vmatpush1.msra.mxu0 0.0
  %1086 = vmatprep.subr.mxu0 0.0
  %1087 = vmatpush1.msra.mxu0 0.0
  %1088 = vmatprep.subr.mxu0 0.0
  %1089 = vmatpush1.msra.mxu0 0.0
  %1090 = vmatprep.subr.mxu0 0.0
  %1091 = vmatpush1.msra.mxu0 0.0
  %1092 = vmatprep.subr.mxu0 0.0
  %1093 = vmatpush1.msra.mxu0 0.0
  %1094 = vmatprep.subr.mxu0 0.0
  %1095 = vmatpush1.msra.mxu0 0.0
  %1096 = vmatprep.subr.mxu0 0.0
  %1097 = vmatpush1.msra.mxu0 0.0
  %1098 = vmatprep.subr.mxu0 0.0
  %1099 = vmatpush1.msra.mxu0 0.0
  %1100 = vmatprep.subr.mxu0 0.0
  %1101 = vmatpush1.msra.mxu0 0.0
  %1102 = vmatprep.subr.mxu0 0.0
  %1103 = vmatpush1.msra.mxu0 0.0
  %1104 = vmatprep.subr.mxu0 0.0
  %1105 = vmatpush1.msra.mxu0 0.0
  %1106 = vmatprep.subr.mxu0 0.0
  %1107 = vmatpush1.msra.mxu0 0.0
  %1108 = vmatprep.subr.mxu0 0.0
  %1109 = vmatpush1.msra.mxu0 0.0
  %1110 = vmatprep.subr.mxu0 0.0
  %1111 = vmatpush1.msra.mxu0 0.0
  %1112 = vmatprep.subr.mxu0 0.0
  %1113 = vmatpush1.msra.mxu0 0.0
  %1114 = vmatprep.subr.mxu0 0.0
  %1115 = vmatpush1.msra.mxu0 0.0
  %1116 = vmatprep.mubr.f32.mxu0 0.0
  %1117 = vmatmul.mubr.f32.gmra.mrb[0].mxu0 %v1050
  %v1118 = vpop.f32.mrb[0].mxu0
  %v1119 = vadd.f32 0.0, %v1118
  %v1120 = vpop.f32.mrb[0].mxu0
  %1121 = vdwg.mxu0
  %v1122 = vadd.f32 %v1042, %v1119
  %v1123 = vld [vmem:[%s381] sm:$0xff]
  %1124 = vrot.lane.b32.xlu0 %v809, 120
  %v1125 = vpop.permute.xlu0 %1124
  %v1128 = vsel %vm60, %v1123, 0
  %1130 = vmatprep.subr.mxu0 0.0
  %1131 = vmatpush1.msra.mxu0 %v1125
  %1132 = vmatprep.subr.mxu0 0.0
  %1133 = vmatpush1.msra.mxu0 0.0
  %1134 = vmatprep.subr.mxu0 0.0
  %1135 = vmatpush1.msra.mxu0 0.0
  %1136 = vmatprep.subr.mxu0 0.0
  %1137 = vmatpush1.msra.mxu0 0.0
  %1138 = vmatprep.subr.mxu0 0.0
  %1139 = vmatpush1.msra.mxu0 0.0
  %1140 = vmatprep.subr.mxu0 0.0
  %1141 = vmatpush1.msra.mxu0 0.0
  %1142 = vmatprep.subr.mxu0 0.0
  %1143 = vmatpush1.msra.mxu0 0.0
  %1144 = vmatprep.subr.mxu0 0.0
  %1145 = vmatpush1.msra.mxu0 0.0
  %1146 = vmatprep.subr.mxu0 0.0
  %1147 = vmatpush1.msra.mxu0 0.0
  %1148 = vmatprep.subr.mxu0 0.0
  %1149 = vmatpush1.msra.mxu0 0.0
  %1150 = vmatprep.subr.mxu0 0.0
  %1151 = vmatpush1.msra.mxu0 0.0
  %1152 = vmatprep.subr.mxu0 0.0
  %1153 = vmatpush1.msra.mxu0 0.0
  %1154 = vmatprep.subr.mxu0 0.0
  %1155 = vmatpush1.msra.mxu0 0.0
  %1156 = vmatprep.subr.mxu0 0.0
  %1157 = vmatpush1.msra.mxu0 0.0
  %1158 = vmatprep.subr.mxu0 0.0
  %1159 = vmatpush1.msra.mxu0 0.0
  %1160 = vmatprep.subr.mxu0 0.0
  %1161 = vmatpush1.msra.mxu0 0.0
  %1162 = vmatprep.subr.mxu0 0.0
  %1163 = vmatpush1.msra.mxu0 0.0
  %1164 = vmatprep.subr.mxu0 0.0
  %1165 = vmatpush1.msra.mxu0 0.0
  %1166 = vmatprep.subr.mxu0 0.0
  %1167 = vmatpush1.msra.mxu0 0.0
  %1168 = vmatprep.subr.mxu0 0.0
  %1169 = vmatpush1.msra.mxu0 0.0
  %1170 = vmatprep.subr.mxu0 0.0
  %1171 = vmatpush1.msra.mxu0 0.0
  %1172 = vmatprep.subr.mxu0 0.0
  %1173 = vmatpush1.msra.mxu0 0.0
  %1174 = vmatprep.subr.mxu0 0.0
  %1175 = vmatpush1.msra.mxu0 0.0
  %1176 = vmatprep.subr.mxu0 0.0
  %1177 = vmatpush1.msra.mxu0 0.0
  %1178 = vmatprep.subr.mxu0 0.0
  %1179 = vmatpush1.msra.mxu0 0.0
  %1180 = vmatprep.subr.mxu0 0.0
  %1181 = vmatpush1.msra.mxu0 0.0
  %1182 = vmatprep.subr.mxu0 0.0
  %1183 = vmatpush1.msra.mxu0 0.0
  %1184 = vmatprep.subr.mxu0 0.0
  %1185 = vmatpush1.msra.mxu0 0.0
  %1186 = vmatprep.subr.mxu0 0.0
  %1187 = vmatpush1.msra.mxu0 0.0
  %1188 = vmatprep.subr.mxu0 0.0
  %1189 = vmatpush1.msra.mxu0 0.0
  %1190 = vmatprep.subr.mxu0 0.0
  %1191 = vmatpush1.msra.mxu0 0.0
  %1192 = vmatprep.subr.mxu0 0.0
  %1193 = vmatpush1.msra.mxu0 0.0
  %1194 = vmatprep.mubr.f32.mxu0 0.0
  %1195 = vmatmul.mubr.f32.gmra.mrb[0].mxu0 %v1128
  %v1196 = vpop.f32.mrb[0].mxu0
  %v1197 = vadd.f32 0.0, %v1196
  %v1198 = vpop.f32.mrb[0].mxu0
  %1199 = vdwg.mxu0
  %v1200 = vadd.f32 %v1122, %v1197
  %v1201 = vmul.f32 %v809, %v461
  %v1202 = vld [vmem:[%s464] sm:$0xff]
  %1204 = vrot.lane.b32.xlu0 %v1201, 119
  %v1205 = vpop.permute.xlu0 %1204
  %v1208 = vsel %vm60, %v1202, 0
  %1210 = vmatprep.subr.mxu0 0.0
  %1211 = vmatpush1.msra.mxu0 %v1205
  %1212 = vmatprep.subr.mxu0 0.0
  %1213 = vmatpush1.msra.mxu0 0.0
  %1214 = vmatprep.subr.mxu0 0.0
  %1215 = vmatpush1.msra.mxu0 0.0
  %1216 = vmatprep.subr.mxu0 0.0
  %1217 = vmatpush1.msra.mxu0 0.0
  %1218 = vmatprep.subr.mxu0 0.0
  %1219 = vmatpush1.msra.mxu0 0.0
  %1220 = vmatprep.subr.mxu0 0.0
  %1221 = vmatpush1.msra.mxu0 0.0
  %1222 = vmatprep.subr.mxu0 0.0
  %1223 = vmatpush1.msra.mxu0 0.0
  %1224 = vmatprep.subr.mxu0 0.0
  %1225 = vmatpush1.msra.mxu0 0.0
  %1226 = vmatprep.subr.mxu0 0.0
  %1227 = vmatpush1.msra.mxu0 0.0
  %1228 = vmatprep.subr.mxu0 0.0
  %1229 = vmatpush1.msra.mxu0 0.0
  %1230 = vmatprep.subr.mxu0 0.0
  %1231 = vmatpush1.msra.mxu0 0.0
  %1232 = vmatprep.subr.mxu0 0.0
  %1233 = vmatpush1.msra.mxu0 0.0
  %1234 = vmatprep.subr.mxu0 0.0
  %1235 = vmatpush1.msra.mxu0 0.0
  %1236 = vmatprep.subr.mxu0 0.0
  %1237 = vmatpush1.msra.mxu0 0.0
  %1238 = vmatprep.subr.mxu0 0.0
  %1239 = vmatpush1.msra.mxu0 0.0
  %1240 = vmatprep.subr.mxu0 0.0
  %1241 = vmatpush1.msra.mxu0 0.0
  %1242 = vmatprep.subr.mxu0 0.0
  %1243 = vmatpush1.msra.mxu0 0.0
  %1244 = vmatprep.subr.mxu0 0.0
  %1245 = vmatpush1.msra.mxu0 0.0
  %1246 = vmatprep.subr.mxu0 0.0
  %1247 = vmatpush1.msra.mxu0 0.0
  %1248 = vmatprep.subr.mxu0 0.0
  %1249 = vmatpush1.msra.mxu0 0.0
  %1250 = vmatprep.subr.mxu0 0.0
  %1251 = vmatpush1.msra.mxu0 0.0
  %1252 = vmatprep.subr.mxu0 0.0
  %1253 = vmatpush1.msra.mxu0 0.0
  %1254 = vmatprep.subr.mxu0 0.0
  %1255 = vmatpush1.msra.mxu0 0.0
  %1256 = vmatprep.subr.mxu0 0.0
  %1257 = vmatpush1.msra.mxu0 0.0
  %1258 = vmatprep.subr.mxu0 0.0
  %1259 = vmatpush1.msra.mxu0 0.0
  %1260 = vmatprep.subr.mxu0 0.0
  %1261 = vmatpush1.msra.mxu0 0.0
  %1262 = vmatprep.subr.mxu0 0.0
  %1263 = vmatpush1.msra.mxu0 0.0
  %1264 = vmatprep.subr.mxu0 0.0
  %1265 = vmatpush1.msra.mxu0 0.0
  %1266 = vmatprep.subr.mxu0 0.0
  %1267 = vmatpush1.msra.mxu0 0.0
  %1268 = vmatprep.subr.mxu0 0.0
  %1269 = vmatpush1.msra.mxu0 0.0
  %1270 = vmatprep.subr.mxu0 0.0
  %1271 = vmatpush1.msra.mxu0 0.0
  %1272 = vmatprep.subr.mxu0 0.0
  %1273 = vmatpush1.msra.mxu0 0.0
  %1274 = vmatprep.mubr.f32.mxu0 0.0
  %1275 = vmatmul.mubr.f32.gmra.mrb[0].mxu0 %v1208
  %v1276 = vpop.f32.mrb[0].mxu0
  %v1277 = vadd.f32 0.0, %v1276
  %v1278 = vpop.f32.mrb[0].mxu0
  %1279 = vdwg.mxu0
  %v1280 = vadd.f32 %v1200, %v1277
  %v1281 = vmul.f32 %v809, %v545
  %v1282 = vld [vmem:[%s548] sm:$0xff]
  %1284 = vrot.lane.b32.xlu0 %v1281, 114
  %v1285 = vpop.permute.xlu0 %1284
  %v1288 = vsel %vm60, %v1282, 0
  %1290 = vmatprep.subr.mxu0 0.0
  %1291 = vmatpush1.msra.mxu0 %v1285
  %1292 = vmatprep.subr.mxu0 0.0
  %1293 = vmatpush1.msra.mxu0 0.0
  %1294 = vmatprep.subr.mxu0 0.0
  %1295 = vmatpush1.msra.mxu0 0.0
  %1296 = vmatprep.subr.mxu0 0.0
  %1297 = vmatpush1.msra.mxu0 0.0
  %1298 = vmatprep.subr.mxu0 0.0
  %1299 = vmatpush1.msra.mxu0 0.0
  %1300 = vmatprep.subr.mxu0 0.0
  %1301 = vmatpush1.msra.mxu0 0.0
  %1302 = vmatprep.subr.mxu0 0.0
  %1303 = vmatpush1.msra.mxu0 0.0
  %1304 = vmatprep.subr.mxu0 0.0
  %1305 = vmatpush1.msra.mxu0 0.0
  %1306 = vmatprep.subr.mxu0 0.0
  %1307 = vmatpush1.msra.mxu0 0.0
  %1308 = vmatprep.subr.mxu0 0.0
  %1309 = vmatpush1.msra.mxu0 0.0
  %1310 = vmatprep.subr.mxu0 0.0
  %1311 = vmatpush1.msra.mxu0 0.0
  %1312 = vmatprep.subr.mxu0 0.0
  %1313 = vmatpush1.msra.mxu0 0.0
  %1314 = vmatprep.subr.mxu0 0.0
  %1315 = vmatpush1.msra.mxu0 0.0
  %1316 = vmatprep.subr.mxu0 0.0
  %1317 = vmatpush1.msra.mxu0 0.0
  %1318 = vmatprep.subr.mxu0 0.0
  %1319 = vmatpush1.msra.mxu0 0.0
  %1320 = vmatprep.subr.mxu0 0.0
  %1321 = vmatpush1.msra.mxu0 0.0
  %1322 = vmatprep.subr.mxu0 0.0
  %1323 = vmatpush1.msra.mxu0 0.0
  %1324 = vmatprep.subr.mxu0 0.0
  %1325 = vmatpush1.msra.mxu0 0.0
  %1326 = vmatprep.subr.mxu0 0.0
  %1327 = vmatpush1.msra.mxu0 0.0
  %1328 = vmatprep.subr.mxu0 0.0
  %1329 = vmatpush1.msra.mxu0 0.0
  %1330 = vmatprep.subr.mxu0 0.0
  %1331 = vmatpush1.msra.mxu0 0.0
  %1332 = vmatprep.subr.mxu0 0.0
  %1333 = vmatpush1.msra.mxu0 0.0
  %1334 = vmatprep.subr.mxu0 0.0
  %1335 = vmatpush1.msra.mxu0 0.0
  %1336 = vmatprep.subr.mxu0 0.0
  %1337 = vmatpush1.msra.mxu0 0.0
  %1338 = vmatprep.subr.mxu0 0.0
  %1339 = vmatpush1.msra.mxu0 0.0
  %1340 = vmatprep.subr.mxu0 0.0
  %1341 = vmatpush1.msra.mxu0 0.0
  %1342 = vmatprep.subr.mxu0 0.0
  %1343 = vmatpush1.msra.mxu0 0.0
  %1344 = vmatprep.subr.mxu0 0.0
  %1345 = vmatpush1.msra.mxu0 0.0
  %1346 = vmatprep.subr.mxu0 0.0
  %1347 = vmatpush1.msra.mxu0 0.0
  %1348 = vmatprep.subr.mxu0 0.0
  %1349 = vmatpush1.msra.mxu0 0.0
  %1350 = vmatprep.subr.mxu0 0.0
  %1351 = vmatpush1.msra.mxu0 0.0
  %1352 = vmatprep.subr.mxu0 0.0
  %1353 = vmatpush1.msra.mxu0 0.0
  %1354 = vmatprep.mubr.f32.mxu0 0.0
  %1355 = vmatmul.mubr.f32.gmra.mrb[0].mxu0 %v1288
  %v1356 = vpop.f32.mrb[0].mxu0
  %v1357 = vadd.f32 0.0, %v1356
  %v1358 = vpop.f32.mrb[0].mxu0
  %1359 = vdwg.mxu0
  %v1360 = vadd.f32 %v1280, %v1357
  %v1361 = vld [vmem:[%s628] sm:$0xff]
  %1362 = vrot.lane.b32.xlu0 %v809, 113
  %v1363 = vpop.permute.xlu0 %1362
  %v1366 = vsel %vm60, %v1361, 0
  %1368 = vmatprep.subr.mxu0 0.0
  %1369 = vmatpush1.msra.mxu0 %v1363
  %1370 = vmatprep.subr.mxu0 0.0
  %1371 = vmatpush1.msra.mxu0 0.0
  %1372 = vmatprep.subr.mxu0 0.0
  %1373 = vmatpush1.msra.mxu0 0.0
  %1374 = vmatprep.subr.mxu0 0.0
  %1375 = vmatpush1.msra.mxu0 0.0
  %1376 = vmatprep.subr.mxu0 0.0
  %1377 = vmatpush1.msra.mxu0 0.0
  %1378 = vmatprep.subr.mxu0 0.0
  %1379 = vmatpush1.msra.mxu0 0.0
  %1380 = vmatprep.subr.mxu0 0.0
  %1381 = vmatpush1.msra.mxu0 0.0
  %1382 = vmatprep.subr.mxu0 0.0
  %1383 = vmatpush1.msra.mxu0 0.0
  %1384 = vmatprep.subr.mxu0 0.0
  %1385 = vmatpush1.msra.mxu0 0.0
  %1386 = vmatprep.subr.mxu0 0.0
  %1387 = vmatpush1.msra.mxu0 0.0
  %1388 = vmatprep.subr.mxu0 0.0
  %1389 = vmatpush1.msra.mxu0 0.0
  %1390 = vmatprep.subr.mxu0 0.0
  %1391 = vmatpush1.msra.mxu0 0.0
  %1392 = vmatprep.subr.mxu0 0.0
  %1393 = vmatpush1.msra.mxu0 0.0
  %1394 = vmatprep.subr.mxu0 0.0
  %1395 = vmatpush1.msra.mxu0 0.0
  %1396 = vmatprep.subr.mxu0 0.0
  %1397 = vmatpush1.msra.mxu0 0.0
  %1398 = vmatprep.subr.mxu0 0.0
  %1399 = vmatpush1.msra.mxu0 0.0
  %1400 = vmatprep.subr.mxu0 0.0
  %1401 = vmatpush1.msra.mxu0 0.0
  %1402 = vmatprep.subr.mxu0 0.0
  %1403 = vmatpush1.msra.mxu0 0.0
  %1404 = vmatprep.subr.mxu0 0.0
  %1405 = vmatpush1.msra.mxu0 0.0
  %1406 = vmatprep.subr.mxu0 0.0
  %1407 = vmatpush1.msra.mxu0 0.0
  %1408 = vmatprep.subr.mxu0 0.0
  %1409 = vmatpush1.msra.mxu0 0.0
  %1410 = vmatprep.subr.mxu0 0.0
  %1411 = vmatpush1.msra.mxu0 0.0
  %1412 = vmatprep.subr.mxu0 0.0
  %1413 = vmatpush1.msra.mxu0 0.0
  %1414 = vmatprep.subr.mxu0 0.0
  %1415 = vmatpush1.msra.mxu0 0.0
  %1416 = vmatprep.subr.mxu0 0.0
  %1417 = vmatpush1.msra.mxu0 0.0
  %1418 = vmatprep.subr.mxu0 0.0
  %1419 = vmatpush1.msra.mxu0 0.0
  %1420 = vmatprep.subr.mxu0 0.0
  %1421 = vmatpush1.msra.mxu0 0.0
  %1422 = vmatprep.subr.mxu0 0.0
  %1423 = vmatpush1.msra.mxu0 0.0
  %1424 = vmatprep.subr.mxu0 0.0
  %1425 = vmatpush1.msra.mxu0 0.0
  %1426 = vmatprep.subr.mxu0 0.0
  %1427 = vmatpush1.msra.mxu0 0.0
  %1428 = vmatprep.subr.mxu0 0.0
  %1429 = vmatpush1.msra.mxu0 0.0
  %1430 = vmatprep.subr.mxu0 0.0
  %1431 = vmatpush1.msra.mxu0 0.0
  %1432 = vmatprep.mubr.f32.mxu0 0.0
  %1433 = vmatmul.mubr.f32.gmra.mrb[0].mxu0 %v1366
  %v1434 = vpop.f32.mrb[0].mxu0
  %v1435 = vadd.f32 0.0, %v1434
  %v1436 = vpop.f32.mrb[0].mxu0
  %1437 = vdwg.mxu0
  %v1438 = vadd.f32 %v1360, %v1435
  %v1439 = vmul.f32 %v809, %v708
  %v1440 = vld [vmem:[%s711] sm:$0xff]
  %1442 = vrot.lane.b32.xlu0 %v1439, 112
  %v1443 = vpop.permute.xlu0 %1442
  %v1446 = vsel %vm60, %v1440, 0
  %1448 = vmatprep.subr.mxu0 0.0
  %1449 = vmatpush1.msra.mxu0 %v1443
  %1450 = vmatprep.subr.mxu0 0.0
  %1451 = vmatpush1.msra.mxu0 0.0
  %1452 = vmatprep.subr.mxu0 0.0
  %1453 = vmatpush1.msra.mxu0 0.0
  %1454 = vmatprep.subr.mxu0 0.0
  %1455 = vmatpush1.msra.mxu0 0.0
  %1456 = vmatprep.subr.mxu0 0.0
  %1457 = vmatpush1.msra.mxu0 0.0
  %1458 = vmatprep.subr.mxu0 0.0
  %1459 = vmatpush1.msra.mxu0 0.0
  %1460 = vmatprep.subr.mxu0 0.0
  %1461 = vmatpush1.msra.mxu0 0.0
  %1462 = vmatprep.subr.mxu0 0.0
  %1463 = vmatpush1.msra.mxu0 0.0
  %1464 = vmatprep.subr.mxu0 0.0
  %1465 = vmatpush1.msra.mxu0 0.0
  %1466 = vmatprep.subr.mxu0 0.0
  %1467 = vmatpush1.msra.mxu0 0.0
  %1468 = vmatprep.subr.mxu0 0.0
  %1469 = vmatpush1.msra.mxu0 0.0
  %1470 = vmatprep.subr.mxu0 0.0
  %1471 = vmatpush1.msra.mxu0 0.0
  %1472 = vmatprep.subr.mxu0 0.0
  %1473 = vmatpush1.msra.mxu0 0.0
  %1474 = vmatprep.subr.mxu0 0.0
  %1475 = vmatpush1.msra.mxu0 0.0
  %1476 = vmatprep.subr.mxu0 0.0
  %1477 = vmatpush1.msra.mxu0 0.0
  %1478 = vmatprep.subr.mxu0 0.0
  %1479 = vmatpush1.msra.mxu0 0.0
  %1480 = vmatprep.subr.mxu0 0.0
  %1481 = vmatpush1.msra.mxu0 0.0
  %1482 = vmatprep.subr.mxu0 0.0
  %1483 = vmatpush1.msra.mxu0 0.0
  %1484 = vmatprep.subr.mxu0 0.0
  %1485 = vmatpush1.msra.mxu0 0.0
  %1486 = vmatprep.subr.mxu0 0.0
  %1487 = vmatpush1.msra.mxu0 0.0
  %1488 = vmatprep.subr.mxu0 0.0
  %1489 = vmatpush1.msra.mxu0 0.0
  %1490 = vmatprep.subr.mxu0 0.0
  %1491 = vmatpush1.msra.mxu0 0.0
  %1492 = vmatprep.subr.mxu0 0.0
  %1493 = vmatpush1.msra.mxu0 0.0
  %1494 = vmatprep.subr.mxu0 0.0
  %1495 = vmatpush1.msra.mxu0 0.0
  %1496 = vmatprep.subr.mxu0 0.0
  %1497 = vmatpush1.msra.mxu0 0.0
  %1498 = vmatprep.subr.mxu0 0.0
  %1499 = vmatpush1.msra.mxu0 0.0
  %1500 = vmatprep.subr.mxu0 0.0
  %1501 = vmatpush1.msra.mxu0 0.0
  %1502 = vmatprep.subr.mxu0 0.0
  %1503 = vmatpush1.msra.mxu0 0.0
  %1504 = vmatprep.subr.mxu0 0.0
  %1505 = vmatpush1.msra.mxu0 0.0
  %1506 = vmatprep.subr.mxu0 0.0
  %1507 = vmatpush1.msra.mxu0 0.0
  %1508 = vmatprep.subr.mxu0 0.0
  %1509 = vmatpush1.msra.mxu0 0.0
  %1510 = vmatprep.subr.mxu0 0.0
  %1511 = vmatpush1.msra.mxu0 0.0
  %1512 = vmatprep.mubr.f32.mxu0 0.0
  %1513 = vmatmul.mubr.f32.gmra.mrb[0].mxu0 %v1446
  %v1514 = vpop.f32.mrb[0].mxu0
  %v1515 = vadd.f32 0.0, %v1514
  %v1516 = vpop.f32.mrb[0].mxu0
  %1517 = vdwg.mxu0
  %v1518 = vadd.f32 %v1438, %v1515
  %v1519 = vsel %vm791, %v1518, 0.0
  %1520 = vadd.xlane.f32.xlu0 %v1519
  %v1521 = vpop.xlane.xlu0 %1520
  %v1522 = vadd.f32 %v795, %v1521
  %v1523 = vmul.f32 %v1518, %v1518
  %v1524 = vsel %vm791, %v1523, 0.0
  %1525 = vadd.xlane.f32.xlu0 %v1524
  %v1526 = vpop.xlane.xlu0 %1525
  %v1527 = vadd.f32 %v800, %v1526
  %v1528 = vld [vmem:[%s3] sm:$0xff]
  %v1529 = vld [vmem:[%s4] sm:$0xff]
  %v1530 = vmul.f32 %v1522, 0.010204081
  %v1531 = vmul.f32 %v1527, 0.010204081
  %v1532 = vmul.f32 %v1530, %v1530
  %v1533 = vsub.f32 %v1531, %v1532
  %v1534 = vadd.f32 %v1533, 1e-05
  %v1535 = vrsqrt.pop %v1534
  %v1536 = vmul.f32 %v1528, %v1535
  %v1537 = vmul.f32 %v1530, %v1536
  %v1538 = vsub.f32 %v1529, %v1537
  %1540 = vset.pattern.permute.xlu0 0
  %1541 = vperm.xlu0 %1540, %v1536
  %v1542 = vpop.permute.xlu0 %1541
  %v1544 = vmul.f32 %v790, %v1542
  %1546 = vset.pattern.permute.xlu0 0
  %1547 = vperm.xlu0 %1546, %v1538
  %v1548 = vpop.permute.xlu0 %1547
  %v1550 = vadd.f32 %v1544, %v1548
  %v1551 = vmax.f32 %v1550, 0.0
  %1553 = vrot.lane.b32.xlu0 %v1551, 8
  %v1554 = vpop.permute.xlu0 %1553
  %1556 = vst.msk [vmem:[#allocation2] sm:$0xff] %vm45, %v1554
  %v1557 = vmul.f32 %v1518, %v1542
  %v1558 = vadd.f32 %v1557, %v1548
  %v1559 = vmax.f32 %v1558, 0.0
  %1561 = vrot.lane.b32.xlu0 %v1559, 8
  %v1562 = vpop.permute.xlu0 %1561
  %1564 = vst.msk [vmem:[%s807] sm:$0xff] %vm45, %v1562
  %v1565 = vld [vmem:[#allocation2] sm:$0xff]
  %v1566 = vmul.f32 %v1565, %v51
  %v1567 = vld [vmem:[%s2] sm:$0xff]
  %s1568 = scalar_lea.vmem %s2, 8
  %v1569 = vld [vmem:[%s1568] sm:$0xff]
  %1571 = vrot.lane.b32.xlu0 %v1565, 127
  %v1572 = vpop.permute.xlu0 %1571
  %v1575 = vsel %vm60, %v1569, 0
  %1577 = vmatprep.subr.mxu0 0.0
  %1578 = vmatpush1.msra.mxu0 %v1572
  %1579 = vmatprep.subr.mxu0 0.0
  %1580 = vmatpush1.msra.mxu0 0.0
  %1581 = vmatprep.subr.mxu0 0.0
  %1582 = vmatpush1.msra.mxu0 0.0
  %1583 = vmatprep.subr.mxu0 0.0
  %1584 = vmatpush1.msra.mxu0 0.0
  %1585 = vmatprep.subr.mxu0 0.0
  %1586 = vmatpush1.msra.mxu0 0.0
  %1587 = vmatprep.subr.mxu0 0.0
  %1588 = vmatpush1.msra.mxu0 0.0
  %1589 = vmatprep.subr.mxu0 0.0
  %1590 = vmatpush1.msra.mxu0 0.0
  %1591 = vmatprep.subr.mxu0 0.0
  %1592 = vmatpush1.msra.mxu0 0.0
  %1593 = vmatprep.subr.mxu0 0.0
  %1594 = vmatpush1.msra.mxu0 0.0
  %1595 = vmatprep.subr.mxu0 0.0
  %1596 = vmatpush1.msra.mxu0 0.0
  %1597 = vmatprep.subr.mxu0 0.0
  %1598 = vmatpush1.msra.mxu0 0.0
  %1599 = vmatprep.subr.mxu0 0.0
  %1600 = vmatpush1.msra.mxu0 0.0
  %1601 = vmatprep.subr.mxu0 0.0
  %1602 = vmatpush1.msra.mxu0 0.0
  %1603 = vmatprep.subr.mxu0 0.0
  %1604 = vmatpush1.msra.mxu0 0.0
  %1605 = vmatprep.subr.mxu0 0.0
  %1606 = vmatpush1.msra.mxu0 0.0
  %1607 = vmatprep.subr.mxu0 0.0
  %1608 = vmatpush1.msra.mxu0 0.0
  %1609 = vmatprep.subr.mxu0 0.0
  %1610 = vmatpush1.msra.mxu0 0.0
  %1611 = vmatprep.subr.mxu0 0.0
  %1612 = vmatpush1.msra.mxu0 0.0
  %1613 = vmatprep.subr.mxu0 0.0
  %1614 = vmatpush1.msra.mxu0 0.0
  %1615 = vmatprep.subr.mxu0 0.0
  %1616 = vmatpush1.msra.mxu0 0.0
  %1617 = vmatprep.subr.mxu0 0.0
  %1618 = vmatpush1.msra.mxu0 0.0
  %1619 = vmatprep.subr.mxu0 0.0
  %1620 = vmatpush1.msra.mxu0 0.0
  %1621 = vmatprep.subr.mxu0 0.0
  %1622 = vmatpush1.msra.mxu0 0.0
  %1623 = vmatprep.subr.mxu0 0.0
  %1624 = vmatpush1.msra.mxu0 0.0
  %1625 = vmatprep.subr.mxu0 0.0
  %1626 = vmatpush1.msra.mxu0 0.0
  %1627 = vmatprep.subr.mxu0 0.0
  %1628 = vmatpush1.msra.mxu0 0.0
  %1629 = vmatprep.subr.mxu0 0.0
  %1630 = vmatpush1.msra.mxu0 0.0
  %1631 = vmatprep.subr.mxu0 0.0
  %1632 = vmatpush1.msra.mxu0 0.0
  %1633 = vmatprep.subr.mxu0 0.0
  %1634 = vmatpush1.msra.mxu0 0.0
  %1635 = vmatprep.subr.mxu0 0.0
  %1636 = vmatpush1.msra.mxu0 0.0
  %1637 = vmatprep.subr.mxu0 0.0
  %1638 = vmatpush1.msra.mxu0 0.0
  %1639 = vmatprep.subr.mxu0 0.0
  %1640 = vmatpush1.msra.mxu0 0.0
  %1641 = vmatprep.mubr.f32.mxu0 0.0
  %1642 = vmatmul.mubr.f32.gmra.mrb[0].mxu0 %v1575
  %v1643 = vpop.f32.mrb[0].mxu0
  %v1644 = vadd.f32 0.0, %v1643
  %v1645 = vpop.f32.mrb[0].mxu0
  %1646 = vdwg.mxu0
  %v1648 = vsel %vm60, %v1567, 0
  %1650 = vmatprep.subr.mxu0 0.0
  %1651 = vmatpush1.msra.mxu0 %v1566
  %1652 = vmatprep.subr.mxu0 0.0
  %1653 = vmatpush1.msra.mxu0 0.0
  %1654 = vmatprep.subr.mxu0 0.0
  %1655 = vmatpush1.msra.mxu0 0.0
  %1656 = vmatprep.subr.mxu0 0.0
  %1657 = vmatpush1.msra.mxu0 0.0
  %1658 = vmatprep.subr.mxu0 0.0
  %1659 = vmatpush1.msra.mxu0 0.0
  %1660 = vmatprep.subr.mxu0 0.0
  %1661 = vmatpush1.msra.mxu0 0.0
  %1662 = vmatprep.subr.mxu0 0.0
  %1663 = vmatpush1.msra.mxu0 0.0
  %1664 = vmatprep.subr.mxu0 0.0
  %1665 = vmatpush1.msra.mxu0 0.0
  %1666 = vmatprep.subr.mxu0 0.0
  %1667 = vmatpush1.msra.mxu0 0.0
  %1668 = vmatprep.subr.mxu0 0.0
  %1669 = vmatpush1.msra.mxu0 0.0
  %1670 = vmatprep.subr.mxu0 0.0
  %1671 = vmatpush1.msra.mxu0 0.0
  %1672 = vmatprep.subr.mxu0 0.0
  %1673 = vmatpush1.msra.mxu0 0.0
  %1674 = vmatprep.subr.mxu0 0.0
  %1675 = vmatpush1.msra.mxu0 0.0
  %1676 = vmatprep.subr.mxu0 0.0
  %1677 = vmatpush1.msra.mxu0 0.0
  %1678 = vmatprep.subr.mxu0 0.0
  %1679 = vmatpush1.msra.mxu0 0.0
  %1680 = vmatprep.subr.mxu0 0.0
  %1681 = vmatpush1.msra.mxu0 0.0
  %1682 = vmatprep.subr.mxu0 0.0
  %1683 = vmatpush1.msra.mxu0 0.0
  %1684 = vmatprep.subr.mxu0 0.0
  %1685 = vmatpush1.msra.mxu0 0.0
  %1686 = vmatprep.subr.mxu0 0.0
  %1687 = vmatpush1.msra.mxu0 0.0
  %1688 = vmatprep.subr.mxu0 0.0
  %1689 = vmatpush1.msra.mxu0 0.0
  %1690 = vmatprep.subr.mxu0 0.0
  %1691 = vmatpush1.msra.mxu0 0.0
  %1692 = vmatprep.subr.mxu0 0.0
  %1693 = vmatpush1.msra.mxu0 0.0
  %1694 = vmatprep.subr.mxu0 0.0
  %1695 = vmatpush1.msra.mxu0 0.0
  %1696 = vmatprep.subr.mxu0 0.0
  %1697 = vmatpush1.msra.mxu0 0.0
  %1698 = vmatprep.subr.mxu0 0.0
  %1699 = vmatpush1.msra.mxu0 0.0
  %1700 = vmatprep.subr.mxu0 0.0
  %1701 = vmatpush1.msra.mxu0 0.0
  %1702 = vmatprep.subr.mxu0 0.0
  %1703 = vmatpush1.msra.mxu0 0.0
  %1704 = vmatprep.subr.mxu0 0.0
  %1705 = vmatpush1.msra.mxu0 0.0
  %1706 = vmatprep.subr.mxu0 0.0
  %1707 = vmatpush1.msra.mxu0 0.0
  %1708 = vmatprep.subr.mxu0 0.0
  %1709 = vmatpush1.msra.mxu0 0.0
  %1710 = vmatprep.subr.mxu0 0.0
  %1711 = vmatpush1.msra.mxu0 0.0
  %1712 = vmatprep.subr.mxu0 0.0
  %1713 = vmatpush1.msra.mxu0 0.0
  %1714 = vmatprep.mubr.f32.mxu0 0.0
  %1715 = vmatmul.mubr.f32.gmra.mrb[0].mxu0 %v1648
  %v1716 = vpop.f32.mrb[0].mxu0
  %v1717 = vadd.f32 %v1644, %v1716
  %v1718 = vpop.f32.mrb[0].mxu0
  %1719 = vdwg.mxu0
  %v1720 = vmul.f32 %v1565, %v213
  %s1721 = scalar_lea.vmem %s2, 16
  %v1722 = vld [vmem:[%s1721] sm:$0xff]
  %1724 = vrot.lane.b32.xlu0 %v1720, 126
  %v1725 = vpop.permute.xlu0 %1724
  %v1728 = vsel %vm60, %v1722, 0
  %1730 = vmatprep.subr.mxu0 0.0
  %1731 = vmatpush1.msra.mxu0 %v1725
  %1732 = vmatprep.subr.mxu0 0.0
  %1733 = vmatpush1.msra.mxu0 0.0
  %1734 = vmatprep.subr.mxu0 0.0
  %1735 = vmatpush1.msra.mxu0 0.0
  %1736 = vmatprep.subr.mxu0 0.0
  %1737 = vmatpush1.msra.mxu0 0.0
  %1738 = vmatprep.subr.mxu0 0.0
  %1739 = vmatpush1.msra.mxu0 0.0
  %1740 = vmatprep.subr.mxu0 0.0
  %1741 = vmatpush1.msra.mxu0 0.0
  %1742 = vmatprep.subr.mxu0 0.0
  %1743 = vmatpush1.msra.mxu0 0.0
  %1744 = vmatprep.subr.mxu0 0.0
  %1745 = vmatpush1.msra.mxu0 0.0
  %1746 = vmatprep.subr.mxu0 0.0
  %1747 = vmatpush1.msra.mxu0 0.0
  %1748 = vmatprep.subr.mxu0 0.0
  %1749 = vmatpush1.msra.mxu0 0.0
  %1750 = vmatprep.subr.mxu0 0.0
  %1751 = vmatpush1.msra.mxu0 0.0
  %1752 = vmatprep.subr.mxu0 0.0
  %1753 = vmatpush1.msra.mxu0 0.0
  %1754 = vmatprep.subr.mxu0 0.0
  %1755 = vmatpush1.msra.mxu0 0.0
  %1756 = vmatprep.subr.mxu0 0.0
  %1757 = vmatpush1.msra.mxu0 0.0
  %1758 = vmatprep.subr.mxu0 0.0
  %1759 = vmatpush1.msra.mxu0 0.0
  %1760 = vmatprep.subr.mxu0 0.0
  %1761 = vmatpush1.msra.mxu0 0.0
  %1762 = vmatprep.subr.mxu0 0.0
  %1763 = vmatpush1.msra.mxu0 0.0
  %1764 = vmatprep.subr.mxu0 0.0
  %1765 = vmatpush1.msra.mxu0 0.0
  %1766 = vmatprep.subr.mxu0 0.0
  %1767 = vmatpush1.msra.mxu0 0.0
  %1768 = vmatprep.subr.mxu0 0.0
  %1769 = vmatpush1.msra.mxu0 0.0
  %1770 = vmatprep.subr.mxu0 0.0
  %1771 = vmatpush1.msra.mxu0 0.0
  %1772 = vmatprep.subr.mxu0 0.0
  %1773 = vmatpush1.msra.mxu0 0.0
  %1774 = vmatprep.subr.mxu0 0.0
  %1775 = vmatpush1.msra.mxu0 0.0
  %1776 = vmatprep.subr.mxu0 0.0
  %1777 = vmatpush1.msra.mxu0 0.0
  %1778 = vmatprep.subr.mxu0 0.0
  %1779 = vmatpush1.msra.mxu0 0.0
  %1780 = vmatprep.subr.mxu0 0.0
  %1781 = vmatpush1.msra.mxu0 0.0
  %1782 = vmatprep.subr.mxu0 0.0
  %1783 = vmatpush1.msra.mxu0 0.0
  %1784 = vmatprep.subr.mxu0 0.0
  %1785 = vmatpush1.msra.mxu0 0.0
  %1786 = vmatprep.subr.mxu0 0.0
  %1787 = vmatpush1.msra.mxu0 0.0
  %1788 = vmatprep.subr.mxu0 0.0
  %1789 = vmatpush1.msra.mxu0 0.0
  %1790 = vmatprep.subr.mxu0 0.0
  %1791 = vmatpush1.msra.mxu0 0.0
  %1792 = vmatprep.subr.mxu0 0.0
  %1793 = vmatpush1.msra.mxu0 0.0
  %1794 = vmatprep.mubr.f32.mxu0 0.0
  %1795 = vmatmul.mubr.f32.gmra.mrb[0].mxu0 %v1728
  %v1796 = vpop.f32.mrb[0].mxu0
  %v1797 = vadd.f32 0.0, %v1796
  %v1798 = vpop.f32.mrb[0].mxu0
  %1799 = vdwg.mxu0
  %v1800 = vadd.f32 %v1717, %v1797
  %v1801 = vmul.f32 %v1565, %v298
  %s1802 = scalar_lea.vmem %s2, 24
  %v1803 = vld [vmem:[%s1802] sm:$0xff]
  %1805 = vrot.lane.b32.xlu0 %v1801, 121
  %v1806 = vpop.permute.xlu0 %1805
  %v1809 = vsel %vm60, %v1803, 0
  %1811 = vmatprep.subr.mxu0 0.0
  %1812 = vmatpush1.msra.mxu0 %v1806
  %1813 = vmatprep.subr.mxu0 0.0
  %1814 = vmatpush1.msra.mxu0 0.0
  %1815 = vmatprep.subr.mxu0 0.0
  %1816 = vmatpush1.msra.mxu0 0.0
  %1817 = vmatprep.subr.mxu0 0.0
  %1818 = vmatpush1.msra.mxu0 0.0
  %1819 = vmatprep.subr.mxu0 0.0
  %1820 = vmatpush1.msra.mxu0 0.0
  %1821 = vmatprep.subr.mxu0 0.0
  %1822 = vmatpush1.msra.mxu0 0.0
  %1823 = vmatprep.subr.mxu0 0.0
  %1824 = vmatpush1.msra.mxu0 0.0
  %1825 = vmatprep.subr.mxu0 0.0
  %1826 = vmatpush1.msra.mxu0 0.0
  %1827 = vmatprep.subr.mxu0 0.0
  %1828 = vmatpush1.msra.mxu0 0.0
  %1829 = vmatprep.subr.mxu0 0.0
  %1830 = vmatpush1.msra.mxu0 0.0
  %1831 = vmatprep.subr.mxu0 0.0
  %1832 = vmatpush1.msra.mxu0 0.0
  %1833 = vmatprep.subr.mxu0 0.0
  %1834 = vmatpush1.msra.mxu0 0.0
  %1835 = vmatprep.subr.mxu0 0.0
  %1836 = vmatpush1.msra.mxu0 0.0
  %1837 = vmatprep.subr.mxu0 0.0
  %1838 = vmatpush1.msra.mxu0 0.0
  %1839 = vmatprep.subr.mxu0 0.0
  %1840 = vmatpush1.msra.mxu0 0.0
  %1841 = vmatprep.subr.mxu0 0.0
  %1842 = vmatpush1.msra.mxu0 0.0
  %1843 = vmatprep.subr.mxu0 0.0
  %1844 = vmatpush1.msra.mxu0 0.0
  %1845 = vmatprep.subr.mxu0 0.0
  %1846 = vmatpush1.msra.mxu0 0.0
  %1847 = vmatprep.subr.mxu0 0.0
  %1848 = vmatpush1.msra.mxu0 0.0
  %1849 = vmatprep.subr.mxu0 0.0
  %1850 = vmatpush1.msra.mxu0 0.0
  %1851 = vmatprep.subr.mxu0 0.0
  %1852 = vmatpush1.msra.mxu0 0.0
  %1853 = vmatprep.subr.mxu0 0.0
  %1854 = vmatpush1.msra.mxu0 0.0
  %1855 = vmatprep.subr.mxu0 0.0
  %1856 = vmatpush1.msra.mxu0 0.0
  %1857 = vmatprep.subr.mxu0 0.0
  %1858 = vmatpush1.msra.mxu0 0.0
  %1859 = vmatprep.subr.mxu0 0.0
  %1860 = vmatpush1.msra.mxu0 0.0
  %1861 = vmatprep.subr.mxu0 0.0
  %1862 = vmatpush1.msra.mxu0 0.0
  %1863 = vmatprep.subr.mxu0 0.0
  %1864 = vmatpush1.msra.mxu0 0.0
  %1865 = vmatprep.subr.mxu0 0.0
  %1866 = vmatpush1.msra.mxu0 0.0
  %1867 = vmatprep.subr.mxu0 0.0
  %1868 = vmatpush1.msra.mxu0 0.0
  %1869 = vmatprep.subr.mxu0 0.0
  %1870 = vmatpush1.msra.mxu0 0.0
  %1871 = vmatprep.subr.mxu0 0.0
  %1872 = vmatpush1.msra.mxu0 0.0
  %1873 = vmatprep.subr.mxu0 0.0
  %1874 = vmatpush1.msra.mxu0 0.0
  %1875 = vmatprep.mubr.f32.mxu0 0.0
  %1876 = vmatmul.mubr.f32.gmra.mrb[0].mxu0 %v1809
  %v1877 = vpop.f32.mrb[0].mxu0
  %v1878 = vadd.f32 0.0, %v1877
  %v1879 = vpop.f32.mrb[0].mxu0
  %1880 = vdwg.mxu0
  %v1881 = vadd.f32 %v1800, %v1878
  %s1882 = scalar_lea.vmem %s2, 32
  %v1883 = vld [vmem:[%s1882] sm:$0xff]
  %1884 = vrot.lane.b32.xlu0 %v1565, 120
  %v1885 = vpop.permute.xlu0 %1884
  %v1888 = vsel %vm60, %v1883, 0
  %1890 = vmatprep.subr.mxu0 0.0
  %1891 = vmatpush1.msra.mxu0 %v1885
  %1892 = vmatprep.subr.mxu0 0.0
  %1893 = vmatpush1.msra.mxu0 0.0
  %1894 = vmatprep.subr.mxu0 0.0
  %1895 = vmatpush1.msra.mxu0 0.0
  %1896 = vmatprep.subr.mxu0 0.0
  %1897 = vmatpush1.msra.mxu0 0.0
  %1898 = vmatprep.subr.mxu0 0.0
  %1899 = vmatpush1.msra.mxu0 0.0
  %1900 = vmatprep.subr.mxu0 0.0
  %1901 = vmatpush1.msra.mxu0 0.0
  %1902 = vmatprep.subr.mxu0 0.0
  %1903 = vmatpush1.msra.mxu0 0.0
  %1904 = vmatprep.subr.mxu0 0.0
  %1905 = vmatpush1.msra.mxu0 0.0
  %1906 = vmatprep.subr.mxu0 0.0
  %1907 = vmatpush1.msra.mxu0 0.0
  %1908 = vmatprep.subr.mxu0 0.0
  %1909 = vmatpush1.msra.mxu0 0.0
  %1910 = vmatprep.subr.mxu0 0.0
  %1911 = vmatpush1.msra.mxu0 0.0
  %1912 = vmatprep.subr.mxu0 0.0
  %1913 = vmatpush1.msra.mxu0 0.0
  %1914 = vmatprep.subr.mxu0 0.0
  %1915 = vmatpush1.msra.mxu0 0.0
  %1916 = vmatprep.subr.mxu0 0.0
  %1917 = vmatpush1.msra.mxu0 0.0
  %1918 = vmatprep.subr.mxu0 0.0
  %1919 = vmatpush1.msra.mxu0 0.0
  %1920 = vmatprep.subr.mxu0 0.0
  %1921 = vmatpush1.msra.mxu0 0.0
  %1922 = vmatprep.subr.mxu0 0.0
  %1923 = vmatpush1.msra.mxu0 0.0
  %1924 = vmatprep.subr.mxu0 0.0
  %1925 = vmatpush1.msra.mxu0 0.0
  %1926 = vmatprep.subr.mxu0 0.0
  %1927 = vmatpush1.msra.mxu0 0.0
  %1928 = vmatprep.subr.mxu0 0.0
  %1929 = vmatpush1.msra.mxu0 0.0
  %1930 = vmatprep.subr.mxu0 0.0
  %1931 = vmatpush1.msra.mxu0 0.0
  %1932 = vmatprep.subr.mxu0 0.0
  %1933 = vmatpush1.msra.mxu0 0.0
  %1934 = vmatprep.subr.mxu0 0.0
  %1935 = vmatpush1.msra.mxu0 0.0
  %1936 = vmatprep.subr.mxu0 0.0
  %1937 = vmatpush1.msra.mxu0 0.0
  %1938 = vmatprep.subr.mxu0 0.0
  %1939 = vmatpush1.msra.mxu0 0.0
  %1940 = vmatprep.subr.mxu0 0.0
  %1941 = vmatpush1.msra.mxu0 0.0
  %1942 = vmatprep.subr.mxu0 0.0
  %1943 = vmatpush1.msra.mxu0 0.0
  %1944 = vmatprep.subr.mxu0 0.0
  %1945 = vmatpush1.msra.mxu0 0.0
  %1946 = vmatprep.subr.mxu0 0.0
  %1947 = vmatpush1.msra.mxu0 0.0
  %1948 = vmatprep.subr.mxu0 0.0
  %1949 = vmatpush1.msra.mxu0 0.0
  %1950 = vmatprep.subr.mxu0 0.0
  %1951 = vmatpush1.msra.mxu0 0.0
  %1952 = vmatprep.subr.mxu0 0.0
  %1953 = vmatpush1.msra.mxu0 0.0
  %1954 = vmatprep.mubr.f32.mxu0 0.0
  %1955 = vmatmul.mubr.f32.gmra.mrb[0].mxu0 %v1888
  %v1956 = vpop.f32.mrb[0].mxu0
  %v1957 = vadd.f32 0.0, %v1956
  %v1958 = vpop.f32.mrb[0].mxu0
  %1959 = vdwg.mxu0
  %v1960 = vadd.f32 %v1881, %v1957
  %v1961 = vmul.f32 %v1565, %v461
  %s1962 = scalar_lea.vmem %s2, 40
  %v1963 = vld [vmem:[%s1962] sm:$0xff]
  %1965 = vrot.lane.b32.xlu0 %v1961, 119
  %v1966 = vpop.permute.xlu0 %1965
  %v1969 = vsel %vm60, %v1963, 0
  %1971 = vmatprep.subr.mxu0 0.0
  %1972 = vmatpush1.msra.mxu0 %v1966
  %1973 = vmatprep.subr.mxu0 0.0
  %1974 = vmatpush1.msra.mxu0 0.0
  %1975 = vmatprep.subr.mxu0 0.0
  %1976 = vmatpush1.msra.mxu0 0.0
  %1977 = vmatprep.subr.mxu0 0.0
  %1978 = vmatpush1.msra.mxu0 0.0
  %1979 = vmatprep.subr.mxu0 0.0
  %1980 = vmatpush1.msra.mxu0 0.0
  %1981 = vmatprep.subr.mxu0 0.0
  %1982 = vmatpush1.msra.mxu0 0.0
  %1983 = vmatprep.subr.mxu0 0.0
  %1984 = vmatpush1.msra.mxu0 0.0
  %1985 = vmatprep.subr.mxu0 0.0
  %1986 = vmatpush1.msra.mxu0 0.0
  %1987 = vmatprep.subr.mxu0 0.0
  %1988 = vmatpush1.msra.mxu0 0.0
  %1989 = vmatprep.subr.mxu0 0.0
  %1990 = vmatpush1.msra.mxu0 0.0
  %1991 = vmatprep.subr.mxu0 0.0
  %1992 = vmatpush1.msra.mxu0 0.0
  %1993 = vmatprep.subr.mxu0 0.0
  %1994 = vmatpush1.msra.mxu0 0.0
  %1995 = vmatprep.subr.mxu0 0.0
  %1996 = vmatpush1.msra.mxu0 0.0
  %1997 = vmatprep.subr.mxu0 0.0
  %1998 = vmatpush1.msra.mxu0 0.0
  %1999 = vmatprep.subr.mxu0 0.0
  %2000 = vmatpush1.msra.mxu0 0.0
  %2001 = vmatprep.subr.mxu0 0.0
  %2002 = vmatpush1.msra.mxu0 0.0
  %2003 = vmatprep.subr.mxu0 0.0
  %2004 = vmatpush1.msra.mxu0 0.0
  %2005 = vmatprep.subr.mxu0 0.0
  %2006 = vmatpush1.msra.mxu0 0.0
  %2007 = vmatprep.subr.mxu0 0.0
  %2008 = vmatpush1.msra.mxu0 0.0
  %2009 = vmatprep.subr.mxu0 0.0
  %2010 = vmatpush1.msra.mxu0 0.0
  %2011 = vmatprep.subr.mxu0 0.0
  %2012 = vmatpush1.msra.mxu0 0.0
  %2013 = vmatprep.subr.mxu0 0.0
  %2014 = vmatpush1.msra.mxu0 0.0
  %2015 = vmatprep.subr.mxu0 0.0
  %2016 = vmatpush1.msra.mxu0 0.0
  %2017 = vmatprep.subr.mxu0 0.0
  %2018 = vmatpush1.msra.mxu0 0.0
  %2019 = vmatprep.subr.mxu0 0.0
  %2020 = vmatpush1.msra.mxu0 0.0
  %2021 = vmatprep.subr.mxu0 0.0
  %2022 = vmatpush1.msra.mxu0 0.0
  %2023 = vmatprep.subr.mxu0 0.0
  %2024 = vmatpush1.msra.mxu0 0.0
  %2025 = vmatprep.subr.mxu0 0.0
  %2026 = vmatpush1.msra.mxu0 0.0
  %2027 = vmatprep.subr.mxu0 0.0
  %2028 = vmatpush1.msra.mxu0 0.0
  %2029 = vmatprep.subr.mxu0 0.0
  %2030 = vmatpush1.msra.mxu0 0.0
  %2031 = vmatprep.subr.mxu0 0.0
  %2032 = vmatpush1.msra.mxu0 0.0
  %2033 = vmatprep.subr.mxu0 0.0
  %2034 = vmatpush1.msra.mxu0 0.0
  %2035 = vmatprep.mubr.f32.mxu0 0.0
  %2036 = vmatmul.mubr.f32.gmra.mrb[0].mxu0 %v1969
  %v2037 = vpop.f32.mrb[0].mxu0
  %v2038 = vadd.f32 0.0, %v2037
  %v2039 = vpop.f32.mrb[0].mxu0
  %2040 = vdwg.mxu0
  %v2041 = vadd.f32 %v1960, %v2038
  %v2042 = vmul.f32 %v1565, %v545
  %s2043 = scalar_lea.vmem %s2, 48
  %v2044 = vld [vmem:[%s2043] sm:$0xff]
  %2046 = vrot.lane.b32.xlu0 %v2042, 114
  %v2047 = vpop.permute.xlu0 %2046
  %v2050 = vsel %vm60, %v2044, 0
  %2052 = vmatprep.subr.mxu0 0.0
  %2053 = vmatpush1.msra.mxu0 %v2047
  %2054 = vmatprep.subr.mxu0 0.0
  %2055 = vmatpush1.msra.mxu0 0.0
  %2056 = vmatprep.subr.mxu0 0.0
  %2057 = vmatpush1.msra.mxu0 0.0
  %2058 = vmatprep.subr.mxu0 0.0
  %2059 = vmatpush1.msra.mxu0 0.0
  %2060 = vmatprep.subr.mxu0 0.0
  %2061 = vmatpush1.msra.mxu0 0.0
  %2062 = vmatprep.subr.mxu0 0.0
  %2063 = vmatpush1.msra.mxu0 0.0
  %2064 = vmatprep.subr.mxu0 0.0
  %2065 = vmatpush1.msra.mxu0 0.0
  %2066 = vmatprep.subr.mxu0 0.0
  %2067 = vmatpush1.msra.mxu0 0.0
  %2068 = vmatprep.subr.mxu0 0.0
  %2069 = vmatpush1.msra.mxu0 0.0
  %2070 = vmatprep.subr.mxu0 0.0
  %2071 = vmatpush1.msra.mxu0 0.0
  %2072 = vmatprep.subr.mxu0 0.0
  %2073 = vmatpush1.msra.mxu0 0.0
  %2074 = vmatprep.subr.mxu0 0.0
  %2075 = vmatpush1.msra.mxu0 0.0
  %2076 = vmatprep.subr.mxu0 0.0
  %2077 = vmatpush1.msra.mxu0 0.0
  %2078 = vmatprep.subr.mxu0 0.0
  %2079 = vmatpush1.msra.mxu0 0.0
  %2080 = vmatprep.subr.mxu0 0.0
  %2081 = vmatpush1.msra.mxu0 0.0
  %2082 = vmatprep.subr.mxu0 0.0
  %2083 = vmatpush1.msra.mxu0 0.0
  %2084 = vmatprep.subr.mxu0 0.0
  %2085 = vmatpush1.msra.mxu0 0.0
  %2086 = vmatprep.subr.mxu0 0.0
  %2087 = vmatpush1.msra.mxu0 0.0
  %2088 = vmatprep.subr.mxu0 0.0
  %2089 = vmatpush1.msra.mxu0 0.0
  %2090 = vmatprep.subr.mxu0 0.0
  %2091 = vmatpush1.msra.mxu0 0.0
  %2092 = vmatprep.subr.mxu0 0.0
  %2093 = vmatpush1.msra.mxu0 0.0
  %2094 = vmatprep.subr.mxu0 0.0
  %2095 = vmatpush1.msra.mxu0 0.0
  %2096 = vmatprep.subr.mxu0 0.0
  %2097 = vmatpush1.msra.mxu0 0.0
  %2098 = vmatprep.subr.mxu0 0.0
  %2099 = vmatpush1.msra.mxu0 0.0
  %2100 = vmatprep.subr.mxu0 0.0
  %2101 = vmatpush1.msra.mxu0 0.0
  %2102 = vmatprep.subr.mxu0 0.0
  %2103 = vmatpush1.msra.mxu0 0.0
  %2104 = vmatprep.subr.mxu0 0.0
  %2105 = vmatpush1.msra.mxu0 0.0
  %2106 = vmatprep.subr.mxu0 0.0
  %2107 = vmatpush1.msra.mxu0 0.0
  %2108 = vmatprep.subr.mxu0 0.0
  %2109 = vmatpush1.msra.mxu0 0.0
  %2110 = vmatprep.subr.mxu0 0.0
  %2111 = vmatpush1.msra.mxu0 0.0
  %2112 = vmatprep.subr.mxu0 0.0
  %2113 = vmatpush1.msra.mxu0 0.0
  %2114 = vmatprep.subr.mxu0 0.0
  %2115 = vmatpush1.msra.mxu0 0.0
  %2116 = vmatprep.mubr.f32.mxu0 0.0
  %2117 = vmatmul.mubr.f32.gmra.mrb[0].mxu0 %v2050
  %v2118 = vpop.f32.mrb[0].mxu0
  %v2119 = vadd.f32 0.0, %v2118
  %v2120 = vpop.f32.mrb[0].mxu0
  %2121 = vdwg.mxu0
  %v2122 = vadd.f32 %v2041, %v2119
  %s2123 = scalar_lea.vmem %s2, 56
  %v2124 = vld [vmem:[%s2123] sm:$0xff]
  %2125 = vrot.lane.b32.xlu0 %v1565, 113
  %v2126 = vpop.permute.xlu0 %2125
  %v2129 = vsel %vm60, %v2124, 0
  %2131 = vmatprep.subr.mxu0 0.0
  %2132 = vmatpush1.msra.mxu0 %v2126
  %2133 = vmatprep.subr.mxu0 0.0
  %2134 = vmatpush1.msra.mxu0 0.0
  %2135 = vmatprep.subr.mxu0 0.0
  %2136 = vmatpush1.msra.mxu0 0.0
  %2137 = vmatprep.subr.mxu0 0.0
  %2138 = vmatpush1.msra.mxu0 0.0
  %2139 = vmatprep.subr.mxu0 0.0
  %2140 = vmatpush1.msra.mxu0 0.0
  %2141 = vmatprep.subr.mxu0 0.0
  %2142 = vmatpush1.msra.mxu0 0.0
  %2143 = vmatprep.subr.mxu0 0.0
  %2144 = vmatpush1.msra.mxu0 0.0
  %2145 = vmatprep.subr.mxu0 0.0
  %2146 = vmatpush1.msra.mxu0 0.0
  %2147 = vmatprep.subr.mxu0 0.0
  %2148 = vmatpush1.msra.mxu0 0.0
  %2149 = vmatprep.subr.mxu0 0.0
  %2150 = vmatpush1.msra.mxu0 0.0
  %2151 = vmatprep.subr.mxu0 0.0
  %2152 = vmatpush1.msra.mxu0 0.0
  %2153 = vmatprep.subr.mxu0 0.0
  %2154 = vmatpush1.msra.mxu0 0.0
  %2155 = vmatprep.subr.mxu0 0.0
  %2156 = vmatpush1.msra.mxu0 0.0
  %2157 = vmatprep.subr.mxu0 0.0
  %2158 = vmatpush1.msra.mxu0 0.0
  %2159 = vmatprep.subr.mxu0 0.0
  %2160 = vmatpush1.msra.mxu0 0.0
  %2161 = vmatprep.subr.mxu0 0.0
  %2162 = vmatpush1.msra.mxu0 0.0
  %2163 = vmatprep.subr.mxu0 0.0
  %2164 = vmatpush1.msra.mxu0 0.0
  %2165 = vmatprep.subr.mxu0 0.0
  %2166 = vmatpush1.msra.mxu0 0.0
  %2167 = vmatprep.subr.mxu0 0.0
  %2168 = vmatpush1.msra.mxu0 0.0
  %2169 = vmatprep.subr.mxu0 0.0
  %2170 = vmatpush1.msra.mxu0 0.0
  %2171 = vmatprep.subr.mxu0 0.0
  %2172 = vmatpush1.msra.mxu0 0.0
  %2173 = vmatprep.subr.mxu0 0.0
  %2174 = vmatpush1.msra.mxu0 0.0
  %2175 = vmatprep.subr.mxu0 0.0
  %2176 = vmatpush1.msra.mxu0 0.0
  %2177 = vmatprep.subr.mxu0 0.0
  %2178 = vmatpush1.msra.mxu0 0.0
  %2179 = vmatprep.subr.mxu0 0.0
  %2180 = vmatpush1.msra.mxu0 0.0
  %2181 = vmatprep.subr.mxu0 0.0
  %2182 = vmatpush1.msra.mxu0 0.0
  %2183 = vmatprep.subr.mxu0 0.0
  %2184 = vmatpush1.msra.mxu0 0.0
  %2185 = vmatprep.subr.mxu0 0.0
  %2186 = vmatpush1.msra.mxu0 0.0
  %2187 = vmatprep.subr.mxu0 0.0
  %2188 = vmatpush1.msra.mxu0 0.0
  %2189 = vmatprep.subr.mxu0 0.0
  %2190 = vmatpush1.msra.mxu0 0.0
  %2191 = vmatprep.subr.mxu0 0.0
  %2192 = vmatpush1.msra.mxu0 0.0
  %2193 = vmatprep.subr.mxu0 0.0
  %2194 = vmatpush1.msra.mxu0 0.0
  %2195 = vmatprep.mubr.f32.mxu0 0.0
  %2196 = vmatmul.mubr.f32.gmra.mrb[0].mxu0 %v2129
  %v2197 = vpop.f32.mrb[0].mxu0
  %v2198 = vadd.f32 0.0, %v2197
  %v2199 = vpop.f32.mrb[0].mxu0
  %2200 = vdwg.mxu0
  %v2201 = vadd.f32 %v2122, %v2198
  %v2202 = vmul.f32 %v1565, %v708
  %s2203 = scalar_lea.vmem %s2, 64
  %v2204 = vld [vmem:[%s2203] sm:$0xff]
  %2206 = vrot.lane.b32.xlu0 %v2202, 112
  %v2207 = vpop.permute.xlu0 %2206
  %v2210 = vsel %vm60, %v2204, 0
  %2212 = vmatprep.subr.mxu0 0.0
  %2213 = vmatpush1.msra.mxu0 %v2207
  %2214 = vmatprep.subr.mxu0 0.0
  %2215 = vmatpush1.msra.mxu0 0.0
  %2216 = vmatprep.subr.mxu0 0.0
  %2217 = vmatpush1.msra.mxu0 0.0
  %2218 = vmatprep.subr.mxu0 0.0
  %2219 = vmatpush1.msra.mxu0 0.0
  %2220 = vmatprep.subr.mxu0 0.0
  %2221 = vmatpush1.msra.mxu0 0.0
  %2222 = vmatprep.subr.mxu0 0.0
  %2223 = vmatpush1.msra.mxu0 0.0
  %2224 = vmatprep.subr.mxu0 0.0
  %2225 = vmatpush1.msra.mxu0 0.0
  %2226 = vmatprep.subr.mxu0 0.0
  %2227 = vmatpush1.msra.mxu0 0.0
  %2228 = vmatprep.subr.mxu0 0.0
  %2229 = vmatpush1.msra.mxu0 0.0
  %2230 = vmatprep.subr.mxu0 0.0
  %2231 = vmatpush1.msra.mxu0 0.0
  %2232 = vmatprep.subr.mxu0 0.0
  %2233 = vmatpush1.msra.mxu0 0.0
  %2234 = vmatprep.subr.mxu0 0.0
  %2235 = vmatpush1.msra.mxu0 0.0
  %2236 = vmatprep.subr.mxu0 0.0
  %2237 = vmatpush1.msra.mxu0 0.0
  %2238 = vmatprep.subr.mxu0 0.0
  %2239 = vmatpush1.msra.mxu0 0.0
  %2240 = vmatprep.subr.mxu0 0.0
  %2241 = vmatpush1.msra.mxu0 0.0
  %2242 = vmatprep.subr.mxu0 0.0
  %2243 = vmatpush1.msra.mxu0 0.0
  %2244 = vmatprep.subr.mxu0 0.0
  %2245 = vmatpush1.msra.mxu0 0.0
  %2246 = vmatprep.subr.mxu0 0.0
  %2247 = vmatpush1.msra.mxu0 0.0
  %2248 = vmatprep.subr.mxu0 0.0
  %2249 = vmatpush1.msra.mxu0 0.0
  %2250 = vmatprep.subr.mxu0 0.0
  %2251 = vmatpush1.msra.mxu0 0.0
  %2252 = vmatprep.subr.mxu0 0.0
  %2253 = vmatpush1.msra.mxu0 0.0
  %2254 = vmatprep.subr.mxu0 0.0
  %2255 = vmatpush1.msra.mxu0 0.0
  %2256 = vmatprep.subr.mxu0 0.0
  %2257 = vmatpush1.msra.mxu0 0.0
  %2258 = vmatprep.subr.mxu0 0.0
  %2259 = vmatpush1.msra.mxu0 0.0
  %2260 = vmatprep.subr.mxu0 0.0
  %2261 = vmatpush1.msra.mxu0 0.0
  %2262 = vmatprep.subr.mxu0 0.0
  %2263 = vmatpush1.msra.mxu0 0.0
  %2264 = vmatprep.subr.mxu0 0.0
  %2265 = vmatpush1.msra.mxu0 0.0
  %2266 = vmatprep.subr.mxu0 0.0
  %2267 = vmatpush1.msra.mxu0 0.0
  %2268 = vmatprep.subr.mxu0 0.0
  %2269 = vmatpush1.msra.mxu0 0.0
  %2270 = vmatprep.subr.mxu0 0.0
  %2271 = vmatpush1.msra.mxu0 0.0
  %2272 = vmatprep.subr.mxu0 0.0
  %2273 = vmatpush1.msra.mxu0 0.0
  %2274 = vmatprep.subr.mxu0 0.0
  %2275 = vmatpush1.msra.mxu0 0.0
  %2276 = vmatprep.mubr.f32.mxu0 0.0
  %2277 = vmatmul.mubr.f32.gmra.mrb[0].mxu0 %v2210
  %v2278 = vpop.f32.mrb[0].mxu0
  %v2279 = vadd.f32 0.0, %v2278
  %v2280 = vpop.f32.mrb[0].mxu0
  %2281 = vdwg.mxu0
  %v2282 = vadd.f32 %v2201, %v2279
  %v2283 = vsel %vm791, %v2282, 0.0
  %2284 = vadd.xlane.f32.xlu0 %v2283
  %v2285 = vpop.xlane.xlu0 %2284
  %v2286 = vadd.f32 %v2285, 0.0
  %v2287 = vmul.f32 %v2282, %v2282
  %v2288 = vsel %vm791, %v2287, 0.0
  %2289 = vadd.xlane.f32.xlu0 %v2288
  %v2290 = vpop.xlane.xlu0 %2289
  %v2291 = vadd.f32 %v2290, 0.0
  %v2292 = vld [vmem:[%s807] sm:$0xff]
  %v2293 = vmul.f32 %v2292, %v51
  %2295 = vrot.lane.b32.xlu0 %v2292, 127
  %v2296 = vpop.permute.xlu0 %2295
  %2298 = vmatprep.subr.mxu0 0.0
  %2299 = vmatpush1.msra.mxu0 %v2296
  %2300 = vmatprep.subr.mxu0 0.0
  %2301 = vmatpush1.msra.mxu0 0.0
  %2302 = vmatprep.subr.mxu0 0.0
  %2303 = vmatpush1.msra.mxu0 0.0
  %2304 = vmatprep.subr.mxu0 0.0
  %2305 = vmatpush1.msra.mxu0 0.0
  %2306 = vmatprep.subr.mxu0 0.0
  %2307 = vmatpush1.msra.mxu0 0.0
  %2308 = vmatprep.subr.mxu0 0.0
  %2309 = vmatpush1.msra.mxu0 0.0
  %2310 = vmatprep.subr.mxu0 0.0
  %2311 = vmatpush1.msra.mxu0 0.0
  %2312 = vmatprep.subr.mxu0 0.0
  %2313 = vmatpush1.msra.mxu0 0.0
  %2314 = vmatprep.subr.mxu0 0.0
  %2315 = vmatpush1.msra.mxu0 0.0
  %2316 = vmatprep.subr.mxu0 0.0
  %2317 = vmatpush1.msra.mxu0 0.0
  %2318 = vmatprep.subr.mxu0 0.0
  %2319 = vmatpush1.msra.mxu0 0.0
  %2320 = vmatprep.subr.mxu0 0.0
  %2321 = vmatpush1.msra.mxu0 0.0
  %2322 = vmatprep.subr.mxu0 0.0
  %2323 = vmatpush1.msra.mxu0 0.0
  %2324 = vmatprep.subr.mxu0 0.0
  %2325 = vmatpush1.msra.mxu0 0.0
  %2326 = vmatprep.subr.mxu0 0.0
  %2327 = vmatpush1.msra.mxu0 0.0
  %2328 = vmatprep.subr.mxu0 0.0
  %2329 = vmatpush1.msra.mxu0 0.0
  %2330 = vmatprep.subr.mxu0 0.0
  %2331 = vmatpush1.msra.mxu0 0.0
  %2332 = vmatprep.subr.mxu0 0.0
  %2333 = vmatpush1.msra.mxu0 0.0
  %2334 = vmatprep.subr.mxu0 0.0
  %2335 = vmatpush1.msra.mxu0 0.0
  %2336 = vmatprep.subr.mxu0 0.0
  %2337 = vmatpush1.msra.mxu0 0.0
  %2338 = vmatprep.subr.mxu0 0.0
  %2339 = vmatpush1.msra.mxu0 0.0
  %2340 = vmatprep.subr.mxu0 0.0
  %2341 = vmatpush1.msra.mxu0 0.0
  %2342 = vmatprep.subr.mxu0 0.0
  %2343 = vmatpush1.msra.mxu0 0.0
  %2344 = vmatprep.subr.mxu0 0.0
  %2345 = vmatpush1.msra.mxu0 0.0
  %2346 = vmatprep.subr.mxu0 0.0
  %2347 = vmatpush1.msra.mxu0 0.0
  %2348 = vmatprep.subr.mxu0 0.0
  %2349 = vmatpush1.msra.mxu0 0.0
  %2350 = vmatprep.subr.mxu0 0.0
  %2351 = vmatpush1.msra.mxu0 0.0
  %2352 = vmatprep.subr.mxu0 0.0
  %2353 = vmatpush1.msra.mxu0 0.0
  %2354 = vmatprep.subr.mxu0 0.0
  %2355 = vmatpush1.msra.mxu0 0.0
  %2356 = vmatprep.subr.mxu0 0.0
  %2357 = vmatpush1.msra.mxu0 0.0
  %2358 = vmatprep.subr.mxu0 0.0
  %2359 = vmatpush1.msra.mxu0 0.0
  %2360 = vmatprep.subr.mxu0 0.0
  %2361 = vmatpush1.msra.mxu0 0.0
  %2362 = vmatprep.mubr.f32.mxu0 0.0
  %2363 = vmatmul.mubr.f32.gmra.mrb[0].mxu0 %v1575
  %v2364 = vpop.f32.mrb[0].mxu0
  %v2365 = vadd.f32 0.0, %v2364
  %v2366 = vpop.f32.mrb[0].mxu0
  %2367 = vdwg.mxu0
  %2368 = vmatprep.subr.mxu0 0.0
  %2369 = vmatpush1.msra.mxu0 %v2293
  %2370 = vmatprep.subr.mxu0 0.0
  %2371 = vmatpush1.msra.mxu0 0.0
  %2372 = vmatprep.subr.mxu0 0.0
  %2373 = vmatpush1.msra.mxu0 0.0
  %2374 = vmatprep.subr.mxu0 0.0
  %2375 = vmatpush1.msra.mxu0 0.0
  %2376 = vmatprep.subr.mxu0 0.0
  %2377 = vmatpush1.msra.mxu0 0.0
  %2378 = vmatprep.subr.mxu0 0.0
  %2379 = vmatpush1.msra.mxu0 0.0
  %2380 = vmatprep.subr.mxu0 0.0
  %2381 = vmatpush1.msra.mxu0 0.0
  %2382 = vmatprep.subr.mxu0 0.0
  %2383 = vmatpush1.msra.mxu0 0.0
  %2384 = vmatprep.subr.mxu0 0.0
  %2385 = vmatpush1.msra.mxu0 0.0
  %2386 = vmatprep.subr.mxu0 0.0
  %2387 = vmatpush1.msra.mxu0 0.0
  %2388 = vmatprep.subr.mxu0 0.0
  %2389 = vmatpush1.msra.mxu0 0.0
  %2390 = vmatprep.subr.mxu0 0.0
  %2391 = vmatpush1.msra.mxu0 0.0
  %2392 = vmatprep.subr.mxu0 0.0
  %2393 = vmatpush1.msra.mxu0 0.0
  %2394 = vmatprep.subr.mxu0 0.0
  %2395 = vmatpush1.msra.mxu0 0.0
  %2396 = vmatprep.subr.mxu0 0.0
  %2397 = vmatpush1.msra.mxu0 0.0
  %2398 = vmatprep.subr.mxu0 0.0
  %2399 = vmatpush1.msra.mxu0 0.0
  %2400 = vmatprep.subr.mxu0 0.0
  %2401 = vmatpush1.msra.mxu0 0.0
  %2402 = vmatprep.subr.mxu0 0.0
  %2403 = vmatpush1.msra.mxu0 0.0
  %2404 = vmatprep.subr.mxu0 0.0
  %2405 = vmatpush1.msra.mxu0 0.0
  %2406 = vmatprep.subr.mxu0 0.0
  %2407 = vmatpush1.msra.mxu0 0.0
  %2408 = vmatprep.subr.mxu0 0.0
  %2409 = vmatpush1.msra.mxu0 0.0
  %2410 = vmatprep.subr.mxu0 0.0
  %2411 = vmatpush1.msra.mxu0 0.0
  %2412 = vmatprep.subr.mxu0 0.0
  %2413 = vmatpush1.msra.mxu0 0.0
  %2414 = vmatprep.subr.mxu0 0.0
  %2415 = vmatpush1.msra.mxu0 0.0
  %2416 = vmatprep.subr.mxu0 0.0
  %2417 = vmatpush1.msra.mxu0 0.0
  %2418 = vmatprep.subr.mxu0 0.0
  %2419 = vmatpush1.msra.mxu0 0.0
  %2420 = vmatprep.subr.mxu0 0.0
  %2421 = vmatpush1.msra.mxu0 0.0
  %2422 = vmatprep.subr.mxu0 0.0
  %2423 = vmatpush1.msra.mxu0 0.0
  %2424 = vmatprep.subr.mxu0 0.0
  %2425 = vmatpush1.msra.mxu0 0.0
  %2426 = vmatprep.subr.mxu0 0.0
  %2427 = vmatpush1.msra.mxu0 0.0
  %2428 = vmatprep.subr.mxu0 0.0
  %2429 = vmatpush1.msra.mxu0 0.0
  %2430 = vmatprep.subr.mxu0 0.0
  %2431 = vmatpush1.msra.mxu0 0.0
  %2432 = vmatprep.mubr.f32.mxu0 0.0
  %2433 = vmatmul.mubr.f32.gmra.mrb[0].mxu0 %v1648
  %v2434 = vpop.f32.mrb[0].mxu0
  %v2435 = vadd.f32 %v2365, %v2434
  %v2436 = vpop.f32.mrb[0].mxu0
  %2437 = vdwg.mxu0
  %v2438 = vmul.f32 %v2292, %v213
  %2440 = vrot.lane.b32.xlu0 %v2438, 126
  %v2441 = vpop.permute.xlu0 %2440
  %2443 = vmatprep.subr.mxu0 0.0
  %2444 = vmatpush1.msra.mxu0 %v2441
  %2445 = vmatprep.subr.mxu0 0.0
  %2446 = vmatpush1.msra.mxu0 0.0
  %2447 = vmatprep.subr.mxu0 0.0
  %2448 = vmatpush1.msra.mxu0 0.0
  %2449 = vmatprep.subr.mxu0 0.0
  %2450 = vmatpush1.msra.mxu0 0.0
  %2451 = vmatprep.subr.mxu0 0.0
  %2452 = vmatpush1.msra.mxu0 0.0
  %2453 = vmatprep.subr.mxu0 0.0
  %2454 = vmatpush1.msra.mxu0 0.0
  %2455 = vmatprep.subr.mxu0 0.0
  %2456 = vmatpush1.msra.mxu0 0.0
  %2457 = vmatprep.subr.mxu0 0.0
  %2458 = vmatpush1.msra.mxu0 0.0
  %2459 = vmatprep.subr.mxu0 0.0
  %2460 = vmatpush1.msra.mxu0 0.0
  %2461 = vmatprep.subr.mxu0 0.0
  %2462 = vmatpush1.msra.mxu0 0.0
  %2463 = vmatprep.subr.mxu0 0.0
  %2464 = vmatpush1.msra.mxu0 0.0
  %2465 = vmatprep.subr.mxu0 0.0
  %2466 = vmatpush1.msra.mxu0 0.0
  %2467 = vmatprep.subr.mxu0 0.0
  %2468 = vmatpush1.msra.mxu0 0.0
  %2469 = vmatprep.subr.mxu0 0.0
  %2470 = vmatpush1.msra.mxu0 0.0
  %2471 = vmatprep.subr.mxu0 0.0
  %2472 = vmatpush1.msra.mxu0 0.0
  %2473 = vmatprep.subr.mxu0 0.0
  %2474 = vmatpush1.msra.mxu0 0.0
  %2475 = vmatprep.subr.mxu0 0.0
  %2476 = vmatpush1.msra.mxu0 0.0
  %2477 = vmatprep.subr.mxu0 0.0
  %2478 = vmatpush1.msra.mxu0 0.0
  %2479 = vmatprep.subr.mxu0 0.0
  %2480 = vmatpush1.msra.mxu0 0.0
  %2481 = vmatprep.subr.mxu0 0.0
  %2482 = vmatpush1.msra.mxu0 0.0
  %2483 = vmatprep.subr.mxu0 0.0
  %2484 = vmatpush1.msra.mxu0 0.0
  %2485 = vmatprep.subr.mxu0 0.0
  %2486 = vmatpush1.msra.mxu0 0.0
  %2487 = vmatprep.subr.mxu0 0.0
  %2488 = vmatpush1.msra.mxu0 0.0
  %2489 = vmatprep.subr.mxu0 0.0
  %2490 = vmatpush1.msra.mxu0 0.0
  %2491 = vmatprep.subr.mxu0 0.0
  %2492 = vmatpush1.msra.mxu0 0.0
  %2493 = vmatprep.subr.mxu0 0.0
  %2494 = vmatpush1.msra.mxu0 0.0
  %2495 = vmatprep.subr.mxu0 0.0
  %2496 = vmatpush1.msra.mxu0 0.0
  %2497 = vmatprep.subr.mxu0 0.0
  %2498 = vmatpush1.msra.mxu0 0.0
  %2499 = vmatprep.subr.mxu0 0.0
  %2500 = vmatpush1.msra.mxu0 0.0
  %2501 = vmatprep.subr.mxu0 0.0
  %2502 = vmatpush1.msra.mxu0 0.0
  %2503 = vmatprep.subr.mxu0 0.0
  %2504 = vmatpush1.msra.mxu0 0.0
  %2505 = vmatprep.subr.mxu0 0.0
  %2506 = vmatpush1.msra.mxu0 0.0
  %2507 = vmatprep.mubr.f32.mxu0 0.0
  %2508 = vmatmul.mubr.f32.gmra.mrb[0].mxu0 %v1728
  %v2509 = vpop.f32.mrb[0].mxu0
  %v2510 = vadd.f32 0.0, %v2509
  %v2511 = vpop.f32.mrb[0].mxu0
  %2512 = vdwg.mxu0
  %v2513 = vadd.f32 %v2435, %v2510
  %v2514 = vmul.f32 %v2292, %v298
  %2516 = vrot.lane.b32.xlu0 %v2514, 121
  %v2517 = vpop.permute.xlu0 %2516
  %2519 = vmatprep.subr.mxu0 0.0
  %2520 = vmatpush1.msra.mxu0 %v2517
  %2521 = vmatprep.subr.mxu0 0.0
  %2522 = vmatpush1.msra.mxu0 0.0
  %2523 = vmatprep.subr.mxu0 0.0
  %2524 = vmatpush1.msra.mxu0 0.0
  %2525 = vmatprep.subr.mxu0 0.0
  %2526 = vmatpush1.msra.mxu0 0.0
  %2527 = vmatprep.subr.mxu0 0.0
  %2528 = vmatpush1.msra.mxu0 0.0
  %2529 = vmatprep.subr.mxu0 0.0
  %2530 = vmatpush1.msra.mxu0 0.0
  %2531 = vmatprep.subr.mxu0 0.0
  %2532 = vmatpush1.msra.mxu0 0.0
  %2533 = vmatprep.subr.mxu0 0.0
  %2534 = vmatpush1.msra.mxu0 0.0
  %2535 = vmatprep.subr.mxu0 0.0
  %2536 = vmatpush1.msra.mxu0 0.0
  %2537 = vmatprep.subr.mxu0 0.0
  %2538 = vmatpush1.msra.mxu0 0.0
  %2539 = vmatprep.subr.mxu0 0.0
  %2540 = vmatpush1.msra.mxu0 0.0
  %2541 = vmatprep.subr.mxu0 0.0
  %2542 = vmatpush1.msra.mxu0 0.0
  %2543 = vmatprep.subr.mxu0 0.0
  %2544 = vmatpush1.msra.mxu0 0.0
  %2545 = vmatprep.subr.mxu0 0.0
  %2546 = vmatpush1.msra.mxu0 0.0
  %2547 = vmatprep.subr.mxu0 0.0
  %2548 = vmatpush1.msra.mxu0 0.0
  %2549 = vmatprep.subr.mxu0 0.0
  %2550 = vmatpush1.msra.mxu0 0.0
  %2551 = vmatprep.subr.mxu0 0.0
  %2552 = vmatpush1.msra.mxu0 0.0
  %2553 = vmatprep.subr.mxu0 0.0
  %2554 = vmatpush1.msra.mxu0 0.0
  %2555 = vmatprep.subr.mxu0 0.0
  %2556 = vmatpush1.msra.mxu0 0.0
  %2557 = vmatprep.subr.mxu0 0.0
  %2558 = vmatpush1.msra.mxu0 0.0
  %2559 = vmatprep.subr.mxu0 0.0
  %2560 = vmatpush1.msra.mxu0 0.0
  %2561 = vmatprep.subr.mxu0 0.0
  %2562 = vmatpush1.msra.mxu0 0.0
  %2563 = vmatprep.subr.mxu0 0.0
  %2564 = vmatpush1.msra.mxu0 0.0
  %2565 = vmatprep.subr.mxu0 0.0
  %2566 = vmatpush1.msra.mxu0 0.0
  %2567 = vmatprep.subr.mxu0 0.0
  %2568 = vmatpush1.msra.mxu0 0.0
  %2569 = vmatprep.subr.mxu0 0.0
  %2570 = vmatpush1.msra.mxu0 0.0
  %2571 = vmatprep.subr.mxu0 0.0
  %2572 = vmatpush1.msra.mxu0 0.0
  %2573 = vmatprep.subr.mxu0 0.0
  %2574 = vmatpush1.msra.mxu0 0.0
  %2575 = vmatprep.subr.mxu0 0.0
  %2576 = vmatpush1.msra.mxu0 0.0
  %2577 = vmatprep.subr.mxu0 0.0
  %2578 = vmatpush1.msra.mxu0 0.0
  %2579 = vmatprep.subr.mxu0 0.0
  %2580 = vmatpush1.msra.mxu0 0.0
  %2581 = vmatprep.subr.mxu0 0.0
  %2582 = vmatpush1.msra.mxu0 0.0
  %2583 = vmatprep.mubr.f32.mxu0 0.0
  %2584 = vmatmul.mubr.f32.gmra.mrb[0].mxu0 %v1809
  %v2585 = vpop.f32.mrb[0].mxu0
  %v2586 = vadd.f32 0.0, %v2585
  %v2587 = vpop.f32.mrb[0].mxu0
  %2588 = vdwg.mxu0
  %v2589 = vadd.f32 %v2513, %v2586
  %2590 = vrot.lane.b32.xlu0 %v2292, 120
  %v2591 = vpop.permute.xlu0 %2590
  %2593 = vmatprep.subr.mxu0 0.0
  %2594 = vmatpush1.msra.mxu0 %v2591
  %2595 = vmatprep.subr.mxu0 0.0
  %2596 = vmatpush1.msra.mxu0 0.0
  %2597 = vmatprep.subr.mxu0 0.0
  %2598 = vmatpush1.msra.mxu0 0.0
  %2599 = vmatprep.subr.mxu0 0.0
  %2600 = vmatpush1.msra.mxu0 0.0
  %2601 = vmatprep.subr.mxu0 0.0
  %2602 = vmatpush1.msra.mxu0 0.0
  %2603 = vmatprep.subr.mxu0 0.0
  %2604 = vmatpush1.msra.mxu0 0.0
  %2605 = vmatprep.subr.mxu0 0.0
  %2606 = vmatpush1.msra.mxu0 0.0
  %2607 = vmatprep.subr.mxu0 0.0
  %2608 = vmatpush1.msra.mxu0 0.0
  %2609 = vmatprep.subr.mxu0 0.0
  %2610 = vmatpush1.msra.mxu0 0.0
  %2611 = vmatprep.subr.mxu0 0.0
  %2612 = vmatpush1.msra.mxu0 0.0
  %2613 = vmatprep.subr.mxu0 0.0
  %2614 = vmatpush1.msra.mxu0 0.0
  %2615 = vmatprep.subr.mxu0 0.0
  %2616 = vmatpush1.msra.mxu0 0.0
  %2617 = vmatprep.subr.mxu0 0.0
  %2618 = vmatpush1.msra.mxu0 0.0
  %2619 = vmatprep.subr.mxu0 0.0
  %2620 = vmatpush1.msra.mxu0 0.0
  %2621 = vmatprep.subr.mxu0 0.0
  %2622 = vmatpush1.msra.mxu0 0.0
  %2623 = vmatprep.subr.mxu0 0.0
  %2624 = vmatpush1.msra.mxu0 0.0
  %2625 = vmatprep.subr.mxu0 0.0
  %2626 = vmatpush1.msra.mxu0 0.0
  %2627 = vmatprep.subr.mxu0 0.0
  %2628 = vmatpush1.msra.mxu0 0.0
  %2629 = vmatprep.subr.mxu0 0.0
  %2630 = vmatpush1.msra.mxu0 0.0
  %2631 = vmatprep.subr.mxu0 0.0
  %2632 = vmatpush1.msra.mxu0 0.0
  %2633 = vmatprep.subr.mxu0 0.0
  %2634 = vmatpush1.msra.mxu0 0.0
  %2635 = vmatprep.subr.mxu0 0.0
  %2636 = vmatpush1.msra.mxu0 0.0
  %2637 = vmatprep.subr.mxu0 0.0
  %2638 = vmatpush1.msra.mxu0 0.0
  %2639 = vmatprep.subr.mxu0 0.0
  %2640 = vmatpush1.msra.mxu0 0.0
  %2641 = vmatprep.subr.mxu0 0.0
  %2642 = vmatpush1.msra.mxu0 0.0
  %2643 = vmatprep.subr.mxu0 0.0
  %2644 = vmatpush1.msra.mxu0 0.0
  %2645 = vmatprep.subr.mxu0 0.0
  %2646 = vmatpush1.msra.mxu0 0.0
  %2647 = vmatprep.subr.mxu0 0.0
  %2648 = vmatpush1.msra.mxu0 0.0
  %2649 = vmatprep.subr.mxu0 0.0
  %2650 = vmatpush1.msra.mxu0 0.0
  %2651 = vmatprep.subr.mxu0 0.0
  %2652 = vmatpush1.msra.mxu0 0.0
  %2653 = vmatprep.subr.mxu0 0.0
  %2654 = vmatpush1.msra.mxu0 0.0
  %2655 = vmatprep.subr.mxu0 0.0
  %2656 = vmatpush1.msra.mxu0 0.0
  %2657 = vmatprep.mubr.f32.mxu0 0.0
  %2658 = vmatmul.mubr.f32.gmra.mrb[0].mxu0 %v1888
  %v2659 = vpop.f32.mrb[0].mxu0
  %v2660 = vadd.f32 0.0, %v2659
  %v2661 = vpop.f32.mrb[0].mxu0
  %2662 = vdwg.mxu0
  %v2663 = vadd.f32 %v2589, %v2660
  %v2664 = vmul.f32 %v2292, %v461
  %2666 = vrot.lane.b32.xlu0 %v2664, 119
  %v2667 = vpop.permute.xlu0 %2666
  %2669 = vmatprep.subr.mxu0 0.0
  %2670 = vmatpush1.msra.mxu0 %v2667
  %2671 = vmatprep.subr.mxu0 0.0
  %2672 = vmatpush1.msra.mxu0 0.0
  %2673 = vmatprep.subr.mxu0 0.0
  %2674 = vmatpush1.msra.mxu0 0.0
  %2675 = vmatprep.subr.mxu0 0.0
  %2676 = vmatpush1.msra.mxu0 0.0
  %2677 = vmatprep.subr.mxu0 0.0
  %2678 = vmatpush1.msra.mxu0 0.0
  %2679 = vmatprep.subr.mxu0 0.0
  %2680 = vmatpush1.msra.mxu0 0.0
  %2681 = vmatprep.subr.mxu0 0.0
  %2682 = vmatpush1.msra.mxu0 0.0
  %2683 = vmatprep.subr.mxu0 0.0
  %2684 = vmatpush1.msra.mxu0 0.0
  %2685 = vmatprep.subr.mxu0 0.0
  %2686 = vmatpush1.msra.mxu0 0.0
  %2687 = vmatprep.subr.mxu0 0.0
  %2688 = vmatpush1.msra.mxu0 0.0
  %2689 = vmatprep.subr.mxu0 0.0
  %2690 = vmatpush1.msra.mxu0 0.0
  %2691 = vmatprep.subr.mxu0 0.0
  %2692 = vmatpush1.msra.mxu0 0.0
  %2693 = vmatprep.subr.mxu0 0.0
  %2694 = vmatpush1.msra.mxu0 0.0
  %2695 = vmatprep.subr.mxu0 0.0
  %2696 = vmatpush1.msra.mxu0 0.0
  %2697 = vmatprep.subr.mxu0 0.0
  %2698 = vmatpush1.msra.mxu0 0.0
  %2699 = vmatprep.subr.mxu0 0.0
  %2700 = vmatpush1.msra.mxu0 0.0
  %2701 = vmatprep.subr.mxu0 0.0
  %2702 = vmatpush1.msra.mxu0 0.0
  %2703 = vmatprep.subr.mxu0 0.0
  %2704 = vmatpush1.msra.mxu0 0.0
  %2705 = vmatprep.subr.mxu0 0.0
  %2706 = vmatpush1.msra.mxu0 0.0
  %2707 = vmatprep.subr.mxu0 0.0
  %2708 = vmatpush1.msra.mxu0 0.0
  %2709 = vmatprep.subr.mxu0 0.0
  %2710 = vmatpush1.msra.mxu0 0.0
  %2711 = vmatprep.subr.mxu0 0.0
  %2712 = vmatpush1.msra.mxu0 0.0
  %2713 = vmatprep.subr.mxu0 0.0
  %2714 = vmatpush1.msra.mxu0 0.0
  %2715 = vmatprep.subr.mxu0 0.0
  %2716 = vmatpush1.msra.mxu0 0.0
  %2717 = vmatprep.subr.mxu0 0.0
  %2718 = vmatpush1.msra.mxu0 0.0
  %2719 = vmatprep.subr.mxu0 0.0
  %2720 = vmatpush1.msra.mxu0 0.0
  %2721 = vmatprep.subr.mxu0 0.0
  %2722 = vmatpush1.msra.mxu0 0.0
  %2723 = vmatprep.subr.mxu0 0.0
  %2724 = vmatpush1.msra.mxu0 0.0
  %2725 = vmatprep.subr.mxu0 0.0
  %2726 = vmatpush1.msra.mxu0 0.0
  %2727 = vmatprep.subr.mxu0 0.0
  %2728 = vmatpush1.msra.mxu0 0.0
  %2729 = vmatprep.subr.mxu0 0.0
  %2730 = vmatpush1.msra.mxu0 0.0
  %2731 = vmatprep.subr.mxu0 0.0
  %2732 = vmatpush1.msra.mxu0 0.0
  %2733 = vmatprep.mubr.f32.mxu0 0.0
  %2734 = vmatmul.mubr.f32.gmra.mrb[0].mxu0 %v1969
  %v2735 = vpop.f32.mrb[0].mxu0
  %v2736 = vadd.f32 0.0, %v2735
  %v2737 = vpop.f32.mrb[0].mxu0
  %2738 = vdwg.mxu0
  %v2739 = vadd.f32 %v2663, %v2736
  %v2740 = vmul.f32 %v2292, %v545
  %2742 = vrot.lane.b32.xlu0 %v2740, 114
  %v2743 = vpop.permute.xlu0 %2742
  %2745 = vmatprep.subr.mxu0 0.0
  %2746 = vmatpush1.msra.mxu0 %v2743
  %2747 = vmatprep.subr.mxu0 0.0
  %2748 = vmatpush1.msra.mxu0 0.0
  %2749 = vmatprep.subr.mxu0 0.0
  %2750 = vmatpush1.msra.mxu0 0.0
  %2751 = vmatprep.subr.mxu0 0.0
  %2752 = vmatpush1.msra.mxu0 0.0
  %2753 = vmatprep.subr.mxu0 0.0
  %2754 = vmatpush1.msra.mxu0 0.0
  %2755 = vmatprep.subr.mxu0 0.0
  %2756 = vmatpush1.msra.mxu0 0.0
  %2757 = vmatprep.subr.mxu0 0.0
  %2758 = vmatpush1.msra.mxu0 0.0
  %2759 = vmatprep.subr.mxu0 0.0
  %2760 = vmatpush1.msra.mxu0 0.0
  %2761 = vmatprep.subr.mxu0 0.0
  %2762 = vmatpush1.msra.mxu0 0.0
  %2763 = vmatprep.subr.mxu0 0.0
  %2764 = vmatpush1.msra.mxu0 0.0
  %2765 = vmatprep.subr.mxu0 0.0
  %2766 = vmatpush1.msra.mxu0 0.0
  %2767 = vmatprep.subr.mxu0 0.0
  %2768 = vmatpush1.msra.mxu0 0.0
  %2769 = vmatprep.subr.mxu0 0.0
  %2770 = vmatpush1.msra.mxu0 0.0
  %2771 = vmatprep.subr.mxu0 0.0
  %2772 = vmatpush1.msra.mxu0 0.0
  %2773 = vmatprep.subr.mxu0 0.0
  %2774 = vmatpush1.msra.mxu0 0.0
  %2775 = vmatprep.subr.mxu0 0.0
  %2776 = vmatpush1.msra.mxu0 0.0
  %2777 = vmatprep.subr.mxu0 0.0
  %2778 = vmatpush1.msra.mxu0 0.0
  %2779 = vmatprep.subr.mxu0 0.0
  %2780 = vmatpush1.msra.mxu0 0.0
  %2781 = vmatprep.subr.mxu0 0.0
  %2782 = vmatpush1.msra.mxu0 0.0
  %2783 = vmatprep.subr.mxu0 0.0
  %2784 = vmatpush1.msra.mxu0 0.0
  %2785 = vmatprep.subr.mxu0 0.0
  %2786 = vmatpush1.msra.mxu0 0.0
  %2787 = vmatprep.subr.mxu0 0.0
  %2788 = vmatpush1.msra.mxu0 0.0
  %2789 = vmatprep.subr.mxu0 0.0
  %2790 = vmatpush1.msra.mxu0 0.0
  %2791 = vmatprep.subr.mxu0 0.0
  %2792 = vmatpush1.msra.mxu0 0.0
  %2793 = vmatprep.subr.mxu0 0.0
  %2794 = vmatpush1.msra.mxu0 0.0
  %2795 = vmatprep.subr.mxu0 0.0
  %2796 = vmatpush1.msra.mxu0 0.0
  %2797 = vmatprep.subr.mxu0 0.0
  %2798 = vmatpush1.msra.mxu0 0.0
  %2799 = vmatprep.subr.mxu0 0.0
  %2800 = vmatpush1.msra.mxu0 0.0
  %2801 = vmatprep.subr.mxu0 0.0
  %2802 = vmatpush1.msra.mxu0 0.0
  %2803 = vmatprep.subr.mxu0 0.0
  %2804 = vmatpush1.msra.mxu0 0.0
  %2805 = vmatprep.subr.mxu0 0.0
  %2806 = vmatpush1.msra.mxu0 0.0
  %2807 = vmatprep.subr.mxu0 0.0
  %2808 = vmatpush1.msra.mxu0 0.0
  %2809 = vmatprep.mubr.f32.mxu0 0.0
  %2810 = vmatmul.mubr.f32.gmra.mrb[0].mxu0 %v2050
  %v2811 = vpop.f32.mrb[0].mxu0
  %v2812 = vadd.f32 0.0, %v2811
  %v2813 = vpop.f32.mrb[0].mxu0
  %2814 = vdwg.mxu0
  %v2815 = vadd.f32 %v2739, %v2812
  %2816 = vrot.lane.b32.xlu0 %v2292, 113
  %v2817 = vpop.permute.xlu0 %2816
  %2819 = vmatprep.subr.mxu0 0.0
  %2820 = vmatpush1.msra.mxu0 %v2817
  %2821 = vmatprep.subr.mxu0 0.0
  %2822 = vmatpush1.msra.mxu0 0.0
  %2823 = vmatprep.subr.mxu0 0.0
  %2824 = vmatpush1.msra.mxu0 0.0
  %2825 = vmatprep.subr.mxu0 0.0
  %2826 = vmatpush1.msra.mxu0 0.0
  %2827 = vmatprep.subr.mxu0 0.0
  %2828 = vmatpush1.msra.mxu0 0.0
  %2829 = vmatprep.subr.mxu0 0.0
  %2830 = vmatpush1.msra.mxu0 0.0
  %2831 = vmatprep.subr.mxu0 0.0
  %2832 = vmatpush1.msra.mxu0 0.0
  %2833 = vmatprep.subr.mxu0 0.0
  %2834 = vmatpush1.msra.mxu0 0.0
  %2835 = vmatprep.subr.mxu0 0.0
  %2836 = vmatpush1.msra.mxu0 0.0
  %2837 = vmatprep.subr.mxu0 0.0
  %2838 = vmatpush1.msra.mxu0 0.0
  %2839 = vmatprep.subr.mxu0 0.0
  %2840 = vmatpush1.msra.mxu0 0.0
  %2841 = vmatprep.subr.mxu0 0.0
  %2842 = vmatpush1.msra.mxu0 0.0
  %2843 = vmatprep.subr.mxu0 0.0
  %2844 = vmatpush1.msra.mxu0 0.0
  %2845 = vmatprep.subr.mxu0 0.0
  %2846 = vmatpush1.msra.mxu0 0.0
  %2847 = vmatprep.subr.mxu0 0.0
  %2848 = vmatpush1.msra.mxu0 0.0
  %2849 = vmatprep.subr.mxu0 0.0
  %2850 = vmatpush1.msra.mxu0 0.0
  %2851 = vmatprep.subr.mxu0 0.0
  %2852 = vmatpush1.msra.mxu0 0.0
  %2853 = vmatprep.subr.mxu0 0.0
  %2854 = vmatpush1.msra.mxu0 0.0
  %2855 = vmatprep.subr.mxu0 0.0
  %2856 = vmatpush1.msra.mxu0 0.0
  %2857 = vmatprep.subr.mxu0 0.0
  %2858 = vmatpush1.msra.mxu0 0.0
  %2859 = vmatprep.subr.mxu0 0.0
  %2860 = vmatpush1.msra.mxu0 0.0
  %2861 = vmatprep.subr.mxu0 0.0
  %2862 = vmatpush1.msra.mxu0 0.0
  %2863 = vmatprep.subr.mxu0 0.0
  %2864 = vmatpush1.msra.mxu0 0.0
  %2865 = vmatprep.subr.mxu0 0.0
  %2866 = vmatpush1.msra.mxu0 0.0
  %2867 = vmatprep.subr.mxu0 0.0
  %2868 = vmatpush1.msra.mxu0 0.0
  %2869 = vmatprep.subr.mxu0 0.0
  %2870 = vmatpush1.msra.mxu0 0.0
  %2871 = vmatprep.subr.mxu0 0.0
  %2872 = vmatpush1.msra.mxu0 0.0
  %2873 = vmatprep.subr.mxu0 0.0
  %2874 = vmatpush1.msra.mxu0 0.0
  %2875 = vmatprep.subr.mxu0 0.0
  %2876 = vmatpush1.msra.mxu0 0.0
  %2877 = vmatprep.subr.mxu0 0.0
  %2878 = vmatpush1.msra.mxu0 0.0
  %2879 = vmatprep.subr.mxu0 0.0
  %2880 = vmatpush1.msra.mxu0 0.0
  %2881 = vmatprep.subr.mxu0 0.0
  %2882 = vmatpush1.msra.mxu0 0.0
  %2883 = vmatprep.mubr.f32.mxu0 0.0
  %2884 = vmatmul.mubr.f32.gmra.mrb[0].mxu0 %v2129
  %v2885 = vpop.f32.mrb[0].mxu0
  %v2886 = vadd.f32 0.0, %v2885
  %v2887 = vpop.f32.mrb[0].mxu0
  %2888 = vdwg.mxu0
  %v2889 = vadd.f32 %v2815, %v2886
  %v2890 = vmul.f32 %v2292, %v708
  %2892 = vrot.lane.b32.xlu0 %v2890, 112
  %v2893 = vpop.permute.xlu0 %2892
  %2895 = vmatprep.subr.mxu0 0.0
  %2896 = vmatpush1.msra.mxu0 %v2893
  %2897 = vmatprep.subr.mxu0 0.0
  %2898 = vmatpush1.msra.mxu0 0.0
  %2899 = vmatprep.subr.mxu0 0.0
  %2900 = vmatpush1.msra.mxu0 0.0
  %2901 = vmatprep.subr.mxu0 0.0
  %2902 = vmatpush1.msra.mxu0 0.0
  %2903 = vmatprep.subr.mxu0 0.0
  %2904 = vmatpush1.msra.mxu0 0.0
  %2905 = vmatprep.subr.mxu0 0.0
  %2906 = vmatpush1.msra.mxu0 0.0
  %2907 = vmatprep.subr.mxu0 0.0
  %2908 = vmatpush1.msra.mxu0 0.0
  %2909 = vmatprep.subr.mxu0 0.0
  %2910 = vmatpush1.msra.mxu0 0.0
  %2911 = vmatprep.subr.mxu0 0.0
  %2912 = vmatpush1.msra.mxu0 0.0
  %2913 = vmatprep.subr.mxu0 0.0
  %2914 = vmatpush1.msra.mxu0 0.0
  %2915 = vmatprep.subr.mxu0 0.0
  %2916 = vmatpush1.msra.mxu0 0.0
  %2917 = vmatprep.subr.mxu0 0.0
  %2918 = vmatpush1.msra.mxu0 0.0
  %2919 = vmatprep.subr.mxu0 0.0
  %2920 = vmatpush1.msra.mxu0 0.0
  %2921 = vmatprep.subr.mxu0 0.0
  %2922 = vmatpush1.msra.mxu0 0.0
  %2923 = vmatprep.subr.mxu0 0.0
  %2924 = vmatpush1.msra.mxu0 0.0
  %2925 = vmatprep.subr.mxu0 0.0
  %2926 = vmatpush1.msra.mxu0 0.0
  %2927 = vmatprep.subr.mxu0 0.0
  %2928 = vmatpush1.msra.mxu0 0.0
  %2929 = vmatprep.subr.mxu0 0.0
  %2930 = vmatpush1.msra.mxu0 0.0
  %2931 = vmatprep.subr.mxu0 0.0
  %2932 = vmatpush1.msra.mxu0 0.0
  %2933 = vmatprep.subr.mxu0 0.0
  %2934 = vmatpush1.msra.mxu0 0.0
  %2935 = vmatprep.subr.mxu0 0.0
  %2936 = vmatpush1.msra.mxu0 0.0
  %2937 = vmatprep.subr.mxu0 0.0
  %2938 = vmatpush1.msra.mxu0 0.0
  %2939 = vmatprep.subr.mxu0 0.0
  %2940 = vmatpush1.msra.mxu0 0.0
  %2941 = vmatprep.subr.mxu0 0.0
  %2942 = vmatpush1.msra.mxu0 0.0
  %2943 = vmatprep.subr.mxu0 0.0
  %2944 = vmatpush1.msra.mxu0 0.0
  %2945 = vmatprep.subr.mxu0 0.0
  %2946 = vmatpush1.msra.mxu0 0.0
  %2947 = vmatprep.subr.mxu0 0.0
  %2948 = vmatpush1.msra.mxu0 0.0
  %2949 = vmatprep.subr.mxu0 0.0
  %2950 = vmatpush1.msra.mxu0 0.0
  %2951 = vmatprep.subr.mxu0 0.0
  %2952 = vmatpush1.msra.mxu0 0.0
  %2953 = vmatprep.subr.mxu0 0.0
  %2954 = vmatpush1.msra.mxu0 0.0
  %2955 = vmatprep.subr.mxu0 0.0
  %2956 = vmatpush1.msra.mxu0 0.0
  %2957 = vmatprep.subr.mxu0 0.0
  %2958 = vmatpush1.msra.mxu0 0.0
  %2959 = vmatprep.mubr.f32.mxu0 0.0
  %2960 = vmatmul.mubr.f32.gmra.mrb[0].mxu0 %v2210
  %v2961 = vpop.f32.mrb[0].mxu0
  %v2962 = vadd.f32 0.0, %v2961
  %v2963 = vpop.f32.mrb[0].mxu0
  %2964 = vdwg.mxu0
  %v2965 = vadd.f32 %v2889, %v2962
  %v2966 = vsel %vm791, %v2965, 0.0
  %2967 = vadd.xlane.f32.xlu0 %v2966
  %v2968 = vpop.xlane.xlu0 %2967
  %v2969 = vadd.f32 %v2286, %v2968
  %v2970 = vmul.f32 %v2965, %v2965
  %v2971 = vsel %vm791, %v2970, 0.0
  %2972 = vadd.xlane.f32.xlu0 %v2971
  %v2973 = vpop.xlane.xlu0 %2972
  %v2974 = vadd.f32 %v2291, %v2973
  %v2975 = vld [vmem:[%s5] sm:$0xff]
  %v2976 = vld [vmem:[%s6] sm:$0xff]
  %v2977 = vmul.f32 %v2969, 0.010204081
  %v2978 = vmul.f32 %v2974, 0.010204081
  %v2979 = vmul.f32 %v2977, %v2977
  %v2980 = vsub.f32 %v2978, %v2979
  %v2981 = vadd.f32 %v2980, 1e-05
  %v2982 = vrsqrt.pop %v2981
  %v2983 = vmul.f32 %v2975, %v2982
  %v2984 = vmul.f32 %v2977, %v2983
  %v2985 = vsub.f32 %v2976, %v2984
  %v2986 = vld [vmem:[%s7] sm:$0xff]
  %v2987 = vld [vmem:[%s7 + $0x8] sm:$0x7f]
  %v2988 = vld [vmem:[%s8] sm:$0xff]
  %v2989 = vld [vmem:[%s8 + $0x8] sm:$0x7f]
  %2991 = vset.pattern.permute.xlu0 0
  %2992 = vperm.xlu0 %2991, %v2983
  %v2993 = vpop.permute.xlu0 %2992
  %v2995 = vmul.f32 %v2282, %v2993
  %2997 = vset.pattern.permute.xlu0 0
  %2998 = vperm.xlu0 %2997, %v2985
  %v2999 = vpop.permute.xlu0 %2998
  %v3001 = vadd.f32 %v2995, %v2999
  %v3003 = vsel %vm60, %v2986, 0
  %v3006 = vsel %vm60, %v2987, 0
  %3008 = vmatprep.subr.mxu0 0.0
  %3009 = vmatpush1.msra.mxu0 %v3001
  %3010 = vmatprep.subr.mxu0 0.0
  %3011 = vmatpush1.msra.mxu0 0.0
  %3012 = vmatprep.subr.mxu0 0.0
  %3013 = vmatpush1.msra.mxu0 0.0
  %3014 = vmatprep.subr.mxu0 0.0
  %3015 = vmatpush1.msra.mxu0 0.0
  %3016 = vmatprep.subr.mxu0 0.0
  %3017 = vmatpush1.msra.mxu0 0.0
  %3018 = vmatprep.subr.mxu0 0.0
  %3019 = vmatpush1.msra.mxu0 0.0
  %3020 = vmatprep.subr.mxu0 0.0
  %3021 = vmatpush1.msra.mxu0 0.0
  %3022 = vmatprep.subr.mxu0 0.0
  %3023 = vmatpush1.msra.mxu0 0.0
  %3024 = vmatprep.subr.mxu0 0.0
  %3025 = vmatpush1.msra.mxu0 0.0
  %3026 = vmatprep.subr.mxu0 0.0
  %3027 = vmatpush1.msra.mxu0 0.0
  %3028 = vmatprep.subr.mxu0 0.0
  %3029 = vmatpush1.msra.mxu0 0.0
  %3030 = vmatprep.subr.mxu0 0.0
  %3031 = vmatpush1.msra.mxu0 0.0
  %3032 = vmatprep.subr.mxu0 0.0
  %3033 = vmatpush1.msra.mxu0 0.0
  %3034 = vmatprep.subr.mxu0 0.0
  %3035 = vmatpush1.msra.mxu0 0.0
  %3036 = vmatprep.subr.mxu0 0.0
  %3037 = vmatpush1.msra.mxu0 0.0
  %3038 = vmatprep.subr.mxu0 0.0
  %3039 = vmatpush1.msra.mxu0 0.0
  %3040 = vmatprep.subr.mxu0 0.0
  %3041 = vmatpush1.msra.mxu0 0.0
  %3042 = vmatprep.subr.mxu0 0.0
  %3043 = vmatpush1.msra.mxu0 0.0
  %3044 = vmatprep.subr.mxu0 0.0
  %3045 = vmatpush1.msra.mxu0 0.0
  %3046 = vmatprep.subr.mxu0 0.0
  %3047 = vmatpush1.msra.mxu0 0.0
  %3048 = vmatprep.subr.mxu0 0.0
  %3049 = vmatpush1.msra.mxu0 0.0
  %3050 = vmatprep.subr.mxu0 0.0
  %3051 = vmatpush1.msra.mxu0 0.0
  %3052 = vmatprep.subr.mxu0 0.0
  %3053 = vmatpush1.msra.mxu0 0.0
  %3054 = vmatprep.subr.mxu0 0.0
  %3055 = vmatpush1.msra.mxu0 0.0
  %3056 = vmatprep.subr.mxu0 0.0
  %3057 = vmatpush1.msra.mxu0 0.0
  %3058 = vmatprep.subr.mxu0 0.0
  %3059 = vmatpush1.msra.mxu0 0.0
  %3060 = vmatprep.subr.mxu0 0.0
  %3061 = vmatpush1.msra.mxu0 0.0
  %3062 = vmatprep.subr.mxu0 0.0
  %3063 = vmatpush1.msra.mxu0 0.0
  %3064 = vmatprep.subr.mxu0 0.0
  %3065 = vmatpush1.msra.mxu0 0.0
  %3066 = vmatprep.subr.mxu0 0.0
  %3067 = vmatpush1.msra.mxu0 0.0
  %3068 = vmatprep.subr.mxu0 0.0
  %3069 = vmatpush1.msra.mxu0 0.0
  %3070 = vmatprep.subr.mxu0 0.0
  %3071 = vmatpush1.msra.mxu0 0.0
  %3072 = vmatprep.mubr.f32.mxu0 0.0
  %3073 = vmatmul.mubr.f32.gmra.mrb[0].mxu0 %v3003
  %v3074 = vpop.f32.mrb[0].mxu0
  %v3075 = vadd.f32 0.0, %v3074
  %v3076 = vpop.f32.mrb[0].mxu0
  %3077 = vmatprep.mubr.f32.mxu0 0.0
  %3078 = vmatmul.mubr.f32.gmra.mrb[0].mxu0 %v3006
  %v3079 = vpop.f32.mrb[0].mxu0
  %v3080 = vadd.f32 0.0, %v3079
  %v3081 = vpop.f32.mrb[0].mxu0
  %3082 = vdwg.mxu0
  %v3083 = vsel %vm791, %v3075, 0.0
  %vm3084 = vcmask 399360
  %v3085 = vsel %vm3084, %v3080, 0.0
  %v3086 = vadd.f32 %v3083, %v3085
  %v3087 = vrot.slane %v3086, 4
  %v3088 = vadd.f32 %v3086, %v3087
  %v3089 = vrot.slane %v3088, 2
  %v3090 = vadd.f32 %v3088, %v3089
  %v3091 = vrot.slane %v3090, 1
  %v3092 = vadd.f32 %v3090, %v3091
  %v3093 = vrcp.pop 15.0
  %v3094 = vmul.f32 %v3092, %v3093
  %v3095 = vsub.f32 %v3075, %v3094
  %v3096 = vsub.f32 %v3080, %v3094
  %v3097 = vmul.f32 %v3095, %v3095
  %v3098 = vmul.f32 %v3096, %v3096
  %v3099 = vsel %vm791, %v3097, 0.0
  %v3100 = vsel %vm3084, %v3098, 0.0
  %v3101 = vadd.f32 %v3099, %v3100
  %v3102 = vrot.slane %v3101, 4
  %v3103 = vadd.f32 %v3101, %v3102
  %v3104 = vrot.slane %v3103, 2
  %v3105 = vadd.f32 %v3103, %v3104
  %v3106 = vrot.slane %v3105, 1
  %v3107 = vadd.f32 %v3105, %v3106
  %v3108 = vmul.f32 %v3107, %v3093
  %v3109 = vadd.f32 %v3108, 1e-12
  %v3110 = vrsqrt.pop %v3109
  %v3111 = vmul.f32 %v3095, %v3110
  %v3112 = vmul.f32 %v3096, %v3110
  %v3113 = vmul.f32 %v3111, %v2988
  %v3114 = vmul.f32 %v3112, %v2989
  %v3115 = vsel %vm791, %v3113, 0.0
  %v3116 = vsel %vm3084, %v3114, 0.0
  %v3117 = vadd.f32 %v3115, %v3116
  %v3118 = vrot.slane %v3117, 4
  %v3119 = vadd.f32 %v3117, %v3118
  %v3120 = vrot.slane %v3119, 2
  %v3121 = vadd.f32 %v3119, %v3120
  %v3122 = vrot.slane %v3121, 1
  %v3123 = vadd.f32 %v3121, %v3122
  %v3124 = vxor.u32 %v3123, 2147483648
  %v3125 = vmul.f32 %v3124, 1.442695
  %v3126 = vpow.pop %v3125
  %v3127 = vadd.f32 %v3126, 1.0
  %v3128 = vrcp.pop %v3127
  %v3129 = vmul.f32 1.0, %v3128
  %v3130 = vmul.f32 %v3001, %v3129
  %v3131 = vld [vmem:[%s0] sm:$0xff]
  %v3132 = vadd.f32 %v3130, %v3131
  %v3133 = vmax.f32 %v3132, 0.0
  %3134 = vst.msk [vmem:[%s10] sm:$0xff] %vm791, %v3133
  %v3135 = vmul.f32 %v2965, %v2993
  %v3136 = vadd.f32 %v3135, %v2999
  %3137 = vmatprep.subr.mxu0 0.0
  %3138 = vmatpush1.msra.mxu0 %v3136
  %3139 = vmatprep.subr.mxu0 0.0
  %3140 = vmatpush1.msra.mxu0 0.0
  %3141 = vmatprep.subr.mxu0 0.0
  %3142 = vmatpush1.msra.mxu0 0.0
  %3143 = vmatprep.subr.mxu0 0.0
  %3144 = vmatpush1.msra.mxu0 0.0
  %3145 = vmatprep.subr.mxu0 0.0
  %3146 = vmatpush1.msra.mxu0 0.0
  %3147 = vmatprep.subr.mxu0 0.0
  %3148 = vmatpush1.msra.mxu0 0.0
  %3149 = vmatprep.subr.mxu0 0.0
  %3150 = vmatpush1.msra.mxu0 0.0
  %3151 = vmatprep.subr.mxu0 0.0
  %3152 = vmatpush1.msra.mxu0 0.0
  %3153 = vmatprep.subr.mxu0 0.0
  %3154 = vmatpush1.msra.mxu0 0.0
  %3155 = vmatprep.subr.mxu0 0.0
  %3156 = vmatpush1.msra.mxu0 0.0
  %3157 = vmatprep.subr.mxu0 0.0
  %3158 = vmatpush1.msra.mxu0 0.0
  %3159 = vmatprep.subr.mxu0 0.0
  %3160 = vmatpush1.msra.mxu0 0.0
  %3161 = vmatprep.subr.mxu0 0.0
  %3162 = vmatpush1.msra.mxu0 0.0
  %3163 = vmatprep.subr.mxu0 0.0
  %3164 = vmatpush1.msra.mxu0 0.0
  %3165 = vmatprep.subr.mxu0 0.0
  %3166 = vmatpush1.msra.mxu0 0.0
  %3167 = vmatprep.subr.mxu0 0.0
  %3168 = vmatpush1.msra.mxu0 0.0
  %3169 = vmatprep.subr.mxu0 0.0
  %3170 = vmatpush1.msra.mxu0 0.0
  %3171 = vmatprep.subr.mxu0 0.0
  %3172 = vmatpush1.msra.mxu0 0.0
  %3173 = vmatprep.subr.mxu0 0.0
  %3174 = vmatpush1.msra.mxu0 0.0
  %3175 = vmatprep.subr.mxu0 0.0
  %3176 = vmatpush1.msra.mxu0 0.0
  %3177 = vmatprep.subr.mxu0 0.0
  %3178 = vmatpush1.msra.mxu0 0.0
  %3179 = vmatprep.subr.mxu0 0.0
  %3180 = vmatpush1.msra.mxu0 0.0
  %3181 = vmatprep.subr.mxu0 0.0
  %3182 = vmatpush1.msra.mxu0 0.0
  %3183 = vmatprep.subr.mxu0 0.0
  %3184 = vmatpush1.msra.mxu0 0.0
  %3185 = vmatprep.subr.mxu0 0.0
  %3186 = vmatpush1.msra.mxu0 0.0
  %3187 = vmatprep.subr.mxu0 0.0
  %3188 = vmatpush1.msra.mxu0 0.0
  %3189 = vmatprep.subr.mxu0 0.0
  %3190 = vmatpush1.msra.mxu0 0.0
  %3191 = vmatprep.subr.mxu0 0.0
  %3192 = vmatpush1.msra.mxu0 0.0
  %3193 = vmatprep.subr.mxu0 0.0
  %3194 = vmatpush1.msra.mxu0 0.0
  %3195 = vmatprep.subr.mxu0 0.0
  %3196 = vmatpush1.msra.mxu0 0.0
  %3197 = vmatprep.subr.mxu0 0.0
  %3198 = vmatpush1.msra.mxu0 0.0
  %3199 = vmatprep.subr.mxu0 0.0
  %3200 = vmatpush1.msra.mxu0 0.0
  %3201 = vmatprep.mubr.f32.mxu0 0.0
  %3202 = vmatmul.mubr.f32.gmra.mrb[0].mxu0 %v3003
  %v3203 = vpop.f32.mrb[0].mxu0
  %v3204 = vadd.f32 0.0, %v3203
  %v3205 = vpop.f32.mrb[0].mxu0
  %3206 = vmatprep.mubr.f32.mxu0 0.0
  %3207 = vmatmul.mubr.f32.gmra.mrb[0].mxu0 %v3006
  %v3208 = vpop.f32.mrb[0].mxu0
  %v3209 = vadd.f32 0.0, %v3208
  %v3210 = vpop.f32.mrb[0].mxu0
  %3211 = vdwg.mxu0
  %v3212 = vsel %vm791, %v3204, 0.0
  %v3213 = vsel %vm3084, %v3209, 0.0
  %v3214 = vadd.f32 %v3212, %v3213
  %v3215 = vrot.slane %v3214, 4
  %v3216 = vadd.f32 %v3214, %v3215
  %v3217 = vrot.slane %v3216, 2
  %v3218 = vadd.f32 %v3216, %v3217
  %v3219 = vrot.slane %v3218, 1
  %v3220 = vadd.f32 %v3218, %v3219
  %v3221 = vmul.f32 %v3220, %v3093
  %v3222 = vsub.f32 %v3204, %v3221
  %v3223 = vsub.f32 %v3209, %v3221
  %v3224 = vmul.f32 %v3222, %v3222
  %v3225 = vmul.f32 %v3223, %v3223
  %v3226 = vsel %vm791, %v3224, 0.0
  %v3227 = vsel %vm3084, %v3225, 0.0
  %v3228 = vadd.f32 %v3226, %v3227
  %v3229 = vrot.slane %v3228, 4
  %v3230 = vadd.f32 %v3228, %v3229
  %v3231 = vrot.slane %v3230, 2
  %v3232 = vadd.f32 %v3230, %v3231
  %v3233 = vrot.slane %v3232, 1
  %v3234 = vadd.f32 %v3232, %v3233
  %v3235 = vmul.f32 %v3234, %v3093
  %v3236 = vadd.f32 %v3235, 1e-12
  %v3237 = vrsqrt.pop %v3236
  %v3238 = vmul.f32 %v3222, %v3237
  %v3239 = vmul.f32 %v3223, %v3237
  %v3240 = vmul.f32 %v3238, %v2988
  %v3241 = vmul.f32 %v3239, %v2989
  %v3242 = vsel %vm791, %v3240, 0.0
  %v3243 = vsel %vm3084, %v3241, 0.0
  %v3244 = vadd.f32 %v3242, %v3243
  %v3245 = vrot.slane %v3244, 4
  %v3246 = vadd.f32 %v3244, %v3245
  %v3247 = vrot.slane %v3246, 2
  %v3248 = vadd.f32 %v3246, %v3247
  %v3249 = vrot.slane %v3248, 1
  %v3250 = vadd.f32 %v3248, %v3249
  %v3251 = vxor.u32 %v3250, 2147483648
  %v3252 = vmul.f32 %v3251, 1.442695
  %v3253 = vpow.pop %v3252
  %v3254 = vadd.f32 %v3253, 1.0
  %v3255 = vrcp.pop %v3254
  %v3256 = vmul.f32 1.0, %v3255
  %v3257 = vmul.f32 %v3136, %v3256
  %v3258 = vld [vmem:[%s801] sm:$0xff]
  %v3259 = vadd.f32 %v3257, %v3258
  %v3260 = vmax.f32 %v3259, 0.0
  %s3261 = scalar_lea.vmem %s10, 8
  %3262 = vst.msk [vmem:[%s3261] sm:$0xff] %vm791, %v3260
  // Predicated region
  $region42: #{basic_block_forward.1} parent=0 // pred_check
    _
  $region43: #{basic_block_forward.1} parent=0 // pred_check_branch
    %3264 = sbr.rel (0) target = $region45
  $region44: #{basic_block_forward.1} parent=0 // pred_region
    _
  $region45: #{basic_block_forward.1} parent=0 // pred_fallthru
    _
  // Predicated region
  $region46: #{basic_block_forward.1} parent=0 // pred_check
    _
  $region47: #{basic_block_forward.1} parent=0 // pred_check_branch
    %3266 = sbr.rel (0) target = $region49
  $region48: #{basic_block_forward.1} parent=0 // pred_region
    _
  $region49: #{basic_block_forward.1} parent=0 // pred_fallthru
    _

</llo_original>
